<compile_context>
chip_gen: v7x
topology: tpu7x:2x2x1
jax: 0.10.0
libtpu: 0.0.40
codegen_flags: <defaults>
</compile_context>

<pallas_src>
import functools
import math

import jax
import jax.numpy as jnp
from jax.experimental import pallas as pl
from jax.experimental.pallas import tpu as pltpu


# ----------------------------------------------------------------------------
# Tile selection helpers
# ----------------------------------------------------------------------------
_M_TILES = (512, 256, 128, 64, 32, 16, 8)   # sublane axis: multiples of 8
_LANE_TILES = (512, 256, 128)               # lane axis: 256-biased then 128
_VMEM_LIMIT = 64 * 1024 * 1024


def _pick_tile(dim, candidates):
    """Largest candidate dividing `dim`; fall back to the full extent (a
    full-extent block is always a legal block shape)."""
    for c in candidates:
        if dim % c == 0:
            return c
    return dim


def _round_up(n, m):
    return ((n + m - 1) // m) * m


def _const_spec(shape):
    """Grid-invariant (weight) block: single-buffered, fetched once."""
    nd = len(shape)
    return pl.BlockSpec(shape, lambda *_: (0,) * nd,
                        pipeline_mode=pl.Buffered(1))


# ----------------------------------------------------------------------------
# Kernel: tiled matmul (+bias, +optional GELU)   y = act(x @ w + b)
# Operands arrive as bf16; accumulation in f32.
# ----------------------------------------------------------------------------
def _matmul_kernel(x_ref, w_ref, b_ref, o_ref, acc_ref, *, act):
    @pl.when(pl.program_id(2) == 0)
    def _init():
        acc_ref[...] = jnp.zeros_like(acc_ref)

    acc_ref[...] += jnp.dot(x_ref[...], w_ref[...],
                            preferred_element_type=jnp.float32)

    @pl.when(pl.program_id(2) == pl.num_programs(2) - 1)
    def _finalize():
        y = acc_ref[...] + b_ref[...]
        if act == "gelu":
            y = jax.nn.gelu(y, approximate=True)
        o_ref[...] = y.astype(o_ref.dtype)


def pallas_matmul(x, w, b, act=None):
    """x:(M,K) bf16, w:(K,N) bf16, b:(N,) f32 -> act(x@w+b) as bf16."""
    M, K = x.shape
    _, N = w.shape
    tm = _pick_tile(M, _M_TILES)
    tn = _pick_tile(N, _LANE_TILES)
    tk = _pick_tile(K, _LANE_TILES)
    return pl.pallas_call(
        functools.partial(_matmul_kernel, act=act),
        out_shape=jax.ShapeDtypeStruct((M, N), jnp.bfloat16),
        grid=(M // tm, N // tn, K // tk),
        in_specs=[
            pl.BlockSpec((tm, tk), lambda i, j, k: (i, k)),
            pl.BlockSpec((tk, tn), lambda i, j, k: (k, j)),
            pl.BlockSpec((1, tn), lambda i, j, k: (0, j)),
        ],
        out_specs=pl.BlockSpec((tm, tn), lambda i, j, k: (i, j)),
        scratch_shapes=[pltpu.VMEM((tm, tn), jnp.float32)],
        compiler_params=pltpu.CompilerParams(
            dimension_semantics=("parallel", "parallel", "arbitrary"),
            vmem_limit_bytes=_VMEM_LIMIT),
    )(x, w, b.reshape(1, N).astype(jnp.float32))


# ----------------------------------------------------------------------------
# Kernel: fused LayerNorm -> Q/K/V projections (scale already folded into Wq)
# ----------------------------------------------------------------------------
def _ln_qkv_kernel(x_ref, g_ref, bta_ref, wq_ref, bq_ref, wk_ref, bk_ref,
                   wv_ref, bv_ref, q_ref, k_ref, v_ref, *, eps):
    x = x_ref[...].astype(jnp.float32)
    mu = jnp.mean(x, axis=-1, keepdims=True)
    var = jnp.mean(jnp.square(x - mu), axis=-1, keepdims=True)
    h = (x - mu) * jax.lax.rsqrt(var + eps)
    h = (h * g_ref[...] + bta_ref[...]).astype(jnp.bfloat16)
    q = jnp.dot(h, wq_ref[...], preferred_element_type=jnp.float32) + bq_ref[...]
    k = jnp.dot(h, wk_ref[...], preferred_element_type=jnp.float32) + bk_ref[...]
    v = jnp.dot(h, wv_ref[...], preferred_element_type=jnp.float32) + bv_ref[...]
    q_ref[...] = q.astype(q_ref.dtype)
    k_ref[...] = k.astype(k_ref.dtype)
    v_ref[...] = v.astype(v_ref.dtype)


def pallas_ln_qkv(x, gamma, beta, wq, bq, wk, bk, wv, bv, eps=1e-5):
    M, D = x.shape
    tm = _pick_tile(M, _M_TILES)
    out = jax.ShapeDtypeStruct((M, D), jnp.bfloat16)
    return pl.pallas_call(
        functools.partial(_ln_qkv_kernel, eps=eps),
        out_shape=(out, out, out),
        grid=(M // tm,),
        in_specs=[
            pl.BlockSpec((tm, D), lambda i: (i, 0)),
            _const_spec((1, D)), _const_spec((1, D)),
            _const_spec((D, D)), _const_spec((1, D)),
            _const_spec((D, D)), _const_spec((1, D)),
            _const_spec((D, D)), _const_spec((1, D)),
        ],
        out_specs=(pl.BlockSpec((tm, D), lambda i: (i, 0)),) * 3,
        compiler_params=pltpu.CompilerParams(
            dimension_semantics=("parallel",),
            vmem_limit_bytes=_VMEM_LIMIT),
    )(x, gamma.reshape(1, D), beta.reshape(1, D),
      wq, bq.reshape(1, D), wk, bk.reshape(1, D), wv, bv.reshape(1, D))


# ----------------------------------------------------------------------------
# Kernel: flash-style MHSA (online softmax over key tiles) + output projection
# + residual.  q/k/v arrive head-major (B, nh, N, hd); heads are batched in
# one einsum (leading batch dim) -> no per-head lane slices.
# ----------------------------------------------------------------------------
def _flash_attn_kernel(tok_ref, q_ref, k_ref, v_ref, wp_ref, bp_ref, o_ref,
                       m_ref, l_ref, acc_ref, *, n_real, tk, nh):
    ki = pl.program_id(2)

    @pl.when(ki == 0)
    def _init():
        m_ref[...] = jnp.full_like(m_ref, -1e30)
        l_ref[...] = jnp.zeros_like(l_ref)
        acc_ref[...] = jnp.zeros_like(acc_ref)

    q = q_ref[0]                                   # (nh, tq, hd) bf16
    k = k_ref[0]                                   # (nh, tk, hd) bf16
    s = jnp.einsum('hqd,hkd->hqk', q, k,
                   preferred_element_type=jnp.float32)   # (nh, tq, tk) f32
    key_idx = ki * tk + jax.lax.broadcasted_iota(jnp.int32, s.shape, 2)
    s = jnp.where(key_idx < n_real, s, -1e30)       # mask padded keys

    m_prev = m_ref[...]
    m_new = jnp.maximum(m_prev, jnp.max(s, axis=-1, keepdims=True))
    alpha = jnp.exp(m_prev - m_new)
    p = jnp.exp(s - m_new)
    l_ref[...] = alpha * l_ref[...] + jnp.sum(p, axis=-1, keepdims=True)
    acc_ref[...] = alpha * acc_ref[...] + jnp.einsum(
        'hqk,hkd->hqd', p.astype(jnp.bfloat16), v_ref[0],
        preferred_element_type=jnp.float32)
    m_ref[...] = m_new

    @pl.when(ki == pl.num_programs(2) - 1)
    def _finalize():
        o = acc_ref[...] * pl.reciprocal(l_ref[...], approx=True)  # (nh,tq,hd)
        y = bp_ref[...]                                            # (1, D) f32
        for h in range(nh):   # leading-dim head index (cheap) -> proj fold
            y = y + jnp.dot(o[h].astype(jnp.bfloat16), wp_ref[h],
                            preferred_element_type=jnp.float32)
        o_ref[0] = (tok_ref[0].astype(jnp.float32) + y).astype(o_ref.dtype)


def pallas_flash_attention(tokens, q, k, v, wp3, bproj, n_real):
    """tokens:(B,Np,D) residual, q/k/v:(B,nh,Np,hd) -> tokens + proj(MHSA)."""
    B, Np, D = tokens.shape
    _, nh, _, hd = q.shape
    tq = _pick_tile(Np, (256, 128))
    tk = _pick_tile(Np, (256, 128))
    return pl.pallas_call(
        functools.partial(_flash_attn_kernel, n_real=n_real, tk=tk, nh=nh),
        out_shape=jax.ShapeDtypeStruct((B, Np, D), jnp.bfloat16),
        grid=(B, Np // tq, Np // tk),
        in_specs=[
            pl.BlockSpec((1, tq, D), lambda b, qi, ki: (b, qi, 0)),
            pl.BlockSpec((1, nh, tq, hd), lambda b, qi, ki: (b, 0, qi, 0)),
            pl.BlockSpec((1, nh, tk, hd), lambda b, qi, ki: (b, 0, ki, 0)),
            pl.BlockSpec((1, nh, tk, hd), lambda b, qi, ki: (b, 0, ki, 0)),
            _const_spec((nh, hd, D)),
            _const_spec((1, D)),
        ],
        out_specs=pl.BlockSpec((1, tq, D), lambda b, qi, ki: (b, qi, 0)),
        scratch_shapes=[
            pltpu.VMEM((nh, tq, 1), jnp.float32),   # m
            pltpu.VMEM((nh, tq, 1), jnp.float32),   # l
            pltpu.VMEM((nh, tq, hd), jnp.float32),  # acc
        ],
        compiler_params=pltpu.CompilerParams(
            dimension_semantics=("parallel", "parallel", "arbitrary"),
            vmem_limit_bytes=_VMEM_LIMIT),
    )(tokens, q, k, v, wp3, bproj.reshape(1, D).astype(jnp.float32))


# ----------------------------------------------------------------------------
# Kernel: fused LayerNorm -> W1(gelu) -> W2 -> residual   (MLP block)
# ----------------------------------------------------------------------------
def _ln_mlp_kernel(x_ref, g_ref, bta_ref, w1_ref, b1_ref, w2_ref, b2_ref,
                   o_ref, *, eps):
    x = x_ref[...].astype(jnp.float32)
    mu = jnp.mean(x, axis=-1, keepdims=True)
    var = jnp.mean(jnp.square(x - mu), axis=-1, keepdims=True)
    h = (x - mu) * jax.lax.rsqrt(var + eps)
    h = (h * g_ref[...] + bta_ref[...]).astype(jnp.bfloat16)
    m = jnp.dot(h, w1_ref[...], preferred_element_type=jnp.float32) + b1_ref[...]
    m = jax.nn.gelu(m, approximate=True).astype(jnp.bfloat16)
    y = jnp.dot(m, w2_ref[...], preferred_element_type=jnp.float32) + b2_ref[...]
    o_ref[...] = (x + y).astype(o_ref.dtype)       # residual fused in


def pallas_ln_mlp(x, gamma, beta, w1, b1, w2, b2, eps=1e-5):
    M, D = x.shape
    H = w1.shape[1]
    tm = _pick_tile(M, _M_TILES)
    return pl.pallas_call(
        functools.partial(_ln_mlp_kernel, eps=eps),
        out_shape=jax.ShapeDtypeStruct((M, D), jnp.bfloat16),
        grid=(M // tm,),
        in_specs=[
            pl.BlockSpec((tm, D), lambda i: (i, 0)),
            _const_spec((1, D)), _const_spec((1, D)),
            _const_spec((D, H)), _const_spec((1, H)),
            _const_spec((H, D)), _const_spec((1, D)),
        ],
        out_specs=pl.BlockSpec((tm, D), lambda i: (i, 0)),
        compiler_params=pltpu.CompilerParams(
            dimension_semantics=("parallel",),
            vmem_limit_bytes=_VMEM_LIMIT),
    )(x, gamma.reshape(1, D), beta.reshape(1, D),
      w1, b1.reshape(1, H), w2, b2.reshape(1, D))


# ----------------------------------------------------------------------------
# Kernel: fused classification head (3 stacked Linears, lane-padded to 128)
# ----------------------------------------------------------------------------
def _head_kernel(x_ref, w1_ref, b1_ref, w2_ref, b2_ref, w3_ref, b3_ref, o_ref):
    h = jnp.dot(x_ref[...], w1_ref[...],
                preferred_element_type=jnp.float32) + b1_ref[...]
    h = jnp.dot(h.astype(jnp.bfloat16), w2_ref[...],
                preferred_element_type=jnp.float32) + b2_ref[...]
    h = jnp.dot(h.astype(jnp.bfloat16), w3_ref[...],
                preferred_element_type=jnp.float32) + b3_ref[...]
    o_ref[...] = h.astype(o_ref.dtype)


def pallas_head(x, head):
    B, D = x.shape
    Hp = head["w1"].shape[1]
    Cp = head["w3"].shape[1]
    return pl.pallas_call(
        _head_kernel,
        out_shape=jax.ShapeDtypeStruct((B, Cp), jnp.float32),
        grid=(1,),
        in_specs=[
            pl.BlockSpec((B, D), lambda i: (0, 0)),
            pl.BlockSpec((D, Hp), lambda i: (0, 0)),
            pl.BlockSpec((1, Hp), lambda i: (0, 0)),
            pl.BlockSpec((Hp, Hp), lambda i: (0, 0)),
            pl.BlockSpec((1, Hp), lambda i: (0, 0)),
            pl.BlockSpec((Hp, Cp), lambda i: (0, 0)),
            pl.BlockSpec((1, Cp), lambda i: (0, 0)),
        ],
        out_specs=pl.BlockSpec((B, Cp), lambda i: (0, 0)),
        compiler_params=pltpu.CompilerParams(
            dimension_semantics=("arbitrary",)),
    )(x, head["w1"], head["b1"].reshape(1, Hp),
      head["w2"], head["b2"].reshape(1, Hp),
      head["w3"], head["b3"].reshape(1, Cp))


# ----------------------------------------------------------------------------
# Parameter construction (deterministic, PyTorch-default-style init)
# ----------------------------------------------------------------------------
def _init_linear(key, fan_in, fan_out):
    kw, kb = jax.random.split(key)
    bound = 1.0 / math.sqrt(fan_in)
    w = jax.random.uniform(kw, (fan_in, fan_out), jnp.float32, -bound, bound)
    b = jax.random.uniform(kb, (fan_out,), jnp.float32, -bound, bound)
    return w, b


def sinusoidal_pe(n_pos, d_model):
    pos = jnp.arange(n_pos, dtype=jnp.float32)[:, None]
    div = jnp.exp(jnp.arange(0, d_model, 2, dtype=jnp.float32)
                  * (-math.log(10000.0) / d_model))
    pe = jnp.zeros((n_pos, d_model), jnp.float32)
    pe = pe.at[:, 0::2].set(jnp.sin(pos * div))
    pe = pe.at[:, 1::2].set(jnp.cos(pos * div))
    return pe[None]  # (1, n_pos, d_model)


def init_vitae_params(key, img_size, in_channel, embed_dim, class_num,
                      R_layers=3, N_layers=3, num_heads=4, mlp_ratio=4):
    keys = jax.random.split(key, 64)
    ki = iter(keys)
    D = embed_dim
    bf = jnp.bfloat16

    reduction, ratios = [], []
    spatial = img_size
    for i in range(R_layers):
        ratio, ch = (4, in_channel) if i == 0 else (2, embed_dim)
        w, b = _init_linear(next(ki), ch * ratio * ratio, D)
        reduction.append({"w": w.astype(bf), "b": b})
        ratios.append(ratio)
        spatial //= ratio

    n_tokens = spatial * spatial + 1  # + cls token
    cls_token = (0.02 * jax.random.normal(next(ki), (1, 1, D),
                                          jnp.float32)).astype(bf)
    pos_embed = sinusoidal_pe(n_tokens, D).astype(bf)

    hd = D // num_heads
    scale = 1.0 / math.sqrt(hd)
    hidden = mlp_ratio * D
    normal = []
    for _ in range(N_layers):
        wqkv, bqkv = _init_linear(next(ki), D, 3 * D)
        wproj, bproj = _init_linear(next(ki), D, D)
        w1, b1 = _init_linear(next(ki), D, hidden)
        w2, b2 = _init_linear(next(ki), hidden, D)
        normal.append({
            "ln1_g": jnp.ones((D,), jnp.float32),
            "ln1_b": jnp.zeros((D,), jnp.float32),
            "ln2_g": jnp.ones((D,), jnp.float32),
            "ln2_b": jnp.zeros((D,), jnp.float32),
            # 1/sqrt(hd) scale folded into the Q projection (weight + bias)
            "wq": (wqkv[:, :D] * scale).astype(bf),
            "bq": bqkv[:D] * scale,
            "wk": wqkv[:, D:2 * D].astype(bf),
            "bk": bqkv[D:2 * D],
            "wv": wqkv[:, 2 * D:].astype(bf),
            "bv": bqkv[2 * D:],
            # output projection pre-reshaped head-major: (nh, hd, D)
            "wp3": wproj.reshape(num_heads, hd, D).astype(bf),
            "bproj": bproj,
            "w1": w1.astype(bf), "b1": b1,
            "w2": w2.astype(bf), "b2": b2,
        })

    # Head: zero-pad hidden/class dims to 128 so the stores are lane-dense.
    # Exact: there is no nonlinearity between the head Linears, so zero-padded
    # rows/cols contribute nothing.
    Hh = int((D + class_num) / 2)
    Hp = _round_up(Hh, 128)
    Cp = _round_up(class_num, 128)
    w1h, b1h = _init_linear(next(ki), D, Hh)
    w2h, b2h = _init_linear(next(ki), Hh, Hh)
    w3h, b3h = _init_linear(next(ki), Hh, class_num)
    head = {
        "w1": jnp.zeros((D, Hp), jnp.float32).at[:, :Hh].set(w1h).astype(bf),
        "b1": jnp.zeros((Hp,), jnp.float32).at[:Hh].set(b1h),
        "w2": jnp.zeros((Hp, Hp), jnp.float32).at[:Hh, :Hh].set(w2h).astype(bf),
        "b2": jnp.zeros((Hp,), jnp.float32).at[:Hh].set(b2h),
        "w3": jnp.zeros((Hp, Cp), jnp.float32).at[:Hh, :class_num].set(w3h).astype(bf),
        "b3": jnp.zeros((Cp,), jnp.float32).at[:class_num].set(b3h),
    }

    params = {"reduction": reduction, "cls_token": cls_token,
              "pos_embed": pos_embed, "normal": normal, "head": head}
    static = {"ratios": ratios, "num_heads": num_heads, "class_num": class_num}
    return params, static


# ----------------------------------------------------------------------------
# Forward pass (glue in JAX, hot paths in Pallas)
# ----------------------------------------------------------------------------
def vitae_forward(params, static, x):
    # NCHW -> NHWC once; the embedding dim stays the lane-dense minor axis and
    # everything downstream runs in bf16 with f32 accumulation inside kernels.
    x = jnp.transpose(x, (0, 2, 3, 1)).astype(jnp.bfloat16)

    # --- Reduction layers: patchify (kernel=stride=ratio) matmul + GELU -----
    # TODO(synk): fold the patchify gather into the matmul BlockSpec index_map
    # (DMA-side gather) to avoid one XLA relayout HBM round-trip per stage.
    for rc, r in zip(params["reduction"], static["ratios"]):
        B, H, W, C = x.shape
        Ho, Wo = H // r, W // r
        p = x.reshape(B, Ho, r, Wo, r, C)
        p = p.transpose(0, 1, 3, 2, 4, 5).reshape(B * Ho * Wo, r * r * C)
        y = pallas_matmul(p, rc["w"], rc["b"], act="gelu")   # bf16 out
        x = y.reshape(B, Ho, Wo, -1)                         # stays NHWC

    # --- Positional encoding: cls prepend + sinusoidal PE (dropout=id eval) --
    B, H, W, D = x.shape
    tokens = x.reshape(B, H * W, D)
    cls = jnp.broadcast_to(params["cls_token"], (B, 1, D)).astype(tokens.dtype)
    tokens = jnp.concatenate([cls, tokens], axis=1)          # (B, N, D)
    tokens = tokens + params["pos_embed"][:, :tokens.shape[1]]

    # Pad token axis so row/query/key tiles are sublane/lane aligned; padded
    # keys are masked inside the attention kernel.
    n_real = tokens.shape[1]
    n_pad = _round_up(n_real, 128) if n_real > 128 else _round_up(n_real, 8)
    tokens = jnp.pad(tokens, ((0, 0), (0, n_pad - n_real), (0, 0)))

    nh = static["num_heads"]
    hd = D // nh
    for nc in params["normal"]:
        x2 = tokens.reshape(B * n_pad, D)
        q, k, v = pallas_ln_qkv(x2, nc["ln1_g"], nc["ln1_b"],
                                nc["wq"], nc["bq"], nc["wk"], nc["bk"],
                                nc["wv"], nc["bv"])
        # Head-major layout for the flash kernel (leading batch = head dim).
        q = q.reshape(B, n_pad, nh, hd).transpose(0, 2, 1, 3)
        k = k.reshape(B, n_pad, nh, hd).transpose(0, 2, 1, 3)
        v = v.reshape(B, n_pad, nh, hd).transpose(0, 2, 1, 3)
        tokens = pallas_flash_attention(tokens, q, k, v,
                                        nc["wp3"], nc["bproj"], n_real)
        x2 = tokens.reshape(B * n_pad, D)
        tokens = pallas_ln_mlp(x2, nc["ln2_g"], nc["ln2_b"],
                               nc["w1"], nc["b1"], nc["w2"], nc["b2"]
                               ).reshape(B, n_pad, D)

    # --- class token + fused head (lane-padded; slice back to class_num) -----
    cls_out = tokens[:, 0]                                    # (B, D) bf16
    logits_p = pallas_head(cls_out, params["head"])           # (B, Cp) f32
    return logits_p[:, :static["class_num"]]


# ----------------------------------------------------------------------------
if __name__ == "__main__":
    img_size, in_channel, embed_dim, class_num = 32, 4, 32, 10
    batch = 2

    key = jax.random.PRNGKey(0)
    k_x, k_p = jax.random.split(key)
    x = jax.random.normal(k_x, (batch, in_channel, img_size, img_size),
                          jnp.float32)

    params, static = init_vitae_params(
        k_p, img_size, in_channel, embed_dim, class_num,
        R_layers=3, N_layers=3, num_heads=4, mlp_ratio=4)

    fwd = jax.jit(lambda p, xx: vitae_forward(p, static, xx))
    out = jax.block_until_ready(fwd(params, x))
    assert out.shape == (batch, class_num), out.shape
    assert bool(jnp.all(jnp.isfinite(out)))
    print("KERNEL_OK")
</pallas_src>

<mosaic_0001>
module attributes {stable_mosaic.version = 11 : i64} {
  func.func @_matmul_kernel(%arg0: i32, %arg1: i32, %arg2: i32, %arg3: memref<128x64xbf16, #tpu.memory_space<vmem>>, %arg4: memref<64x32xbf16, #tpu.memory_space<vmem>>, %arg5: memref<1x32xf32, #tpu.memory_space<vmem>>, %arg6: memref<128x32xbf16, #tpu.memory_space<vmem>>, %arg7: memref<128x32xf32, #tpu.memory_space<vmem>>) attributes {dimension_semantics = [#tpu.dimension_semantics<parallel>, #tpu.dimension_semantics<parallel>, #tpu.dimension_semantics<arbitrary>], iteration_bounds = array<i64: 1, 1, 1>, scalar_prefetch = 0 : i64, scratch_operands = 1 : i64, tpu.core_type = #tpu.core_type<tc>, window_params = [{transform_indices = @transform_0, window_bounds = array<i64: 128, 64>}, {transform_indices = @transform_1, window_bounds = array<i64: 64, 32>}, {transform_indices = @transform_2, window_bounds = array<i64: 1, 32>}, {transform_indices = @transform_3, window_bounds = array<i64: 128, 32>}]} {
    %c0_i32 = arith.constant 0 : i32
    %0 = arith.cmpi eq, %arg2, %c0_i32 : i32
    %1 = arith.extui %0 : i1 to i32
    %c0_i32_0 = arith.constant 0 : i32
    %2 = arith.cmpi ne, %1, %c0_i32_0 : i32
    scf.if %2 {
      %cst_10 = arith.constant 0.000000e+00 : f32
      %12 = vector.broadcast %cst_10 : f32 to vector<128x32xf32>
      %c0_11 = arith.constant 0 : index
      %c0_12 = arith.constant 0 : index
      %13 = vector.load %arg7[%c0_11, %c0_12] : memref<128x32xf32, #tpu.memory_space<vmem>>, vector<128x32xf32>
      tpu.vector_store %arg7[%c0_11, %c0_12], %12 {strides = array<i32>} : memref<128x32xf32, #tpu.memory_space<vmem>>, vector<128x32xf32>,
    } else {
    }
    %c0 = arith.constant 0 : index
    %c0_1 = arith.constant 0 : index
    %3 = vector.load %arg7[%c0, %c0_1] : memref<128x32xf32, #tpu.memory_space<vmem>>, vector<128x32xf32>
    %c0_2 = arith.constant 0 : index
    %c0_3 = arith.constant 0 : index
    %4 = vector.load %arg3[%c0_2, %c0_3] : memref<128x64xbf16, #tpu.memory_space<vmem>>, vector<128x64xbf16>
    %c0_4 = arith.constant 0 : index
    %c0_5 = arith.constant 0 : index
    %5 = vector.load %arg4[%c0_4, %c0_5] : memref<64x32xbf16, #tpu.memory_space<vmem>>, vector<64x32xbf16>
    %cst = arith.constant dense<0.000000e+00> : vector<128x32xf32>
    %6 = tpu.matmul %4, %5, %cst {dimension_numbers = #tpu.dot_dimension_numbers<[1], [0], [0], [1], [0, 0, 1, 1], [], []>} : vector<128x64xbf16>, vector<64x32xbf16>, vector<128x32xf32> -> vector<128x32xf32>
    %7 = arith.addf %3, %6 : vector<128x32xf32>
    %c0_6 = arith.constant 0 : index
    %c0_7 = arith.constant 0 : index
    %8 = vector.load %arg7[%c0_6, %c0_7] : memref<128x32xf32, #tpu.memory_space<vmem>>, vector<128x32xf32>
    tpu.vector_store %arg7[%c0_6, %c0_7], %7 {strides = array<i32>} : memref<128x32xf32, #tpu.memory_space<vmem>>, vector<128x32xf32>,
    %c0_i32_8 = arith.constant 0 : i32
    %9 = arith.cmpi eq, %arg2, %c0_i32_8 : i32
    %10 = arith.extui %9 : i1 to i32
    %c0_i32_9 = arith.constant 0 : i32
    %11 = arith.cmpi ne, %10, %c0_i32_9 : i32
    scf.if %11 {
      %c0_10 = arith.constant 0 : index
      %c0_11 = arith.constant 0 : index
      %12 = vector.load %arg7[%c0_10, %c0_11] : memref<128x32xf32, #tpu.memory_space<vmem>>, vector<128x32xf32>
      %c0_12 = arith.constant 0 : index
      %c0_13 = arith.constant 0 : index
      %13 = vector.load %arg5[%c0_12, %c0_13] : memref<1x32xf32, #tpu.memory_space<vmem>>, vector<1x32xf32>
      %14 = vector.broadcast %13 : vector<1x32xf32> to vector<128x32xf32>
      %15 = arith.addf %12, %14 : vector<128x32xf32>
      %16 = arith.mulf %15, %15 : vector<128x32xf32>
      %17 = arith.mulf %15, %16 : vector<128x32xf32>
      %cst_14 = arith.constant 4.471500e-02 : f32
      %18 = vector.broadcast %cst_14 : f32 to vector<128x32xf32>
      %19 = arith.mulf %18, %17 : vector<128x32xf32>
      %20 = arith.addf %15, %19 : vector<128x32xf32>
      %cst_15 = arith.constant 0.797884583 : f32
      %21 = vector.broadcast %cst_15 : f32 to vector<128x32xf32>
      %22 = arith.mulf %21, %20 : vector<128x32xf32>
      %23 = math.tanh %22 : vector<128x32xf32>
      %cst_16 = arith.constant 1.000000e+00 : f32
      %24 = vector.broadcast %cst_16 : f32 to vector<128x32xf32>
      %25 = arith.addf %24, %23 : vector<128x32xf32>
      %cst_17 = arith.constant 5.000000e-01 : f32
      %26 = vector.broadcast %cst_17 : f32 to vector<128x32xf32>
      %27 = arith.mulf %26, %25 : vector<128x32xf32>
      %28 = arith.mulf %15, %27 : vector<128x32xf32>
      %29 = arith.truncf %28 : vector<128x32xf32> to vector<128x32xbf16>
      %c0_18 = arith.constant 0 : index
      %c0_19 = arith.constant 0 : index
      %30 = vector.load %arg6[%c0_18, %c0_19] : memref<128x32xbf16, #tpu.memory_space<vmem>>, vector<128x32xbf16>
      tpu.vector_store %arg6[%c0_18, %c0_19], %29 {strides = array<i32>} : memref<128x32xbf16, #tpu.memory_space<vmem>>, vector<128x32xbf16>,
    } else {
    }
    return
  }
  func.func @transform_0(%arg0: i32, %arg1: i32, %arg2: i32) -> (i32, i32) {
    %c0_i32 = arith.constant 0 : i32
    return %arg0, %arg2 : i32, i32
  }
  func.func @transform_1(%arg0: i32, %arg1: i32, %arg2: i32) -> (i32, i32) {
    %c0_i32 = arith.constant 0 : i32
    return %arg2, %arg1 : i32, i32
  }
  func.func @transform_2(%arg0: i32, %arg1: i32, %arg2: i32) -> (i32, i32) {
    %c0_i32 = arith.constant 0 : i32
    %c0_i32_0 = arith.constant 0 : i32
    return %c0_i32, %arg1 : i32, i32
  }
  func.func @transform_3(%arg0: i32, %arg1: i32, %arg2: i32) -> (i32, i32) {
    %c0_i32 = arith.constant 0 : i32
    return %arg0, %arg1 : i32, i32
  }
}

module attributes {stable_mosaic.version = 11 : i64} {
  func.func @_matmul_kernel(%arg0: i32, %arg1: i32, %arg2: i32, %arg3: memref<8x128xbf16, #tpu.memory_space<vmem>>, %arg4: memref<128x32xbf16, #tpu.memory_space<vmem>>, %arg5: memref<1x32xf32, #tpu.memory_space<vmem>>, %arg6: memref<8x32xbf16, #tpu.memory_space<vmem>>, %arg7: memref<8x32xf32, #tpu.memory_space<vmem>>) attributes {dimension_semantics = [#tpu.dimension_semantics<parallel>, #tpu.dimension_semantics<parallel>, #tpu.dimension_semantics<arbitrary>], iteration_bounds = array<i64: 1, 1, 1>, scalar_prefetch = 0 : i64, scratch_operands = 1 : i64, tpu.core_type = #tpu.core_type<tc>, window_params = [{transform_indices = @transform_0, window_bounds = array<i64: 8, 128>}, {transform_indices = @transform_1, window_bounds = array<i64: 128, 32>}, {transform_indices = @transform_2, window_bounds = array<i64: 1, 32>}, {transform_indices = @transform_3, window_bounds = array<i64: 8, 32>}]} {
    %c0_i32 = arith.constant 0 : i32
    %0 = arith.cmpi eq, %arg2, %c0_i32 : i32
    %1 = arith.extui %0 : i1 to i32
    %c0_i32_0 = arith.constant 0 : i32
    %2 = arith.cmpi ne, %1, %c0_i32_0 : i32
    scf.if %2 {
      %cst_10 = arith.constant 0.000000e+00 : f32
      %12 = vector.broadcast %cst_10 : f32 to vector<8x32xf32>
      %c0_11 = arith.constant 0 : index
      %c0_12 = arith.constant 0 : index
      %13 = vector.load %arg7[%c0_11, %c0_12] : memref<8x32xf32, #tpu.memory_space<vmem>>, vector<8x32xf32>
      tpu.vector_store %arg7[%c0_11, %c0_12], %12 {strides = array<i32>} : memref<8x32xf32, #tpu.memory_space<vmem>>, vector<8x32xf32>,
    } else {
    }
    %c0 = arith.constant 0 : index
    %c0_1 = arith.constant 0 : index
    %3 = vector.load %arg7[%c0, %c0_1] : memref<8x32xf32, #tpu.memory_space<vmem>>, vector<8x32xf32>
    %c0_2 = arith.constant 0 : index
    %c0_3 = arith.constant 0 : index
    %4 = vector.load %arg3[%c0_2, %c0_3] : memref<8x128xbf16, #tpu.memory_space<vmem>>, vector<8x128xbf16>
    %c0_4 = arith.constant 0 : index
    %c0_5 = arith.constant 0 : index
    %5 = vector.load %arg4[%c0_4, %c0_5] : memref<128x32xbf16, #tpu.memory_space<vmem>>, vector<128x32xbf16>
    %cst = arith.constant dense<0.000000e+00> : vector<8x32xf32>
    %6 = tpu.matmul %4, %5, %cst {dimension_numbers = #tpu.dot_dimension_numbers<[1], [0], [0], [1], [0, 0, 1, 1], [], []>} : vector<8x128xbf16>, vector<128x32xbf16>, vector<8x32xf32> -> vector<8x32xf32>
    %7 = arith.addf %3, %6 : vector<8x32xf32>
    %c0_6 = arith.constant 0 : index
    %c0_7 = arith.constant 0 : index
    %8 = vector.load %arg7[%c0_6, %c0_7] : memref<8x32xf32, #tpu.memory_space<vmem>>, vector<8x32xf32>
    tpu.vector_store %arg7[%c0_6, %c0_7], %7 {strides = array<i32>} : memref<8x32xf32, #tpu.memory_space<vmem>>, vector<8x32xf32>,
    %c0_i32_8 = arith.constant 0 : i32
    %9 = arith.cmpi eq, %arg2, %c0_i32_8 : i32
    %10 = arith.extui %9 : i1 to i32
    %c0_i32_9 = arith.constant 0 : i32
    %11 = arith.cmpi ne, %10, %c0_i32_9 : i32
    scf.if %11 {
      %c0_10 = arith.constant 0 : index
      %c0_11 = arith.constant 0 : index
      %12 = vector.load %arg7[%c0_10, %c0_11] : memref<8x32xf32, #tpu.memory_space<vmem>>, vector<8x32xf32>
      %c0_12 = arith.constant 0 : index
      %c0_13 = arith.constant 0 : index
      %13 = vector.load %arg5[%c0_12, %c0_13] : memref<1x32xf32, #tpu.memory_space<vmem>>, vector<1x32xf32>
      %14 = vector.broadcast %13 : vector<1x32xf32> to vector<8x32xf32>
      %15 = arith.addf %12, %14 : vector<8x32xf32>
      %16 = arith.mulf %15, %15 : vector<8x32xf32>
      %17 = arith.mulf %15, %16 : vector<8x32xf32>
      %cst_14 = arith.constant 4.471500e-02 : f32
      %18 = vector.broadcast %cst_14 : f32 to vector<8x32xf32>
      %19 = arith.mulf %18, %17 : vector<8x32xf32>
      %20 = arith.addf %15, %19 : vector<8x32xf32>
      %cst_15 = arith.constant 0.797884583 : f32
      %21 = vector.broadcast %cst_15 : f32 to vector<8x32xf32>
      %22 = arith.mulf %21, %20 : vector<8x32xf32>
      %23 = math.tanh %22 : vector<8x32xf32>
      %cst_16 = arith.constant 1.000000e+00 : f32
      %24 = vector.broadcast %cst_16 : f32 to vector<8x32xf32>
      %25 = arith.addf %24, %23 : vector<8x32xf32>
      %cst_17 = arith.constant 5.000000e-01 : f32
      %26 = vector.broadcast %cst_17 : f32 to vector<8x32xf32>
      %27 = arith.mulf %26, %25 : vector<8x32xf32>
      %28 = arith.mulf %15, %27 : vector<8x32xf32>
      %29 = arith.truncf %28 : vector<8x32xf32> to vector<8x32xbf16>
      %c0_18 = arith.constant 0 : index
      %c0_19 = arith.constant 0 : index
      %30 = vector.load %arg6[%c0_18, %c0_19] : memref<8x32xbf16, #tpu.memory_space<vmem>>, vector<8x32xbf16>
      tpu.vector_store %arg6[%c0_18, %c0_19], %29 {strides = array<i32>} : memref<8x32xbf16, #tpu.memory_space<vmem>>, vector<8x32xbf16>,
    } else {
    }
    return
  }
  func.func @transform_0(%arg0: i32, %arg1: i32, %arg2: i32) -> (i32, i32) {
    %c0_i32 = arith.constant 0 : i32
    return %arg0, %arg2 : i32, i32
  }
  func.func @transform_1(%arg0: i32, %arg1: i32, %arg2: i32) -> (i32, i32) {
    %c0_i32 = arith.constant 0 : i32
    return %arg2, %arg1 : i32, i32
  }
  func.func @transform_2(%arg0: i32, %arg1: i32, %arg2: i32) -> (i32, i32) {
    %c0_i32 = arith.constant 0 : i32
    %c0_i32_0 = arith.constant 0 : i32
    return %c0_i32, %arg1 : i32, i32
  }
  func.func @transform_3(%arg0: i32, %arg1: i32, %arg2: i32) -> (i32, i32) {
    %c0_i32 = arith.constant 0 : i32
    return %arg0, %arg1 : i32, i32
  }
}

module attributes {stable_mosaic.version = 11 : i64} {
  func.func @_matmul_kernel(%arg0: i32, %arg1: i32, %arg2: i32, %arg3: memref<32x128xbf16, #tpu.memory_space<vmem>>, %arg4: memref<128x32xbf16, #tpu.memory_space<vmem>>, %arg5: memref<1x32xf32, #tpu.memory_space<vmem>>, %arg6: memref<32x32xbf16, #tpu.memory_space<vmem>>, %arg7: memref<32x32xf32, #tpu.memory_space<vmem>>) attributes {dimension_semantics = [#tpu.dimension_semantics<parallel>, #tpu.dimension_semantics<parallel>, #tpu.dimension_semantics<arbitrary>], iteration_bounds = array<i64: 1, 1, 1>, scalar_prefetch = 0 : i64, scratch_operands = 1 : i64, tpu.core_type = #tpu.core_type<tc>, window_params = [{transform_indices = @transform_0, window_bounds = array<i64: 32, 128>}, {transform_indices = @transform_1, window_bounds = array<i64: 128, 32>}, {transform_indices = @transform_2, window_bounds = array<i64: 1, 32>}, {transform_indices = @transform_3, window_bounds = array<i64: 32, 32>}]} {
    %c0_i32 = arith.constant 0 : i32
    %0 = arith.cmpi eq, %arg2, %c0_i32 : i32
    %1 = arith.extui %0 : i1 to i32
    %c0_i32_0 = arith.constant 0 : i32
    %2 = arith.cmpi ne, %1, %c0_i32_0 : i32
    scf.if %2 {
      %cst_10 = arith.constant 0.000000e+00 : f32
      %12 = vector.broadcast %cst_10 : f32 to vector<32x32xf32>
      %c0_11 = arith.constant 0 : index
      %c0_12 = arith.constant 0 : index
      %13 = vector.load %arg7[%c0_11, %c0_12] : memref<32x32xf32, #tpu.memory_space<vmem>>, vector<32x32xf32>
      tpu.vector_store %arg7[%c0_11, %c0_12], %12 {strides = array<i32>} : memref<32x32xf32, #tpu.memory_space<vmem>>, vector<32x32xf32>,
    } else {
    }
    %c0 = arith.constant 0 : index
    %c0_1 = arith.constant 0 : index
    %3 = vector.load %arg7[%c0, %c0_1] : memref<32x32xf32, #tpu.memory_space<vmem>>, vector<32x32xf32>
    %c0_2 = arith.constant 0 : index
    %c0_3 = arith.constant 0 : index
    %4 = vector.load %arg3[%c0_2, %c0_3] : memref<32x128xbf16, #tpu.memory_space<vmem>>, vector<32x128xbf16>
    %c0_4 = arith.constant 0 : index
    %c0_5 = arith.constant 0 : index
    %5 = vector.load %arg4[%c0_4, %c0_5] : memref<128x32xbf16, #tpu.memory_space<vmem>>, vector<128x32xbf16>
    %cst = arith.constant dense<0.000000e+00> : vector<32x32xf32>
    %6 = tpu.matmul %4, %5, %cst {dimension_numbers = #tpu.dot_dimension_numbers<[1], [0], [0], [1], [0, 0, 1, 1], [], []>} : vector<32x128xbf16>, vector<128x32xbf16>, vector<32x32xf32> -> vector<32x32xf32>
    %7 = arith.addf %3, %6 : vector<32x32xf32>
    %c0_6 = arith.constant 0 : index
    %c0_7 = arith.constant 0 : index
    %8 = vector.load %arg7[%c0_6, %c0_7] : memref<32x32xf32, #tpu.memory_space<vmem>>, vector<32x32xf32>
    tpu.vector_store %arg7[%c0_6, %c0_7], %7 {strides = array<i32>} : memref<32x32xf32, #tpu.memory_space<vmem>>, vector<32x32xf32>,
    %c0_i32_8 = arith.constant 0 : i32
    %9 = arith.cmpi eq, %arg2, %c0_i32_8 : i32
    %10 = arith.extui %9 : i1 to i32
    %c0_i32_9 = arith.constant 0 : i32
    %11 = arith.cmpi ne, %10, %c0_i32_9 : i32
    scf.if %11 {
      %c0_10 = arith.constant 0 : index
      %c0_11 = arith.constant 0 : index
      %12 = vector.load %arg7[%c0_10, %c0_11] : memref<32x32xf32, #tpu.memory_space<vmem>>, vector<32x32xf32>
      %c0_12 = arith.constant 0 : index
      %c0_13 = arith.constant 0 : index
      %13 = vector.load %arg5[%c0_12, %c0_13] : memref<1x32xf32, #tpu.memory_space<vmem>>, vector<1x32xf32>
      %14 = vector.broadcast %13 : vector<1x32xf32> to vector<32x32xf32>
      %15 = arith.addf %12, %14 : vector<32x32xf32>
      %16 = arith.mulf %15, %15 : vector<32x32xf32>
      %17 = arith.mulf %15, %16 : vector<32x32xf32>
      %cst_14 = arith.constant 4.471500e-02 : f32
      %18 = vector.broadcast %cst_14 : f32 to vector<32x32xf32>
      %19 = arith.mulf %18, %17 : vector<32x32xf32>
      %20 = arith.addf %15, %19 : vector<32x32xf32>
      %cst_15 = arith.constant 0.797884583 : f32
      %21 = vector.broadcast %cst_15 : f32 to vector<32x32xf32>
      %22 = arith.mulf %21, %20 : vector<32x32xf32>
      %23 = math.tanh %22 : vector<32x32xf32>
      %cst_16 = arith.constant 1.000000e+00 : f32
      %24 = vector.broadcast %cst_16 : f32 to vector<32x32xf32>
      %25 = arith.addf %24, %23 : vector<32x32xf32>
      %cst_17 = arith.constant 5.000000e-01 : f32
      %26 = vector.broadcast %cst_17 : f32 to vector<32x32xf32>
      %27 = arith.mulf %26, %25 : vector<32x32xf32>
      %28 = arith.mulf %15, %27 : vector<32x32xf32>
      %29 = arith.truncf %28 : vector<32x32xf32> to vector<32x32xbf16>
      %c0_18 = arith.constant 0 : index
      %c0_19 = arith.constant 0 : index
      %30 = vector.load %arg6[%c0_18, %c0_19] : memref<32x32xbf16, #tpu.memory_space<vmem>>, vector<32x32xbf16>
      tpu.vector_store %arg6[%c0_18, %c0_19], %29 {strides = array<i32>} : memref<32x32xbf16, #tpu.memory_space<vmem>>, vector<32x32xbf16>,
    } else {
    }
    return
  }
  func.func @transform_0(%arg0: i32, %arg1: i32, %arg2: i32) -> (i32, i32) {
    %c0_i32 = arith.constant 0 : i32
    return %arg0, %arg2 : i32, i32
  }
  func.func @transform_1(%arg0: i32, %arg1: i32, %arg2: i32) -> (i32, i32) {
    %c0_i32 = arith.constant 0 : i32
    return %arg2, %arg1 : i32, i32
  }
  func.func @transform_2(%arg0: i32, %arg1: i32, %arg2: i32) -> (i32, i32) {
    %c0_i32 = arith.constant 0 : i32
    %c0_i32_0 = arith.constant 0 : i32
    return %c0_i32, %arg1 : i32, i32
  }
  func.func @transform_3(%arg0: i32, %arg1: i32, %arg2: i32) -> (i32, i32) {
    %c0_i32 = arith.constant 0 : i32
    return %arg0, %arg1 : i32, i32
  }
}

module attributes {stable_mosaic.version = 11 : i64} {
  func.func @_ln_qkv_kernel(%arg0: i32, %arg1: memref<16x32xbf16, #tpu.memory_space<vmem>>, %arg2: memref<1x32xf32, #tpu.memory_space<vmem>>, %arg3: memref<1x32xf32, #tpu.memory_space<vmem>>, %arg4: memref<32x32xbf16, #tpu.memory_space<vmem>>, %arg5: memref<1x32xf32, #tpu.memory_space<vmem>>, %arg6: memref<32x32xbf16, #tpu.memory_space<vmem>>, %arg7: memref<1x32xf32, #tpu.memory_space<vmem>>, %arg8: memref<32x32xbf16, #tpu.memory_space<vmem>>, %arg9: memref<1x32xf32, #tpu.memory_space<vmem>>, %arg10: memref<16x32xbf16, #tpu.memory_space<vmem>>, %arg11: memref<16x32xbf16, #tpu.memory_space<vmem>>, %arg12: memref<16x32xbf16, #tpu.memory_space<vmem>>) attributes {dimension_semantics = [#tpu.dimension_semantics<parallel>], iteration_bounds = array<i64: 1>, scalar_prefetch = 0 : i64, scratch_operands = 0 : i64, tpu.core_type = #tpu.core_type<tc>, window_params = [{transform_indices = @transform_0, window_bounds = array<i64: 16, 32>}, {pipeline_mode = #tpu.pipeline_mode<synchronous>, transform_indices = @transform_1, window_bounds = array<i64: 1, 32>}, {pipeline_mode = #tpu.pipeline_mode<synchronous>, transform_indices = @transform_2, window_bounds = array<i64: 1, 32>}, {pipeline_mode = #tpu.pipeline_mode<synchronous>, transform_indices = @transform_3, window_bounds = array<i64: 32, 32>}, {pipeline_mode = #tpu.pipeline_mode<synchronous>, transform_indices = @transform_4, window_bounds = array<i64: 1, 32>}, {pipeline_mode = #tpu.pipeline_mode<synchronous>, transform_indices = @transform_5, window_bounds = array<i64: 32, 32>}, {pipeline_mode = #tpu.pipeline_mode<synchronous>, transform_indices = @transform_6, window_bounds = array<i64: 1, 32>}, {pipeline_mode = #tpu.pipeline_mode<synchronous>, transform_indices = @transform_7, window_bounds = array<i64: 32, 32>}, {pipeline_mode = #tpu.pipeline_mode<synchronous>, transform_indices = @transform_8, window_bounds = array<i64: 1, 32>}, {transform_indices = @transform_9, window_bounds = array<i64: 16, 32>}, {transform_indices = @transform_10, window_bounds = array<i64: 16, 32>}, {transform_indices = @transform_11, window_bounds = array<i64: 16, 32>}]} {
    %c0 = arith.constant 0 : index
    %c0_0 = arith.constant 0 : index
    %0 = vector.load %arg1[%c0, %c0_0] : memref<16x32xbf16, #tpu.memory_space<vmem>>, vector<16x32xbf16>
    %1 = arith.extf %0 : vector<16x32xbf16> to vector<16x32xf32>
    %cst = arith.constant dense<0.000000e+00> : vector<16xf32>
    %2 = vector.multi_reduction <add>, %1, %cst [1] : vector<16x32xf32> to vector<16xf32>
    %3 = vector.shape_cast %2 : vector<16xf32> to vector<16x1xf32>
    %cst_1 = arith.constant 3.200000e+01 : f32
    %4 = vector.broadcast %cst_1 : f32 to vector<16x1xf32>
    %5 = arith.divf %3, %4 : vector<16x1xf32>
    %6 = vector.broadcast %5 : vector<16x1xf32> to vector<16x32xf32>
    %7 = arith.subf %1, %6 : vector<16x32xf32>
    %8 = arith.mulf %7, %7 : vector<16x32xf32>
    %cst_2 = arith.constant dense<0.000000e+00> : vector<16xf32>
    %9 = vector.multi_reduction <add>, %8, %cst_2 [1] : vector<16x32xf32> to vector<16xf32>
    %10 = vector.shape_cast %9 : vector<16xf32> to vector<16x1xf32>
    %cst_3 = arith.constant 3.200000e+01 : f32
    %11 = vector.broadcast %cst_3 : f32 to vector<16x1xf32>
    %12 = arith.divf %10, %11 : vector<16x1xf32>
    %13 = vector.broadcast %5 : vector<16x1xf32> to vector<16x32xf32>
    %14 = arith.subf %1, %13 : vector<16x32xf32>
    %cst_4 = arith.constant 9.99999974E-6 : f32
    %15 = vector.broadcast %cst_4 : f32 to vector<16x1xf32>
    %16 = arith.addf %12, %15 : vector<16x1xf32>
    %17 = math.rsqrt %16 : vector<16x1xf32>
    %18 = vector.broadcast %17 : vector<16x1xf32> to vector<16x32xf32>
    %19 = arith.mulf %14, %18 : vector<16x32xf32>
    %c0_5 = arith.constant 0 : index
    %c0_6 = arith.constant 0 : index
    %20 = vector.load %arg2[%c0_5, %c0_6] : memref<1x32xf32, #tpu.memory_space<vmem>>, vector<1x32xf32>
    %21 = vector.broadcast %20 : vector<1x32xf32> to vector<16x32xf32>
    %22 = arith.mulf %19, %21 : vector<16x32xf32>
    %c0_7 = arith.constant 0 : index
    %c0_8 = arith.constant 0 : index
    %23 = vector.load %arg3[%c0_7, %c0_8] : memref<1x32xf32, #tpu.memory_space<vmem>>, vector<1x32xf32>
    %24 = vector.broadcast %23 : vector<1x32xf32> to vector<16x32xf32>
    %25 = arith.addf %22, %24 : vector<16x32xf32>
    %26 = arith.truncf %25 : vector<16x32xf32> to vector<16x32xbf16>
    %c0_9 = arith.constant 0 : index
    %c0_10 = arith.constant 0 : index
    %27 = vector.load %arg4[%c0_9, %c0_10] : memref<32x32xbf16, #tpu.memory_space<vmem>>, vector<32x32xbf16>
    %cst_11 = arith.constant dense<0.000000e+00> : vector<16x32xf32>
    %28 = tpu.matmul %26, %27, %cst_11 {dimension_numbers = #tpu.dot_dimension_numbers<[1], [0], [0], [1], [0, 0, 1, 1], [], []>} : vector<16x32xbf16>, vector<32x32xbf16>, vector<16x32xf32> -> vector<16x32xf32>
    %c0_12 = arith.constant 0 : index
    %c0_13 = arith.constant 0 : index
    %29 = vector.load %arg5[%c0_12, %c0_13] : memref<1x32xf32, #tpu.memory_space<vmem>>, vector<1x32xf32>
    %30 = vector.broadcast %29 : vector<1x32xf32> to vector<16x32xf32>
    %31 = arith.addf %28, %30 : vector<16x32xf32>
    %c0_14 = arith.constant 0 : index
    %c0_15 = arith.constant 0 : index
    %32 = vector.load %arg6[%c0_14, %c0_15] : memref<32x32xbf16, #tpu.memory_space<vmem>>, vector<32x32xbf16>
    %cst_16 = arith.constant dense<0.000000e+00> : vector<16x32xf32>
    %33 = tpu.matmul %26, %32, %cst_16 {dimension_numbers = #tpu.dot_dimension_numbers<[1], [0], [0], [1], [0, 0, 1, 1], [], []>} : vector<16x32xbf16>, vector<32x32xbf16>, vector<16x32xf32> -> vector<16x32xf32>
    %c0_17 = arith.constant 0 : index
    %c0_18 = arith.constant 0 : index
    %34 = vector.load %arg7[%c0_17, %c0_18] : memref<1x32xf32, #tpu.memory_space<vmem>>, vector<1x32xf32>
    %35 = vector.broadcast %34 : vector<1x32xf32> to vector<16x32xf32>
    %36 = arith.addf %33, %35 : vector<16x32xf32>
    %c0_19 = arith.constant 0 : index
    %c0_20 = arith.constant 0 : index
    %37 = vector.load %arg8[%c0_19, %c0_20] : memref<32x32xbf16, #tpu.memory_space<vmem>>, vector<32x32xbf16>
    %cst_21 = arith.constant dense<0.000000e+00> : vector<16x32xf32>
    %38 = tpu.matmul %26, %37, %cst_21 {dimension_numbers = #tpu.dot_dimension_numbers<[1], [0], [0], [1], [0, 0, 1, 1], [], []>} : vector<16x32xbf16>, vector<32x32xbf16>, vector<16x32xf32> -> vector<16x32xf32>
    %c0_22 = arith.constant 0 : index
    %c0_23 = arith.constant 0 : index
    %39 = vector.load %arg9[%c0_22, %c0_23] : memref<1x32xf32, #tpu.memory_space<vmem>>, vector<1x32xf32>
    %40 = vector.broadcast %39 : vector<1x32xf32> to vector<16x32xf32>
    %41 = arith.addf %38, %40 : vector<16x32xf32>
    %42 = arith.truncf %31 : vector<16x32xf32> to vector<16x32xbf16>
    %c0_24 = arith.constant 0 : index
    %c0_25 = arith.constant 0 : index
    %43 = vector.load %arg10[%c0_24, %c0_25] : memref<16x32xbf16, #tpu.memory_space<vmem>>, vector<16x32xbf16>
    tpu.vector_store %arg10[%c0_24, %c0_25], %42 {strides = array<i32>} : memref<16x32xbf16, #tpu.memory_space<vmem>>, vector<16x32xbf16>,
    %44 = arith.truncf %36 : vector<16x32xf32> to vector<16x32xbf16>
    %c0_26 = arith.constant 0 : index
    %c0_27 = arith.constant 0 : index
    %45 = vector.load %arg11[%c0_26, %c0_27] : memref<16x32xbf16, #tpu.memory_space<vmem>>, vector<16x32xbf16>
    tpu.vector_store %arg11[%c0_26, %c0_27], %44 {strides = array<i32>} : memref<16x32xbf16, #tpu.memory_space<vmem>>, vector<16x32xbf16>,
    %46 = arith.truncf %41 : vector<16x32xf32> to vector<16x32xbf16>
    %c0_28 = arith.constant 0 : index
    %c0_29 = arith.constant 0 : index
    %47 = vector.load %arg12[%c0_28, %c0_29] : memref<16x32xbf16, #tpu.memory_space<vmem>>, vector<16x32xbf16>
    tpu.vector_store %arg12[%c0_28, %c0_29], %46 {strides = array<i32>} : memref<16x32xbf16, #tpu.memory_space<vmem>>, vector<16x32xbf16>,
    return
  }
  func.func @transform_0(%arg0: i32) -> (i32, i32) {
    %c0_i32 = arith.constant 0 : i32
    %c0_i32_0 = arith.constant 0 : i32
    return %arg0, %c0_i32 : i32, i32
  }
  func.func @transform_1(%arg0: i32) -> (i32, i32) {
    %c0_i32 = arith.constant 0 : i32
    %c0_i32_0 = arith.constant 0 : i32
    %c0_i32_1 = arith.constant 0 : i32
    return %c0_i32, %c0_i32_0 : i32, i32
  }
  func.func @transform_2(%arg0: i32) -> (i32, i32) {
    %c0_i32 = arith.constant 0 : i32
    %c0_i32_0 = arith.constant 0 : i32
    %c0_i32_1 = arith.constant 0 : i32
    return %c0_i32, %c0_i32_0 : i32, i32
  }
  func.func @transform_3(%arg0: i32) -> (i32, i32) {
    %c0_i32 = arith.constant 0 : i32
    %c0_i32_0 = arith.constant 0 : i32
    %c0_i32_1 = arith.constant 0 : i32
    return %c0_i32, %c0_i32_0 : i32, i32
  }
  func.func @transform_4(%arg0: i32) -> (i32, i32) {
    %c0_i32 = arith.constant 0 : i32
    %c0_i32_0 = arith.constant 0 : i32
    %c0_i32_1 = arith.constant 0 : i32
    return %c0_i32, %c0_i32_0 : i32, i32
  }
  func.func @transform_5(%arg0: i32) -> (i32, i32) {
    %c0_i32 = arith.constant 0 : i32
    %c0_i32_0 = arith.constant 0 : i32
    %c0_i32_1 = arith.constant 0 : i32
    return %c0_i32, %c0_i32_0 : i32, i32
  }
  func.func @transform_6(%arg0: i32) -> (i32, i32) {
    %c0_i32 = arith.constant 0 : i32
    %c0_i32_0 = arith.constant 0 : i32
    %c0_i32_1 = arith.constant 0 : i32
    return %c0_i32, %c0_i32_0 : i32, i32
  }
  func.func @transform_7(%arg0: i32) -> (i32, i32) {
    %c0_i32 = arith.constant 0 : i32
    %c0_i32_0 = arith.constant 0 : i32
    %c0_i32_1 = arith.constant 0 : i32
    return %c0_i32, %c0_i32_0 : i32, i32
  }
  func.func @transform_8(%arg0: i32) -> (i32, i32) {
    %c0_i32 = arith.constant 0 : i32
    %c0_i32_0 = arith.constant 0 : i32
    %c0_i32_1 = arith.constant 0 : i32
    return %c0_i32, %c0_i32_0 : i32, i32
  }
  func.func @transform_9(%arg0: i32) -> (i32, i32) {
    %c0_i32 = arith.constant 0 : i32
    %c0_i32_0 = arith.constant 0 : i32
    return %arg0, %c0_i32 : i32, i32
  }
  func.func @transform_10(%arg0: i32) -> (i32, i32) {
    %c0_i32 = arith.constant 0 : i32
    %c0_i32_0 = arith.constant 0 : i32
    return %arg0, %c0_i32 : i32, i32
  }
  func.func @transform_11(%arg0: i32) -> (i32, i32) {
    %c0_i32 = arith.constant 0 : i32
    %c0_i32_0 = arith.constant 0 : i32
    return %arg0, %c0_i32 : i32, i32
  }
}

module attributes {stable_mosaic.version = 11 : i64} {
  func.func @_flash_attn_kernel(%arg0: i32, %arg1: i32, %arg2: i32, %arg3: memref<1x8x32xbf16, #tpu.memory_space<vmem>>, %arg4: memref<1x4x8x8xbf16, #tpu.memory_space<vmem>>, %arg5: memref<1x4x8x8xbf16, #tpu.memory_space<vmem>>, %arg6: memref<1x4x8x8xbf16, #tpu.memory_space<vmem>>, %arg7: memref<4x8x32xbf16, #tpu.memory_space<vmem>>, %arg8: memref<1x32xf32, #tpu.memory_space<vmem>>, %arg9: memref<1x8x32xbf16, #tpu.memory_space<vmem>>, %arg10: memref<4x8x1xf32, #tpu.memory_space<vmem>>, %arg11: memref<4x8x1xf32, #tpu.memory_space<vmem>>, %arg12: memref<4x8x8xf32, #tpu.memory_space<vmem>>) attributes {dimension_semantics = [#tpu.dimension_semantics<parallel>, #tpu.dimension_semantics<parallel>, #tpu.dimension_semantics<arbitrary>], iteration_bounds = array<i64: 2, 1, 1>, scalar_prefetch = 0 : i64, scratch_operands = 3 : i64, tpu.core_type = #tpu.core_type<tc>, window_params = [{transform_indices = @transform_0, window_bounds = array<i64: 1, 8, 32>}, {transform_indices = @transform_1, window_bounds = array<i64: 1, 4, 8, 8>}, {transform_indices = @transform_2, window_bounds = array<i64: 1, 4, 8, 8>}, {transform_indices = @transform_3, window_bounds = array<i64: 1, 4, 8, 8>}, {pipeline_mode = #tpu.pipeline_mode<synchronous>, transform_indices = @transform_4, window_bounds = array<i64: 4, 8, 32>}, {pipeline_mode = #tpu.pipeline_mode<synchronous>, transform_indices = @transform_5, window_bounds = array<i64: 1, 32>}, {transform_indices = @transform_6, window_bounds = array<i64: 1, 8, 32>}]} {
    %c0_i32 = arith.constant 0 : i32
    %0 = arith.cmpi eq, %arg2, %c0_i32 : i32
    %1 = arith.extui %0 : i1 to i32
    %c0_i32_0 = arith.constant 0 : i32
    %2 = arith.cmpi ne, %1, %c0_i32_0 : i32
    scf.if %2 {
      %cst_36 = arith.constant -1.000000e+30 : f32
      %44 = vector.broadcast %cst_36 : f32 to vector<4x8x1xf32>
      %c0_37 = arith.constant 0 : index
      %c0_38 = arith.constant 0 : index
      %c0_39 = arith.constant 0 : index
      %45 = vector.load %arg10[%c0_37, %c0_38, %c0_39] : memref<4x8x1xf32, #tpu.memory_space<vmem>>, vector<4x8x1xf32>
      tpu.vector_store %arg10[%c0_37, %c0_38, %c0_39], %44 {strides = array<i32>} : memref<4x8x1xf32, #tpu.memory_space<vmem>>, vector<4x8x1xf32>,
      %cst_40 = arith.constant 0.000000e+00 : f32
      %46 = vector.broadcast %cst_40 : f32 to vector<4x8x1xf32>
      %c0_41 = arith.constant 0 : index
      %c0_42 = arith.constant 0 : index
      %c0_43 = arith.constant 0 : index
      %47 = vector.load %arg11[%c0_41, %c0_42, %c0_43] : memref<4x8x1xf32, #tpu.memory_space<vmem>>, vector<4x8x1xf32>
      tpu.vector_store %arg11[%c0_41, %c0_42, %c0_43], %46 {strides = array<i32>} : memref<4x8x1xf32, #tpu.memory_space<vmem>>, vector<4x8x1xf32>,
      %cst_44 = arith.constant 0.000000e+00 : f32
      %48 = vector.broadcast %cst_44 : f32 to vector<4x8x8xf32>
      %c0_45 = arith.constant 0 : index
      %c0_46 = arith.constant 0 : index
      %c0_47 = arith.constant 0 : index
      %49 = vector.load %arg12[%c0_45, %c0_46, %c0_47] : memref<4x8x8xf32, #tpu.memory_space<vmem>>, vector<4x8x8xf32>
      tpu.vector_store %arg12[%c0_45, %c0_46, %c0_47], %48 {strides = array<i32>} : memref<4x8x8xf32, #tpu.memory_space<vmem>>, vector<4x8x8xf32>,
    } else {
    }
    %c0 = arith.constant 0 : index
    %c0_1 = arith.constant 0 : index
    %c0_2 = arith.constant 0 : index
    %c0_3 = arith.constant 0 : index
    %3 = vector.load %arg4[%c0, %c0_1, %c0_2, %c0_3] : memref<1x4x8x8xbf16, #tpu.memory_space<vmem>>, vector<1x4x8x8xbf16>
    %4 = vector.shape_cast %3 : vector<1x4x8x8xbf16> to vector<4x8x8xbf16>
    %c0_4 = arith.constant 0 : index
    %c0_5 = arith.constant 0 : index
    %c0_6 = arith.constant 0 : index
    %c0_7 = arith.constant 0 : index
    %5 = vector.load %arg5[%c0_4, %c0_5, %c0_6, %c0_7] : memref<1x4x8x8xbf16, #tpu.memory_space<vmem>>, vector<1x4x8x8xbf16>
    %6 = vector.shape_cast %5 : vector<1x4x8x8xbf16> to vector<4x8x8xbf16>
    "tpu.trace_start"() <{level = 10 : i32, message = "hqd,hkd->hqk"}> : () -> ()
    %cst = arith.constant dense<0.000000e+00> : vector<4x8x8xf32>
    %7 = tpu.matmul %4, %6, %cst {dimension_numbers = #tpu.dot_dimension_numbers<[2], [2], [1], [1], [0, 0, 0, 1, 1, 1], [0], [0]>} : vector<4x8x8xbf16>, vector<4x8x8xbf16>, vector<4x8x8xf32> -> vector<4x8x8xf32>
    "tpu.trace_stop"() : () -> ()
    %c8_i32 = arith.constant 8 : i32
    %8 = arith.muli %arg2, %c8_i32 : i32
    %9 = tpu.iota {dimensions = array<i32: 2>} : vector<4x8x8xi32>
    %10 = vector.broadcast %8 : i32 to vector<4x8x8xi32>
    %11 = arith.addi %10, %9 : vector<4x8x8xi32>
    %c5_i32 = arith.constant 5 : i32
    %12 = vector.broadcast %c5_i32 : i32 to vector<4x8x8xi32>
    %13 = arith.cmpi slt, %11, %12 : vector<4x8x8xi32>
    %cst_8 = arith.constant -1.000000e+30 : f32
    %14 = vector.broadcast %cst_8 : f32 to vector<4x8x8xf32>
    %15 = arith.select %13, %7, %14 : vector<4x8x8xi1>, vector<4x8x8xf32>
    %c0_9 = arith.constant 0 : index
    %c0_10 = arith.constant 0 : index
    %c0_11 = arith.constant 0 : index
    %16 = vector.load %arg10[%c0_9, %c0_10, %c0_11] : memref<4x8x1xf32, #tpu.memory_space<vmem>>, vector<4x8x1xf32>
    %cst_12 = arith.constant dense<0xFF800000> : vector<4x8xf32>
    %17 = vector.multi_reduction <maximumf>, %15, %cst_12 [2] : vector<4x8x8xf32> to vector<4x8xf32>
    %18 = vector.shape_cast %17 : vector<4x8xf32> to vector<4x8x1xf32>
    %19 = arith.maximumf %16, %18 : vector<4x8x1xf32>
    %20 = arith.subf %16, %19 : vector<4x8x1xf32>
    %21 = math.exp %20 : vector<4x8x1xf32>
    %22 = vector.broadcast %19 : vector<4x8x1xf32> to vector<4x8x8xf32>
    %23 = arith.subf %15, %22 : vector<4x8x8xf32>
    %24 = math.exp %23 : vector<4x8x8xf32>
    %c0_13 = arith.constant 0 : index
    %c0_14 = arith.constant 0 : index
    %c0_15 = arith.constant 0 : index
    %25 = vector.load %arg11[%c0_13, %c0_14, %c0_15] : memref<4x8x1xf32, #tpu.memory_space<vmem>>, vector<4x8x1xf32>
    %26 = arith.mulf %21, %25 : vector<4x8x1xf32>
    %cst_16 = arith.constant dense<0.000000e+00> : vector<4x8xf32>
    %27 = vector.multi_reduction <add>, %24, %cst_16 [2] : vector<4x8x8xf32> to vector<4x8xf32>
    %28 = vector.shape_cast %27 : vector<4x8xf32> to vector<4x8x1xf32>
    %29 = arith.addf %26, %28 : vector<4x8x1xf32>
    %c0_17 = arith.constant 0 : index
    %c0_18 = arith.constant 0 : index
    %c0_19 = arith.constant 0 : index
    %30 = vector.load %arg11[%c0_17, %c0_18, %c0_19] : memref<4x8x1xf32, #tpu.memory_space<vmem>>, vector<4x8x1xf32>
    tpu.vector_store %arg11[%c0_17, %c0_18, %c0_19], %29 {strides = array<i32>} : memref<4x8x1xf32, #tpu.memory_space<vmem>>, vector<4x8x1xf32>,
    %c0_20 = arith.constant 0 : index
    %c0_21 = arith.constant 0 : index
    %c0_22 = arith.constant 0 : index
    %31 = vector.load %arg12[%c0_20, %c0_21, %c0_22] : memref<4x8x8xf32, #tpu.memory_space<vmem>>, vector<4x8x8xf32>
    %32 = vector.broadcast %21 : vector<4x8x1xf32> to vector<4x8x8xf32>
    %33 = arith.mulf %32, %31 : vector<4x8x8xf32>
    %34 = arith.truncf %24 : vector<4x8x8xf32> to vector<4x8x8xbf16>
    %c0_23 = arith.constant 0 : index
    %c0_24 = arith.constant 0 : index
    %c0_25 = arith.constant 0 : index
    %c0_26 = arith.constant 0 : index
    %35 = vector.load %arg6[%c0_23, %c0_24, %c0_25, %c0_26] : memref<1x4x8x8xbf16, #tpu.memory_space<vmem>>, vector<1x4x8x8xbf16>
    %36 = vector.shape_cast %35 : vector<1x4x8x8xbf16> to vector<4x8x8xbf16>
    "tpu.trace_start"() <{level = 10 : i32, message = "hqk,hkd->hqd"}> : () -> ()
    %cst_27 = arith.constant dense<0.000000e+00> : vector<4x8x8xf32>
    %37 = tpu.matmul %34, %36, %cst_27 {dimension_numbers = #tpu.dot_dimension_numbers<[2], [1], [1], [2], [0, 0, 0, 1, 1, 2], [0], [0]>} : vector<4x8x8xbf16>, vector<4x8x8xbf16>, vector<4x8x8xf32> -> vector<4x8x8xf32>
    "tpu.trace_stop"() : () -> ()
    %38 = arith.addf %33, %37 : vector<4x8x8xf32>
    %c0_28 = arith.constant 0 : index
    %c0_29 = arith.constant 0 : index
    %c0_30 = arith.constant 0 : index
    %39 = vector.load %arg12[%c0_28, %c0_29, %c0_30] : memref<4x8x8xf32, #tpu.memory_space<vmem>>, vector<4x8x8xf32>
    tpu.vector_store %arg12[%c0_28, %c0_29, %c0_30], %38 {strides = array<i32>} : memref<4x8x8xf32, #tpu.memory_space<vmem>>, vector<4x8x8xf32>,
    %c0_31 = arith.constant 0 : index
    %c0_32 = arith.constant 0 : index
    %c0_33 = arith.constant 0 : index
    %40 = vector.load %arg10[%c0_31, %c0_32, %c0_33] : memref<4x8x1xf32, #tpu.memory_space<vmem>>, vector<4x8x1xf32>
    tpu.vector_store %arg10[%c0_31, %c0_32, %c0_33], %19 {strides = array<i32>} : memref<4x8x1xf32, #tpu.memory_space<vmem>>, vector<4x8x1xf32>,
    %c0_i32_34 = arith.constant 0 : i32
    %41 = arith.cmpi eq, %arg2, %c0_i32_34 : i32
    %42 = arith.extui %41 : i1 to i32
    %c0_i32_35 = arith.constant 0 : i32
    %43 = arith.cmpi ne, %42, %c0_i32_35 : i32
    scf.if %43 {
      %c0_36 = arith.constant 0 : index
      %c0_37 = arith.constant 0 : index
      %c0_38 = arith.constant 0 : index
      %44 = vector.load %arg12[%c0_36, %c0_37, %c0_38] : memref<4x8x8xf32, #tpu.memory_space<vmem>>, vector<4x8x8xf32>
      %c0_39 = arith.constant 0 : index
      %c0_40 = arith.constant 0 : index
      %c0_41 = arith.constant 0 : index
      %45 = vector.load %arg11[%c0_39, %c0_40, %c0_41] : memref<4x8x1xf32, #tpu.memory_space<vmem>>, vector<4x8x1xf32>
      %46 = tpu.reciprocal %45 {approx = true} : vector<4x8x1xf32> -> vector<4x8x1xf32>
      %47 = vector.broadcast %46 : vector<4x8x1xf32> to vector<4x8x8xf32>
      %48 = arith.mulf %44, %47 : vector<4x8x8xf32>
      %c0_42 = arith.constant 0 : index
      %c0_43 = arith.constant 0 : index
      %49 = vector.load %arg8[%c0_42, %c0_43] : memref<1x32xf32, #tpu.memory_space<vmem>>, vector<1x32xf32>
      %50 = vector.extract_strided_slice %48 {offsets = [0, 0, 0], sizes = [1, 8, 8], strides = [1, 1, 1]} : vector<4x8x8xf32> to vector<1x8x8xf32>
      %51 = vector.shape_cast %50 : vector<1x8x8xf32> to vector<8x8xf32>
      %52 = arith.truncf %51 : vector<8x8xf32> to vector<8x8xbf16>
      %c0_44 = arith.constant 0 : index
      %c0_45 = arith.constant 0 : index
      %c0_46 = arith.constant 0 : index
      %53 = vector.load %arg7[%c0_44, %c0_45, %c0_46] : memref<4x8x32xbf16, #tpu.memory_space<vmem>>, vector<1x8x32xbf16>
      %54 = vector.shape_cast %53 : vector<1x8x32xbf16> to vector<8x32xbf16>
      %cst_47 = arith.constant dense<0.000000e+00> : vector<8x32xf32>
      %55 = tpu.matmul %52, %54, %cst_47 {dimension_numbers = #tpu.dot_dimension_numbers<[1], [0], [0], [1], [0, 0, 1, 1], [], []>} : vector<8x8xbf16>, vector<8x32xbf16>, vector<8x32xf32> -> vector<8x32xf32>
      %56 = vector.broadcast %49 : vector<1x32xf32> to vector<8x32xf32>
      %57 = arith.addf %56, %55 : vector<8x32xf32>
      %58 = vector.extract_strided_slice %48 {offsets = [1, 0, 0], sizes = [1, 8, 8], strides = [1, 1, 1]} : vector<4x8x8xf32> to vector<1x8x8xf32>
      %59 = vector.shape_cast %58 : vector<1x8x8xf32> to vector<8x8xf32>
      %60 = arith.truncf %59 : vector<8x8xf32> to vector<8x8xbf16>
      %c1 = arith.constant 1 : index
      %c0_48 = arith.constant 0 : index
      %c0_49 = arith.constant 0 : index
      %61 = vector.load %arg7[%c1, %c0_48, %c0_49] : memref<4x8x32xbf16, #tpu.memory_space<vmem>>, vector<1x8x32xbf16>
      %62 = vector.shape_cast %61 : vector<1x8x32xbf16> to vector<8x32xbf16>
      %cst_50 = arith.constant dense<0.000000e+00> : vector<8x32xf32>
      %63 = tpu.matmul %60, %62, %cst_50 {dimension_numbers = #tpu.dot_dimension_numbers<[1], [0], [0], [1], [0, 0, 1, 1], [], []>} : vector<8x8xbf16>, vector<8x32xbf16>, vector<8x32xf32> -> vector<8x32xf32>
      %64 = arith.addf %57, %63 : vector<8x32xf32>
      %65 = vector.extract_strided_slice %48 {offsets = [2, 0, 0], sizes = [1, 8, 8], strides = [1, 1, 1]} : vector<4x8x8xf32> to vector<1x8x8xf32>
      %66 = vector.shape_cast %65 : vector<1x8x8xf32> to vector<8x8xf32>
      %67 = arith.truncf %66 : vector<8x8xf32> to vector<8x8xbf16>
      %c2 = arith.constant 2 : index
      %c0_51 = arith.constant 0 : index
      %c0_52 = arith.constant 0 : index
      %68 = vector.load %arg7[%c2, %c0_51, %c0_52] : memref<4x8x32xbf16, #tpu.memory_space<vmem>>, vector<1x8x32xbf16>
      %69 = vector.shape_cast %68 : vector<1x8x32xbf16> to vector<8x32xbf16>
      %cst_53 = arith.constant dense<0.000000e+00> : vector<8x32xf32>
      %70 = tpu.matmul %67, %69, %cst_53 {dimension_numbers = #tpu.dot_dimension_numbers<[1], [0], [0], [1], [0, 0, 1, 1], [], []>} : vector<8x8xbf16>, vector<8x32xbf16>, vector<8x32xf32> -> vector<8x32xf32>
      %71 = arith.addf %64, %70 : vector<8x32xf32>
      %72 = vector.extract_strided_slice %48 {offsets = [3, 0, 0], sizes = [1, 8, 8], strides = [1, 1, 1]} : vector<4x8x8xf32> to vector<1x8x8xf32>
      %73 = vector.shape_cast %72 : vector<1x8x8xf32> to vector<8x8xf32>
      %74 = arith.truncf %73 : vector<8x8xf32> to vector<8x8xbf16>
      %c3 = arith.constant 3 : index
      %c0_54 = arith.constant 0 : index
      %c0_55 = arith.constant 0 : index
      %75 = vector.load %arg7[%c3, %c0_54, %c0_55] : memref<4x8x32xbf16, #tpu.memory_space<vmem>>, vector<1x8x32xbf16>
      %76 = vector.shape_cast %75 : vector<1x8x32xbf16> to vector<8x32xbf16>
      %cst_56 = arith.constant dense<0.000000e+00> : vector<8x32xf32>
      %77 = tpu.matmul %74, %76, %cst_56 {dimension_numbers = #tpu.dot_dimension_numbers<[1], [0], [0], [1], [0, 0, 1, 1], [], []>} : vector<8x8xbf16>, vector<8x32xbf16>, vector<8x32xf32> -> vector<8x32xf32>
      %78 = arith.addf %71, %77 : vector<8x32xf32>
      %c0_57 = arith.constant 0 : index
      %c0_58 = arith.constant 0 : index
      %c0_59 = arith.constant 0 : index
      %79 = vector.load %arg3[%c0_57, %c0_58, %c0_59] : memref<1x8x32xbf16, #tpu.memory_space<vmem>>, vector<1x8x32xbf16>
      %80 = vector.shape_cast %79 : vector<1x8x32xbf16> to vector<8x32xbf16>
      %81 = arith.extf %80 : vector<8x32xbf16> to vector<8x32xf32>
      %82 = arith.addf %81, %78 : vector<8x32xf32>
      %83 = arith.truncf %82 : vector<8x32xf32> to vector<8x32xbf16>
      %c0_60 = arith.constant 0 : index
      %c0_61 = arith.constant 0 : index
      %c0_62 = arith.constant 0 : index
      %84 = vector.load %arg9[%c0_60, %c0_61, %c0_62] : memref<1x8x32xbf16, #tpu.memory_space<vmem>>, vector<1x8x32xbf16>
      %85 = vector.shape_cast %84 : vector<1x8x32xbf16> to vector<8x32xbf16>
      %86 = vector.shape_cast %83 : vector<8x32xbf16> to vector<1x8x32xbf16>
      tpu.vector_store %arg9[%c0_60, %c0_61, %c0_62], %86 {strides = array<i32>} : memref<1x8x32xbf16, #tpu.memory_space<vmem>>, vector<1x8x32xbf16>,
    } else {
    }
    return
  }
  func.func @transform_0(%arg0: i32, %arg1: i32, %arg2: i32) -> (i32, i32, i32) {
    %c0_i32 = arith.constant 0 : i32
    %c0_i32_0 = arith.constant 0 : i32
    return %arg0, %arg1, %c0_i32 : i32, i32, i32
  }
  func.func @transform_1(%arg0: i32, %arg1: i32, %arg2: i32) -> (i32, i32, i32, i32) {
    %c0_i32 = arith.constant 0 : i32
    %c0_i32_0 = arith.constant 0 : i32
    %c0_i32_1 = arith.constant 0 : i32
    return %arg0, %c0_i32, %arg1, %c0_i32_0 : i32, i32, i32, i32
  }
  func.func @transform_2(%arg0: i32, %arg1: i32, %arg2: i32) -> (i32, i32, i32, i32) {
    %c0_i32 = arith.constant 0 : i32
    %c0_i32_0 = arith.constant 0 : i32
    %c0_i32_1 = arith.constant 0 : i32
    return %arg0, %c0_i32, %arg2, %c0_i32_0 : i32, i32, i32, i32
  }
  func.func @transform_3(%arg0: i32, %arg1: i32, %arg2: i32) -> (i32, i32, i32, i32) {
    %c0_i32 = arith.constant 0 : i32
    %c0_i32_0 = arith.constant 0 : i32
    %c0_i32_1 = arith.constant 0 : i32
    return %arg0, %c0_i32, %arg2, %c0_i32_0 : i32, i32, i32, i32
  }
  func.func @transform_4(%arg0: i32, %arg1: i32, %arg2: i32) -> (i32, i32, i32) {
    %c0_i32 = arith.constant 0 : i32
    %c0_i32_0 = arith.constant 0 : i32
    %c0_i32_1 = arith.constant 0 : i32
    %c0_i32_2 = arith.constant 0 : i32
    return %c0_i32, %c0_i32_0, %c0_i32_1 : i32, i32, i32
  }
  func.func @transform_5(%arg0: i32, %arg1: i32, %arg2: i32) -> (i32, i32) {
    %c0_i32 = arith.constant 0 : i32
    %c0_i32_0 = arith.constant 0 : i32
    %c0_i32_1 = arith.constant 0 : i32
    return %c0_i32, %c0_i32_0 : i32, i32
  }
  func.func @transform_6(%arg0: i32, %arg1: i32, %arg2: i32) -> (i32, i32, i32) {
    %c0_i32 = arith.constant 0 : i32
    %c0_i32_0 = arith.constant 0 : i32
    return %arg0, %arg1, %c0_i32 : i32, i32, i32
  }
}

module attributes {stable_mosaic.version = 11 : i64} {
  func.func @_ln_mlp_kernel(%arg0: i32, %arg1: memref<16x32xbf16, #tpu.memory_space<vmem>>, %arg2: memref<1x32xf32, #tpu.memory_space<vmem>>, %arg3: memref<1x32xf32, #tpu.memory_space<vmem>>, %arg4: memref<32x128xbf16, #tpu.memory_space<vmem>>, %arg5: memref<1x128xf32, #tpu.memory_space<vmem>>, %arg6: memref<128x32xbf16, #tpu.memory_space<vmem>>, %arg7: memref<1x32xf32, #tpu.memory_space<vmem>>, %arg8: memref<16x32xbf16, #tpu.memory_space<vmem>>) attributes {dimension_semantics = [#tpu.dimension_semantics<parallel>], iteration_bounds = array<i64: 1>, scalar_prefetch = 0 : i64, scratch_operands = 0 : i64, tpu.core_type = #tpu.core_type<tc>, window_params = [{transform_indices = @transform_0, window_bounds = array<i64: 16, 32>}, {pipeline_mode = #tpu.pipeline_mode<synchronous>, transform_indices = @transform_1, window_bounds = array<i64: 1, 32>}, {pipeline_mode = #tpu.pipeline_mode<synchronous>, transform_indices = @transform_2, window_bounds = array<i64: 1, 32>}, {pipeline_mode = #tpu.pipeline_mode<synchronous>, transform_indices = @transform_3, window_bounds = array<i64: 32, 128>}, {pipeline_mode = #tpu.pipeline_mode<synchronous>, transform_indices = @transform_4, window_bounds = array<i64: 1, 128>}, {pipeline_mode = #tpu.pipeline_mode<synchronous>, transform_indices = @transform_5, window_bounds = array<i64: 128, 32>}, {pipeline_mode = #tpu.pipeline_mode<synchronous>, transform_indices = @transform_6, window_bounds = array<i64: 1, 32>}, {transform_indices = @transform_7, window_bounds = array<i64: 16, 32>}]} {
    %c0 = arith.constant 0 : index
    %c0_0 = arith.constant 0 : index
    %0 = vector.load %arg1[%c0, %c0_0] : memref<16x32xbf16, #tpu.memory_space<vmem>>, vector<16x32xbf16>
    %1 = arith.extf %0 : vector<16x32xbf16> to vector<16x32xf32>
    %cst = arith.constant dense<0.000000e+00> : vector<16xf32>
    %2 = vector.multi_reduction <add>, %1, %cst [1] : vector<16x32xf32> to vector<16xf32>
    %3 = vector.shape_cast %2 : vector<16xf32> to vector<16x1xf32>
    %cst_1 = arith.constant 3.200000e+01 : f32
    %4 = vector.broadcast %cst_1 : f32 to vector<16x1xf32>
    %5 = arith.divf %3, %4 : vector<16x1xf32>
    %6 = vector.broadcast %5 : vector<16x1xf32> to vector<16x32xf32>
    %7 = arith.subf %1, %6 : vector<16x32xf32>
    %8 = arith.mulf %7, %7 : vector<16x32xf32>
    %cst_2 = arith.constant dense<0.000000e+00> : vector<16xf32>
    %9 = vector.multi_reduction <add>, %8, %cst_2 [1] : vector<16x32xf32> to vector<16xf32>
    %10 = vector.shape_cast %9 : vector<16xf32> to vector<16x1xf32>
    %cst_3 = arith.constant 3.200000e+01 : f32
    %11 = vector.broadcast %cst_3 : f32 to vector<16x1xf32>
    %12 = arith.divf %10, %11 : vector<16x1xf32>
    %13 = vector.broadcast %5 : vector<16x1xf32> to vector<16x32xf32>
    %14 = arith.subf %1, %13 : vector<16x32xf32>
    %cst_4 = arith.constant 9.99999974E-6 : f32
    %15 = vector.broadcast %cst_4 : f32 to vector<16x1xf32>
    %16 = arith.addf %12, %15 : vector<16x1xf32>
    %17 = math.rsqrt %16 : vector<16x1xf32>
    %18 = vector.broadcast %17 : vector<16x1xf32> to vector<16x32xf32>
    %19 = arith.mulf %14, %18 : vector<16x32xf32>
    %c0_5 = arith.constant 0 : index
    %c0_6 = arith.constant 0 : index
    %20 = vector.load %arg2[%c0_5, %c0_6] : memref<1x32xf32, #tpu.memory_space<vmem>>, vector<1x32xf32>
    %21 = vector.broadcast %20 : vector<1x32xf32> to vector<16x32xf32>
    %22 = arith.mulf %19, %21 : vector<16x32xf32>
    %c0_7 = arith.constant 0 : index
    %c0_8 = arith.constant 0 : index
    %23 = vector.load %arg3[%c0_7, %c0_8] : memref<1x32xf32, #tpu.memory_space<vmem>>, vector<1x32xf32>
    %24 = vector.broadcast %23 : vector<1x32xf32> to vector<16x32xf32>
    %25 = arith.addf %22, %24 : vector<16x32xf32>
    %26 = arith.truncf %25 : vector<16x32xf32> to vector<16x32xbf16>
    %c0_9 = arith.constant 0 : index
    %c0_10 = arith.constant 0 : index
    %27 = vector.load %arg4[%c0_9, %c0_10] : memref<32x128xbf16, #tpu.memory_space<vmem>>, vector<32x128xbf16>
    %cst_11 = arith.constant dense<0.000000e+00> : vector<16x128xf32>
    %28 = tpu.matmul %26, %27, %cst_11 {dimension_numbers = #tpu.dot_dimension_numbers<[1], [0], [0], [1], [0, 0, 1, 1], [], []>} : vector<16x32xbf16>, vector<32x128xbf16>, vector<16x128xf32> -> vector<16x128xf32>
    %c0_12 = arith.constant 0 : index
    %c0_13 = arith.constant 0 : index
    %29 = vector.load %arg5[%c0_12, %c0_13] : memref<1x128xf32, #tpu.memory_space<vmem>>, vector<1x128xf32>
    %30 = vector.broadcast %29 : vector<1x128xf32> to vector<16x128xf32>
    %31 = arith.addf %28, %30 : vector<16x128xf32>
    %32 = arith.mulf %31, %31 : vector<16x128xf32>
    %33 = arith.mulf %31, %32 : vector<16x128xf32>
    %cst_14 = arith.constant 4.471500e-02 : f32
    %34 = vector.broadcast %cst_14 : f32 to vector<16x128xf32>
    %35 = arith.mulf %34, %33 : vector<16x128xf32>
    %36 = arith.addf %31, %35 : vector<16x128xf32>
    %cst_15 = arith.constant 0.797884583 : f32
    %37 = vector.broadcast %cst_15 : f32 to vector<16x128xf32>
    %38 = arith.mulf %37, %36 : vector<16x128xf32>
    %39 = math.tanh %38 : vector<16x128xf32>
    %cst_16 = arith.constant 1.000000e+00 : f32
    %40 = vector.broadcast %cst_16 : f32 to vector<16x128xf32>
    %41 = arith.addf %40, %39 : vector<16x128xf32>
    %cst_17 = arith.constant 5.000000e-01 : f32
    %42 = vector.broadcast %cst_17 : f32 to vector<16x128xf32>
    %43 = arith.mulf %42, %41 : vector<16x128xf32>
    %44 = arith.mulf %31, %43 : vector<16x128xf32>
    %45 = arith.truncf %44 : vector<16x128xf32> to vector<16x128xbf16>
    %c0_18 = arith.constant 0 : index
    %c0_19 = arith.constant 0 : index
    %46 = vector.load %arg6[%c0_18, %c0_19] : memref<128x32xbf16, #tpu.memory_space<vmem>>, vector<128x32xbf16>
    %cst_20 = arith.constant dense<0.000000e+00> : vector<16x32xf32>
    %47 = tpu.matmul %45, %46, %cst_20 {dimension_numbers = #tpu.dot_dimension_numbers<[1], [0], [0], [1], [0, 0, 1, 1], [], []>} : vector<16x128xbf16>, vector<128x32xbf16>, vector<16x32xf32> -> vector<16x32xf32>
    %c0_21 = arith.constant 0 : index
    %c0_22 = arith.constant 0 : index
    %48 = vector.load %arg7[%c0_21, %c0_22] : memref<1x32xf32, #tpu.memory_space<vmem>>, vector<1x32xf32>
    %49 = vector.broadcast %48 : vector<1x32xf32> to vector<16x32xf32>
    %50 = arith.addf %47, %49 : vector<16x32xf32>
    %51 = arith.addf %1, %50 : vector<16x32xf32>
    %52 = arith.truncf %51 : vector<16x32xf32> to vector<16x32xbf16>
    %c0_23 = arith.constant 0 : index
    %c0_24 = arith.constant 0 : index
    %53 = vector.load %arg8[%c0_23, %c0_24] : memref<16x32xbf16, #tpu.memory_space<vmem>>, vector<16x32xbf16>
    tpu.vector_store %arg8[%c0_23, %c0_24], %52 {strides = array<i32>} : memref<16x32xbf16, #tpu.memory_space<vmem>>, vector<16x32xbf16>,
    return
  }
  func.func @transform_0(%arg0: i32) -> (i32, i32) {
    %c0_i32 = arith.constant 0 : i32
    %c0_i32_0 = arith.constant 0 : i32
    return %arg0, %c0_i32 : i32, i32
  }
  func.func @transform_1(%arg0: i32) -> (i32, i32) {
    %c0_i32 = arith.constant 0 : i32
    %c0_i32_0 = arith.constant 0 : i32
    %c0_i32_1 = arith.constant 0 : i32
    return %c0_i32, %c0_i32_0 : i32, i32
  }
  func.func @transform_2(%arg0: i32) -> (i32, i32) {
    %c0_i32 = arith.constant 0 : i32
    %c0_i32_0 = arith.constant 0 : i32
    %c0_i32_1 = arith.constant 0 : i32
    return %c0_i32, %c0_i32_0 : i32, i32
  }
  func.func @transform_3(%arg0: i32) -> (i32, i32) {
    %c0_i32 = arith.constant 0 : i32
    %c0_i32_0 = arith.constant 0 : i32
    %c0_i32_1 = arith.constant 0 : i32
    return %c0_i32, %c0_i32_0 : i32, i32
  }
  func.func @transform_4(%arg0: i32) -> (i32, i32) {
    %c0_i32 = arith.constant 0 : i32
    %c0_i32_0 = arith.constant 0 : i32
    %c0_i32_1 = arith.constant 0 : i32
    return %c0_i32, %c0_i32_0 : i32, i32
  }
  func.func @transform_5(%arg0: i32) -> (i32, i32) {
    %c0_i32 = arith.constant 0 : i32
    %c0_i32_0 = arith.constant 0 : i32
    %c0_i32_1 = arith.constant 0 : i32
    return %c0_i32, %c0_i32_0 : i32, i32
  }
  func.func @transform_6(%arg0: i32) -> (i32, i32) {
    %c0_i32 = arith.constant 0 : i32
    %c0_i32_0 = arith.constant 0 : i32
    %c0_i32_1 = arith.constant 0 : i32
    return %c0_i32, %c0_i32_0 : i32, i32
  }
  func.func @transform_7(%arg0: i32) -> (i32, i32) {
    %c0_i32 = arith.constant 0 : i32
    %c0_i32_0 = arith.constant 0 : i32
    return %arg0, %c0_i32 : i32, i32
  }
}

module attributes {stable_mosaic.version = 11 : i64} {
  func.func @_head_kernel(%arg0: i32, %arg1: memref<2x32xbf16, #tpu.memory_space<vmem>>, %arg2: memref<32x128xbf16, #tpu.memory_space<vmem>>, %arg3: memref<1x128xf32, #tpu.memory_space<vmem>>, %arg4: memref<128x128xbf16, #tpu.memory_space<vmem>>, %arg5: memref<1x128xf32, #tpu.memory_space<vmem>>, %arg6: memref<128x128xbf16, #tpu.memory_space<vmem>>, %arg7: memref<1x128xf32, #tpu.memory_space<vmem>>, %arg8: memref<2x128xf32, #tpu.memory_space<vmem>>) attributes {dimension_semantics = [#tpu.dimension_semantics<arbitrary>], iteration_bounds = array<i64: 1>, scalar_prefetch = 0 : i64, scratch_operands = 0 : i64, tpu.core_type = #tpu.core_type<tc>, window_params = [{pipeline_mode = #tpu.pipeline_mode<synchronous>, transform_indices = @transform_0, window_bounds = array<i64: 2, 32>}, {pipeline_mode = #tpu.pipeline_mode<synchronous>, transform_indices = @transform_1, window_bounds = array<i64: 32, 128>}, {pipeline_mode = #tpu.pipeline_mode<synchronous>, transform_indices = @transform_2, window_bounds = array<i64: 1, 128>}, {pipeline_mode = #tpu.pipeline_mode<synchronous>, transform_indices = @transform_3, window_bounds = array<i64: 128, 128>}, {pipeline_mode = #tpu.pipeline_mode<synchronous>, transform_indices = @transform_4, window_bounds = array<i64: 1, 128>}, {pipeline_mode = #tpu.pipeline_mode<synchronous>, transform_indices = @transform_5, window_bounds = array<i64: 128, 128>}, {pipeline_mode = #tpu.pipeline_mode<synchronous>, transform_indices = @transform_6, window_bounds = array<i64: 1, 128>}, {pipeline_mode = #tpu.pipeline_mode<synchronous>, transform_indices = @transform_7, window_bounds = array<i64: 2, 128>}]} {
    %c0 = arith.constant 0 : index
    %c0_0 = arith.constant 0 : index
    %0 = vector.load %arg1[%c0, %c0_0] : memref<2x32xbf16, #tpu.memory_space<vmem>>, vector<2x32xbf16>
    %c0_1 = arith.constant 0 : index
    %c0_2 = arith.constant 0 : index
    %1 = vector.load %arg2[%c0_1, %c0_2] : memref<32x128xbf16, #tpu.memory_space<vmem>>, vector<32x128xbf16>
    %cst = arith.constant dense<0.000000e+00> : vector<2x128xf32>
    %2 = tpu.matmul %0, %1, %cst {dimension_numbers = #tpu.dot_dimension_numbers<[1], [0], [0], [1], [0, 0, 1, 1], [], []>} : vector<2x32xbf16>, vector<32x128xbf16>, vector<2x128xf32> -> vector<2x128xf32>
    %c0_3 = arith.constant 0 : index
    %c0_4 = arith.constant 0 : index
    %3 = vector.load %arg3[%c0_3, %c0_4] : memref<1x128xf32, #tpu.memory_space<vmem>>, vector<1x128xf32>
    %4 = vector.broadcast %3 : vector<1x128xf32> to vector<2x128xf32>
    %5 = arith.addf %2, %4 : vector<2x128xf32>
    %6 = arith.truncf %5 : vector<2x128xf32> to vector<2x128xbf16>
    %c0_5 = arith.constant 0 : index
    %c0_6 = arith.constant 0 : index
    %7 = vector.load %arg4[%c0_5, %c0_6] : memref<128x128xbf16, #tpu.memory_space<vmem>>, vector<128x128xbf16>
    %cst_7 = arith.constant dense<0.000000e+00> : vector<2x128xf32>
    %8 = tpu.matmul %6, %7, %cst_7 {dimension_numbers = #tpu.dot_dimension_numbers<[1], [0], [0], [1], [0, 0, 1, 1], [], []>} : vector<2x128xbf16>, vector<128x128xbf16>, vector<2x128xf32> -> vector<2x128xf32>
    %c0_8 = arith.constant 0 : index
    %c0_9 = arith.constant 0 : index
    %9 = vector.load %arg5[%c0_8, %c0_9] : memref<1x128xf32, #tpu.memory_space<vmem>>, vector<1x128xf32>
    %10 = vector.broadcast %9 : vector<1x128xf32> to vector<2x128xf32>
    %11 = arith.addf %8, %10 : vector<2x128xf32>
    %12 = arith.truncf %11 : vector<2x128xf32> to vector<2x128xbf16>
    %c0_10 = arith.constant 0 : index
    %c0_11 = arith.constant 0 : index
    %13 = vector.load %arg6[%c0_10, %c0_11] : memref<128x128xbf16, #tpu.memory_space<vmem>>, vector<128x128xbf16>
    %cst_12 = arith.constant dense<0.000000e+00> : vector<2x128xf32>
    %14 = tpu.matmul %12, %13, %cst_12 {dimension_numbers = #tpu.dot_dimension_numbers<[1], [0], [0], [1], [0, 0, 1, 1], [], []>} : vector<2x128xbf16>, vector<128x128xbf16>, vector<2x128xf32> -> vector<2x128xf32>
    %c0_13 = arith.constant 0 : index
    %c0_14 = arith.constant 0 : index
    %15 = vector.load %arg7[%c0_13, %c0_14] : memref<1x128xf32, #tpu.memory_space<vmem>>, vector<1x128xf32>
    %16 = vector.broadcast %15 : vector<1x128xf32> to vector<2x128xf32>
    %17 = arith.addf %14, %16 : vector<2x128xf32>
    %c0_15 = arith.constant 0 : index
    %c0_16 = arith.constant 0 : index
    %18 = vector.load %arg8[%c0_15, %c0_16] : memref<2x128xf32, #tpu.memory_space<vmem>>, vector<2x128xf32>
    tpu.vector_store %arg8[%c0_15, %c0_16], %17 {strides = array<i32>} : memref<2x128xf32, #tpu.memory_space<vmem>>, vector<2x128xf32>,
    return
  }
  func.func @transform_0(%arg0: i32) -> (i32, i32) {
    %c0_i32 = arith.constant 0 : i32
    %c0_i32_0 = arith.constant 0 : i32
    %c0_i32_1 = arith.constant 0 : i32
    return %c0_i32, %c0_i32_0 : i32, i32
  }
  func.func @transform_1(%arg0: i32) -> (i32, i32) {
    %c0_i32 = arith.constant 0 : i32
    %c0_i32_0 = arith.constant 0 : i32
    %c0_i32_1 = arith.constant 0 : i32
    return %c0_i32, %c0_i32_0 : i32, i32
  }
  func.func @transform_2(%arg0: i32) -> (i32, i32) {
    %c0_i32 = arith.constant 0 : i32
    %c0_i32_0 = arith.constant 0 : i32
    %c0_i32_1 = arith.constant 0 : i32
    return %c0_i32, %c0_i32_0 : i32, i32
  }
  func.func @transform_3(%arg0: i32) -> (i32, i32) {
    %c0_i32 = arith.constant 0 : i32
    %c0_i32_0 = arith.constant 0 : i32
    %c0_i32_1 = arith.constant 0 : i32
    return %c0_i32, %c0_i32_0 : i32, i32
  }
  func.func @transform_4(%arg0: i32) -> (i32, i32) {
    %c0_i32 = arith.constant 0 : i32
    %c0_i32_0 = arith.constant 0 : i32
    %c0_i32_1 = arith.constant 0 : i32
    return %c0_i32, %c0_i32_0 : i32, i32
  }
  func.func @transform_5(%arg0: i32) -> (i32, i32) {
    %c0_i32 = arith.constant 0 : i32
    %c0_i32_0 = arith.constant 0 : i32
    %c0_i32_1 = arith.constant 0 : i32
    return %c0_i32, %c0_i32_0 : i32, i32
  }
  func.func @transform_6(%arg0: i32) -> (i32, i32) {
    %c0_i32 = arith.constant 0 : i32
    %c0_i32_0 = arith.constant 0 : i32
    %c0_i32_1 = arith.constant 0 : i32
    return %c0_i32, %c0_i32_0 : i32, i32
  }
  func.func @transform_7(%arg0: i32) -> (i32, i32) {
    %c0_i32 = arith.constant 0 : i32
    %c0_i32_0 = arith.constant 0 : i32
    %c0_i32_1 = arith.constant 0 : i32
    return %c0_i32, %c0_i32_0 : i32, i32
  }
}

</mosaic_0001>

<llo_original>
// kernel: _lambda_.13
$region0: #{_lambda_.13}
  #allocation0 [shape = 'u32[]', space=smem, size = 0x4, offset = 0x4, fixed_abs, tag = 'smem constant byte address 0x4 - core index']
  #allocation1 [shape = 'u32[144,128]{1,0:T(1,128)}', space=vmem, size = 0x12000, scoped, tag = 'internal scratch']
  #allocation2 [shape = 'f32[128,32]{1,0:T(8,128)}', space=vmem, size = 0x10000, scoped, tag = 'scratch operand']
  %s0 = inlined_call_operand.hbm [shape: bf16[128,64], index: 0, kind: input, shape index: {}]
  %s1 = inlined_call_operand.hbm [shape: bf16[64,32], index: 1, kind: input, shape index: {}]
  %s2 = inlined_call_operand.hbm [shape: f32[1,32], index: 2, kind: input, shape index: {}]
  %s3 = inlined_call_operand.hbm [shape: bf16[128,32], index: 3, kind: output, shape index: {}]
  %s4 = sld [smem:[#allocation0]]
  $region42: #{_lambda_.13} parent=0
    _
  %s6 = ssub.s32 1, %s4
  %s7 = scalar_select 0, %s6, %s4
  $region1: #{_lambda_.13} parent=0
    #allocation3 [shape = 'u8[32768]{0}', space=vmem, size = 0x8000, scoped, tag = 'input window, operand 0, single buffered']
    #allocation4 [shape = 's32[1]{0}', space=sflag, size = 0x4, scoped, tag = 'scoped memory for _lambda_.13']
    #allocation5 [shape = 's32[1]{0}', space=sflag, size = 0x4, scoped, tag = 'scoped memory for _lambda_.13']
    #allocation6 [shape = 'u8[16384]{0}', space=vmem, size = 0x4000, scoped, tag = 'input window, operand 1, single buffered']
    #allocation7 [shape = 's32[1]{0}', space=sflag, size = 0x4, scoped, tag = 'scoped memory for _lambda_.13']
    #allocation8 [shape = 'u8[512]{0}', space=vmem, size = 0x400, scoped, tag = 'input window, operand 2, single buffered']
    #allocation9 [shape = 'u8[32768]{0}', space=vmem, size = 0x8000, scoped, tag = 'output window, operand 0, single buffered']
    %8 = vsyncpa [#allocation4], 0
    %9 = vsyncpa [#allocation7], 0
    %10 = vsyncpa [#allocation5], 0
    // Predicated region
    $region2: #{_lambda_.13} parent=1 // pred_check
      _
    $region3: #{_lambda_.13} parent=1 // pred_check_branch
      %12 = sbr.rel (0) target = $region5
    $region4: #{_lambda_.13} parent=1 // pred_region
      %s14 = ssub.s32 1024, 1024
      %15 = vsyncadd [#allocation4], %s14
      %s16 = sshll.u32 [#allocation3], 4
      %s17 = int_to_ptr.vmem [resolvable:$true] %s16
      %22 = dma.hbm_to_vmem [thread:$0]  %s0, 1024, %s17, [#allocation4], 64, 64, 4
    $region5: #{_lambda_.13} parent=1 // pred_fallthru
      _
    // Predicated region
    $region6: #{_lambda_.13} parent=1 // pred_check
      _
    $region7: #{_lambda_.13} parent=1 // pred_check_branch
      %24 = sbr.rel (0) target = $region9
    $region8: #{_lambda_.13} parent=1 // pred_region
      %s26 = ssub.s32 512, 512
      %27 = vsyncadd [#allocation7], %s26
      %s28 = sshll.u32 [#allocation6], 4
      %s29 = int_to_ptr.vmem [resolvable:$true] %s28
      %34 = dma.hbm_to_vmem [thread:$0]  %s1, 512, %s29, [#allocation7], 64, 64, 4
    $region9: #{_lambda_.13} parent=1 // pred_fallthru
      _
    // Predicated region
    $region10: #{_lambda_.13} parent=1 // pred_check
      _
    $region11: #{_lambda_.13} parent=1 // pred_check_branch
      %36 = sbr.rel (0) target = $region13
    $region12: #{_lambda_.13} parent=1 // pred_region
      %s38 = ssub.s32 16, 16
      %39 = vsyncadd [#allocation7], %s38
      %s41 = sshll.u32 [#allocation8], 4
      %s42 = int_to_ptr.vmem [resolvable:$true] %s41
      %44 = dma.hbm_to_vmem [thread:$0]  %s2, 16, %s42, [#allocation7]
    $region13: #{_lambda_.13} parent=1 // pred_fallthru
      _
    // Predicated region
    $region14: #{_lambda_.13} parent=1 // pred_check
      _
    $region15: #{_lambda_.13} parent=1 // pred_check_branch
      %46 = sbr.rel (0) target = $region17
    $region16: #{_lambda_.13} parent=1 // pred_region
      %47 = dma.done [#allocation4], 1024
    $region17: #{_lambda_.13} parent=1 // pred_fallthru
      _
    // Predicated region
    $region18: #{_lambda_.13} parent=1 // pred_check
      _
    $region19: #{_lambda_.13} parent=1 // pred_check_branch
      %49 = sbr.rel (0) target = $region21
    $region20: #{_lambda_.13} parent=1 // pred_region
      %50 = dma.done [#allocation7], 512
    $region21: #{_lambda_.13} parent=1 // pred_fallthru
      _
    // Predicated region
    $region22: #{_lambda_.13} parent=1 // pred_check
      _
    $region23: #{_lambda_.13} parent=1 // pred_check_branch
      %52 = sbr.rel (0) target = $region25
    $region24: #{_lambda_.13} parent=1 // pred_region
      %53 = dma.done [#allocation7], 16
    $region25: #{_lambda_.13} parent=1 // pred_fallthru
      _
    %p55 = scmp.eq.s32.totalorder 0, 0
    // Predicated region
    $region26: #{_lambda_.13} parent=1 // pred_check
      %p56 = pneg %p55
    $region27: #{_lambda_.13} parent=1 // pred_check_branch
      %58 = sbr.rel (%p56) target = $region29
    $region28: #{_lambda_.13} parent=1 // pred_region
      %vm59 = vcmask 261120
      %60 = vst.msk [vmem:[#allocation2] sm:$0xff] %vm59, 0.0
      %61 = vst.msk [vmem:[#allocation2 + $0x8] sm:$0xff] %vm59, 0.0
      %62 = vst.msk [vmem:[#allocation2 + $0x10] sm:$0xff] %vm59, 0.0
      %63 = vst.msk [vmem:[#allocation2 + $0x18] sm:$0xff] %vm59, 0.0
      %64 = vst.msk [vmem:[#allocation2 + $0x20] sm:$0xff] %vm59, 0.0
      %65 = vst.msk [vmem:[#allocation2 + $0x28] sm:$0xff] %vm59, 0.0
      %66 = vst.msk [vmem:[#allocation2 + $0x30] sm:$0xff] %vm59, 0.0
      %67 = vst.msk [vmem:[#allocation2 + $0x38] sm:$0xff] %vm59, 0.0
      %68 = vst.msk [vmem:[#allocation2 + $0x40] sm:$0xff] %vm59, 0.0
      %69 = vst.msk [vmem:[#allocation2 + $0x48] sm:$0xff] %vm59, 0.0
      %70 = vst.msk [vmem:[#allocation2 + $0x50] sm:$0xff] %vm59, 0.0
      %71 = vst.msk [vmem:[#allocation2 + $0x58] sm:$0xff] %vm59, 0.0
      %72 = vst.msk [vmem:[#allocation2 + $0x60] sm:$0xff] %vm59, 0.0
      %73 = vst.msk [vmem:[#allocation2 + $0x68] sm:$0xff] %vm59, 0.0
      %74 = vst.msk [vmem:[#allocation2 + $0x70] sm:$0xff] %vm59, 0.0
      %75 = vst.msk [vmem:[#allocation2 + $0x78] sm:$0xff] %vm59, 0.0
    $region29: #{_lambda_.13} parent=1 // pred_fallthru
      _
    %v76 = vld [vmem:[#allocation2] sm:$0xff]
    %v77 = vld [vmem:[#allocation2 + $0x8] sm:$0xff]
    %v78 = vld [vmem:[#allocation2 + $0x10] sm:$0xff]
    %v79 = vld [vmem:[#allocation2 + $0x18] sm:$0xff]
    %v80 = vld [vmem:[#allocation2 + $0x20] sm:$0xff]
    %v81 = vld [vmem:[#allocation2 + $0x28] sm:$0xff]
    %v82 = vld [vmem:[#allocation2 + $0x30] sm:$0xff]
    %v83 = vld [vmem:[#allocation2 + $0x38] sm:$0xff]
    %v84 = vld [vmem:[#allocation2 + $0x40] sm:$0xff]
    %v85 = vld [vmem:[#allocation2 + $0x48] sm:$0xff]
    %v86 = vld [vmem:[#allocation2 + $0x50] sm:$0xff]
    %v87 = vld [vmem:[#allocation2 + $0x58] sm:$0xff]
    %v88 = vld [vmem:[#allocation2 + $0x60] sm:$0xff]
    %v89 = vld [vmem:[#allocation2 + $0x68] sm:$0xff]
    %v90 = vld [vmem:[#allocation2 + $0x70] sm:$0xff]
    %v91 = vld [vmem:[#allocation2 + $0x78] sm:$0xff]
    %v92 = vld [vmem:[#allocation3] sm:$0xf]
    %v93 = vld [vmem:[#allocation3 + $0x4] sm:$0xf]
    %v94 = vld [vmem:[#allocation3 + $0x8] sm:$0xf]
    %v95 = vld [vmem:[#allocation3 + $0xc] sm:$0xf]
    %v96 = vld [vmem:[#allocation3 + $0x10] sm:$0xf]
    %v97 = vld [vmem:[#allocation3 + $0x14] sm:$0xf]
    %v98 = vld [vmem:[#allocation3 + $0x18] sm:$0xf]
    %v99 = vld [vmem:[#allocation3 + $0x1c] sm:$0xf]
    %v100 = vld [vmem:[#allocation3 + $0x20] sm:$0xf]
    %v101 = vld [vmem:[#allocation3 + $0x24] sm:$0xf]
    %v102 = vld [vmem:[#allocation3 + $0x28] sm:$0xf]
    %v103 = vld [vmem:[#allocation3 + $0x2c] sm:$0xf]
    %v104 = vld [vmem:[#allocation3 + $0x30] sm:$0xf]
    %v105 = vld [vmem:[#allocation3 + $0x34] sm:$0xf]
    %v106 = vld [vmem:[#allocation3 + $0x38] sm:$0xf]
    %v107 = vld [vmem:[#allocation3 + $0x3c] sm:$0xf]
    %v108 = vld [vmem:[#allocation6] sm:$0xf]
    %v109 = vld [vmem:[#allocation6 + $0x4] sm:$0xf]
    %v110 = vld [vmem:[#allocation6 + $0x8] sm:$0xf]
    %v111 = vld [vmem:[#allocation6 + $0xc] sm:$0xf]
    %v112 = vld [vmem:[#allocation6 + $0x10] sm:$0xf]
    %v113 = vld [vmem:[#allocation6 + $0x14] sm:$0xf]
    %v114 = vld [vmem:[#allocation6 + $0x18] sm:$0xf]
    %v115 = vld [vmem:[#allocation6 + $0x1c] sm:$0xf]
    %v132 = vunpack.c.l.b16 %v92
    %v133 = vunpack.c.l.b16 %v93
    %v134 = vunpack.c.l.b16 %v94
    %v135 = vunpack.c.l.b16 %v95
    %v136 = vunpack.c.l.b16 %v96
    %v137 = vunpack.c.l.b16 %v97
    %v138 = vunpack.c.l.b16 %v98
    %v139 = vunpack.c.l.b16 %v99
    %v140 = vunpack.c.l.b16 %v100
    %v141 = vunpack.c.l.b16 %v101
    %v142 = vunpack.c.l.b16 %v102
    %v143 = vunpack.c.l.b16 %v103
    %v144 = vunpack.c.l.b16 %v104
    %v145 = vunpack.c.l.b16 %v105
    %v146 = vunpack.c.l.b16 %v106
    %v147 = vunpack.c.l.b16 %v107
    %v148 = vpack.c.b16 %v133, %v132
    %v149 = vpack.c.b16 %v135, %v134
    %v150 = vpack.c.b16 %v137, %v136
    %v151 = vpack.c.b16 %v139, %v138
    %v152 = vpack.c.b16 %v141, %v140
    %v153 = vpack.c.b16 %v143, %v142
    %v154 = vpack.c.b16 %v145, %v144
    %v155 = vpack.c.b16 %v147, %v146
    %v164 = vunpack.c.l.b16 %v108
    %v165 = vunpack.c.l.b16 %v109
    %v166 = vunpack.c.l.b16 %v110
    %v167 = vunpack.c.l.b16 %v111
    %v168 = vunpack.c.l.b16 %v112
    %v169 = vunpack.c.l.b16 %v113
    %v170 = vunpack.c.l.b16 %v114
    %v171 = vunpack.c.l.b16 %v115
    %v172 = vpack.c.b16 %v165, %v164
    %v173 = vpack.c.b16 %v167, %v166
    %v174 = vpack.c.b16 %v169, %v168
    %v175 = vpack.c.b16 %v171, %v170
    %vm180 = vcmask 523264
    %v182 = vsel %vm180, %v148, 0
    %v185 = vsel %vm180, %v149, 0
    %v188 = vsel %vm180, %v150, 0
    %v191 = vsel %vm180, %v151, 0
    %v194 = vsel %vm180, %v152, 0
    %v197 = vsel %vm180, %v153, 0
    %v200 = vsel %vm180, %v154, 0
    %v203 = vsel %vm180, %v155, 0
    %205 = vmatprep.subr.bf16.mxu0 0
    %206 = vmatpush1.bf16.msra.mxu0 %v172
    %207 = vmatprep.subr.bf16.mxu0 0
    %208 = vmatpush1.bf16.msra.mxu0 %v173
    %209 = vmatprep.subr.bf16.mxu0 0
    %210 = vmatpush1.bf16.msra.mxu0 %v174
    %211 = vmatprep.subr.bf16.mxu0 0
    %212 = vmatpush1.bf16.msra.mxu0 %v175
    %213 = vmatprep.subr.bf16.mxu0 0
    %214 = vmatpush1.bf16.msra.mxu0 0
    %215 = vmatprep.subr.bf16.mxu0 0
    %216 = vmatpush1.bf16.msra.mxu0 0
    %217 = vmatprep.subr.bf16.mxu0 0
    %218 = vmatpush1.bf16.msra.mxu0 0
    %219 = vmatprep.subr.bf16.mxu0 0
    %220 = vmatpush1.bf16.msra.mxu0 0
    %221 = vmatprep.subr.bf16.mxu0 0
    %222 = vmatpush1.bf16.msra.mxu0 0
    %223 = vmatprep.subr.bf16.mxu0 0
    %224 = vmatpush1.bf16.msra.mxu0 0
    %225 = vmatprep.subr.bf16.mxu0 0
    %226 = vmatpush1.bf16.msra.mxu0 0
    %227 = vmatprep.subr.bf16.mxu0 0
    %228 = vmatpush1.bf16.msra.mxu0 0
    %229 = vmatprep.subr.bf16.mxu0 0
    %230 = vmatpush1.bf16.msra.mxu0 0
    %231 = vmatprep.subr.bf16.mxu0 0
    %232 = vmatpush1.bf16.msra.mxu0 0
    %233 = vmatprep.subr.bf16.mxu0 0
    %234 = vmatpush1.bf16.msra.mxu0 0
    %235 = vmatprep.subr.bf16.mxu0 0
    %236 = vmatpush1.bf16.msra.mxu0 0
    %237 = vmatprep.mubr.bf16.mxu0 0
    %238 = vmatmul.mubr.bf16.gmra.mrb[0].mxu0 %v182
    %v239 = vpop.f32.mrb[0].mxu0
    %v240 = vadd.f32 0.0, %v239
    %v241 = vpop.f32.mrb[0].mxu0
    %v242 = vpop.f32.mrb[0].mxu0
    %v243 = vadd.f32 0.0, %v242
    %v244 = vpop.f32.mrb[0].mxu0
    %245 = vmatprep.mubr.bf16.mxu0 0
    %246 = vmatmul.mubr.bf16.gmra.mrb[0].mxu0 %v185
    %v247 = vpop.f32.mrb[0].mxu0
    %v248 = vadd.f32 0.0, %v247
    %v249 = vpop.f32.mrb[0].mxu0
    %v250 = vpop.f32.mrb[0].mxu0
    %v251 = vadd.f32 0.0, %v250
    %v252 = vpop.f32.mrb[0].mxu0
    %253 = vmatprep.mubr.bf16.mxu0 0
    %254 = vmatmul.mubr.bf16.gmra.mrb[0].mxu0 %v188
    %v255 = vpop.f32.mrb[0].mxu0
    %v256 = vadd.f32 0.0, %v255
    %v257 = vpop.f32.mrb[0].mxu0
    %v258 = vpop.f32.mrb[0].mxu0
    %v259 = vadd.f32 0.0, %v258
    %v260 = vpop.f32.mrb[0].mxu0
    %261 = vmatprep.mubr.bf16.mxu0 0
    %262 = vmatmul.mubr.bf16.gmra.mrb[0].mxu0 %v191
    %v263 = vpop.f32.mrb[0].mxu0
    %v264 = vadd.f32 0.0, %v263
    %v265 = vpop.f32.mrb[0].mxu0
    %v266 = vpop.f32.mrb[0].mxu0
    %v267 = vadd.f32 0.0, %v266
    %v268 = vpop.f32.mrb[0].mxu0
    %269 = vmatprep.mubr.bf16.mxu0 0
    %270 = vmatmul.mubr.bf16.gmra.mrb[0].mxu0 %v194
    %v271 = vpop.f32.mrb[0].mxu0
    %v272 = vadd.f32 0.0, %v271
    %v273 = vpop.f32.mrb[0].mxu0
    %v274 = vpop.f32.mrb[0].mxu0
    %v275 = vadd.f32 0.0, %v274
    %v276 = vpop.f32.mrb[0].mxu0
    %277 = vmatprep.mubr.bf16.mxu0 0
    %278 = vmatmul.mubr.bf16.gmra.mrb[0].mxu0 %v197
    %v279 = vpop.f32.mrb[0].mxu0
    %v280 = vadd.f32 0.0, %v279
    %v281 = vpop.f32.mrb[0].mxu0
    %v282 = vpop.f32.mrb[0].mxu0
    %v283 = vadd.f32 0.0, %v282
    %v284 = vpop.f32.mrb[0].mxu0
    %285 = vmatprep.mubr.bf16.mxu0 0
    %286 = vmatmul.mubr.bf16.gmra.mrb[0].mxu0 %v200
    %v287 = vpop.f32.mrb[0].mxu0
    %v288 = vadd.f32 0.0, %v287
    %v289 = vpop.f32.mrb[0].mxu0
    %v290 = vpop.f32.mrb[0].mxu0
    %v291 = vadd.f32 0.0, %v290
    %v292 = vpop.f32.mrb[0].mxu0
    %293 = vmatprep.mubr.bf16.mxu0 0
    %294 = vmatmul.mubr.bf16.gmra.mrb[0].mxu0 %v203
    %v295 = vpop.f32.mrb[0].mxu0
    %v296 = vadd.f32 0.0, %v295
    %v297 = vpop.f32.mrb[0].mxu0
    %v298 = vpop.f32.mrb[0].mxu0
    %v299 = vadd.f32 0.0, %v298
    %v300 = vpop.f32.mrb[0].mxu0
    %301 = vdwg.mxu0
    %v302 = vadd.f32 %v76, %v240
    %v303 = vadd.f32 %v77, %v243
    %v304 = vadd.f32 %v78, %v248
    %v305 = vadd.f32 %v79, %v251
    %v306 = vadd.f32 %v80, %v256
    %v307 = vadd.f32 %v81, %v259
    %v308 = vadd.f32 %v82, %v264
    %v309 = vadd.f32 %v83, %v267
    %v310 = vadd.f32 %v84, %v272
    %v311 = vadd.f32 %v85, %v275
    %v312 = vadd.f32 %v86, %v280
    %v313 = vadd.f32 %v87, %v283
    %v314 = vadd.f32 %v88, %v288
    %v315 = vadd.f32 %v89, %v291
    %v316 = vadd.f32 %v90, %v296
    %v317 = vadd.f32 %v91, %v299
    %vm318 = vcmask 261120
    %319 = vst.msk [vmem:[#allocation2] sm:$0xff] %vm318, %v302
    %320 = vst.msk [vmem:[#allocation2 + $0x8] sm:$0xff] %vm318, %v303
    %321 = vst.msk [vmem:[#allocation2 + $0x10] sm:$0xff] %vm318, %v304
    %322 = vst.msk [vmem:[#allocation2 + $0x18] sm:$0xff] %vm318, %v305
    %323 = vst.msk [vmem:[#allocation2 + $0x20] sm:$0xff] %vm318, %v306
    %324 = vst.msk [vmem:[#allocation2 + $0x28] sm:$0xff] %vm318, %v307
    %325 = vst.msk [vmem:[#allocation2 + $0x30] sm:$0xff] %vm318, %v308
    %326 = vst.msk [vmem:[#allocation2 + $0x38] sm:$0xff] %vm318, %v309
    %327 = vst.msk [vmem:[#allocation2 + $0x40] sm:$0xff] %vm318, %v310
    %328 = vst.msk [vmem:[#allocation2 + $0x48] sm:$0xff] %vm318, %v311
    %329 = vst.msk [vmem:[#allocation2 + $0x50] sm:$0xff] %vm318, %v312
    %330 = vst.msk [vmem:[#allocation2 + $0x58] sm:$0xff] %vm318, %v313
    %331 = vst.msk [vmem:[#allocation2 + $0x60] sm:$0xff] %vm318, %v314
    %332 = vst.msk [vmem:[#allocation2 + $0x68] sm:$0xff] %vm318, %v315
    %333 = vst.msk [vmem:[#allocation2 + $0x70] sm:$0xff] %vm318, %v316
    %334 = vst.msk [vmem:[#allocation2 + $0x78] sm:$0xff] %vm318, %v317
    // Predicated region
    $region30: #{_lambda_.13} parent=1 // pred_check
      %p335 = pneg %p55
    $region31: #{_lambda_.13} parent=1 // pred_check_branch
      %337 = sbr.rel (%p335) target = $region33
    $region32: #{_lambda_.13} parent=1 // pred_region
      %v338 = vld [vmem:[#allocation2] sm:$0xff]
      %v339 = vld [vmem:[#allocation2 + $0x8] sm:$0xff]
      %v340 = vld [vmem:[#allocation2 + $0x10] sm:$0xff]
      %v341 = vld [vmem:[#allocation2 + $0x18] sm:$0xff]
      %v342 = vld [vmem:[#allocation2 + $0x20] sm:$0xff]
      %v343 = vld [vmem:[#allocation2 + $0x28] sm:$0xff]
      %v344 = vld [vmem:[#allocation2 + $0x30] sm:$0xff]
      %v345 = vld [vmem:[#allocation2 + $0x38] sm:$0xff]
      %v346 = vld [vmem:[#allocation2 + $0x40] sm:$0xff]
      %v347 = vld [vmem:[#allocation2 + $0x48] sm:$0xff]
      %v348 = vld [vmem:[#allocation2 + $0x50] sm:$0xff]
      %v349 = vld [vmem:[#allocation2 + $0x58] sm:$0xff]
      %v350 = vld [vmem:[#allocation2 + $0x60] sm:$0xff]
      %v351 = vld [vmem:[#allocation2 + $0x68] sm:$0xff]
      %v352 = vld [vmem:[#allocation2 + $0x70] sm:$0xff]
      %v353 = vld [vmem:[#allocation2 + $0x78] sm:$0xff]
      %v354 = vld [vmem:[#allocation8] sm:$0x1]
      %v356 = vlaneseq
      %v357 = vshrl.u32 %v356, 7
      %v358 = vsub.s32 0, %v357
      %v359 = vrot.slane %v354, %v358
      %v361 = vadd.f32 %v338, %v359
      %v362 = vadd.f32 %v339, %v359
      %v363 = vadd.f32 %v340, %v359
      %v364 = vadd.f32 %v341, %v359
      %v365 = vadd.f32 %v342, %v359
      %v366 = vadd.f32 %v343, %v359
      %v367 = vadd.f32 %v344, %v359
      %v368 = vadd.f32 %v345, %v359
      %v369 = vadd.f32 %v346, %v359
      %v370 = vadd.f32 %v347, %v359
      %v371 = vadd.f32 %v348, %v359
      %v372 = vadd.f32 %v349, %v359
      %v373 = vadd.f32 %v350, %v359
      %v374 = vadd.f32 %v351, %v359
      %v375 = vadd.f32 %v352, %v359
      %v376 = vadd.f32 %v353, %v359
      %v377 = vmul.f32 %v361, %v361
      %v378 = vmul.f32 %v362, %v362
      %v379 = vmul.f32 %v363, %v363
      %v380 = vmul.f32 %v364, %v364
      %v381 = vmul.f32 %v365, %v365
      %v382 = vmul.f32 %v366, %v366
      %v383 = vmul.f32 %v367, %v367
      %v384 = vmul.f32 %v368, %v368
      %v385 = vmul.f32 %v369, %v369
      %v386 = vmul.f32 %v370, %v370
      %v387 = vmul.f32 %v371, %v371
      %v388 = vmul.f32 %v372, %v372
      %v389 = vmul.f32 %v373, %v373
      %v390 = vmul.f32 %v374, %v374
      %v391 = vmul.f32 %v375, %v375
      %v392 = vmul.f32 %v376, %v376
      %v393 = vmul.f32 %v361, %v377
      %v394 = vmul.f32 %v362, %v378
      %v395 = vmul.f32 %v363, %v379
      %v396 = vmul.f32 %v364, %v380
      %v397 = vmul.f32 %v365, %v381
      %v398 = vmul.f32 %v366, %v382
      %v399 = vmul.f32 %v367, %v383
      %v400 = vmul.f32 %v368, %v384
      %v401 = vmul.f32 %v369, %v385
      %v402 = vmul.f32 %v370, %v386
      %v403 = vmul.f32 %v371, %v387
      %v404 = vmul.f32 %v372, %v388
      %v405 = vmul.f32 %v373, %v389
      %v406 = vmul.f32 %v374, %v390
      %v407 = vmul.f32 %v375, %v391
      %v408 = vmul.f32 %v376, %v392
      %v409 = vmul.f32 %v393, 0.044715
      %v410 = vmul.f32 %v394, 0.044715
      %v411 = vmul.f32 %v395, 0.044715
      %v412 = vmul.f32 %v396, 0.044715
      %v413 = vmul.f32 %v397, 0.044715
      %v414 = vmul.f32 %v398, 0.044715
      %v415 = vmul.f32 %v399, 0.044715
      %v416 = vmul.f32 %v400, 0.044715
      %v417 = vmul.f32 %v401, 0.044715
      %v418 = vmul.f32 %v402, 0.044715
      %v419 = vmul.f32 %v403, 0.044715
      %v420 = vmul.f32 %v404, 0.044715
      %v421 = vmul.f32 %v405, 0.044715
      %v422 = vmul.f32 %v406, 0.044715
      %v423 = vmul.f32 %v407, 0.044715
      %v424 = vmul.f32 %v408, 0.044715
      %v425 = vadd.f32 %v361, %v409
      %v426 = vadd.f32 %v362, %v410
      %v427 = vadd.f32 %v363, %v411
      %v428 = vadd.f32 %v364, %v412
      %v429 = vadd.f32 %v365, %v413
      %v430 = vadd.f32 %v366, %v414
      %v431 = vadd.f32 %v367, %v415
      %v432 = vadd.f32 %v368, %v416
      %v433 = vadd.f32 %v369, %v417
      %v434 = vadd.f32 %v370, %v418
      %v435 = vadd.f32 %v371, %v419
      %v436 = vadd.f32 %v372, %v420
      %v437 = vadd.f32 %v373, %v421
      %v438 = vadd.f32 %v374, %v422
      %v439 = vadd.f32 %v375, %v423
      %v440 = vadd.f32 %v376, %v424
      %v441 = vmul.f32 %v425, 0.7978846
      %v442 = vmul.f32 %v426, 0.7978846
      %v443 = vmul.f32 %v427, 0.7978846
      %v444 = vmul.f32 %v428, 0.7978846
      %v445 = vmul.f32 %v429, 0.7978846
      %v446 = vmul.f32 %v430, 0.7978846
      %v447 = vmul.f32 %v431, 0.7978846
      %v448 = vmul.f32 %v432, 0.7978846
      %v449 = vmul.f32 %v433, 0.7978846
      %v450 = vmul.f32 %v434, 0.7978846
      %v451 = vmul.f32 %v435, 0.7978846
      %v452 = vmul.f32 %v436, 0.7978846
      %v453 = vmul.f32 %v437, 0.7978846
      %v454 = vmul.f32 %v438, 0.7978846
      %v455 = vmul.f32 %v439, 0.7978846
      %v456 = vmul.f32 %v440, 0.7978846
      %v457 = vtanh.pop %v441
      %v458 = vtanh.pop %v442
      %v459 = vtanh.pop %v443
      %v460 = vtanh.pop %v444
      %v461 = vtanh.pop %v445
      %v462 = vtanh.pop %v446
      %v463 = vtanh.pop %v447
      %v464 = vtanh.pop %v448
      %v465 = vtanh.pop %v449
      %v466 = vtanh.pop %v450
      %v467 = vtanh.pop %v451
      %v468 = vtanh.pop %v452
      %v469 = vtanh.pop %v453
      %v470 = vtanh.pop %v454
      %v471 = vtanh.pop %v455
      %v472 = vtanh.pop %v456
      %v473 = vadd.f32 %v457, 1.0
      %v474 = vadd.f32 %v458, 1.0
      %v475 = vadd.f32 %v459, 1.0
      %v476 = vadd.f32 %v460, 1.0
      %v477 = vadd.f32 %v461, 1.0
      %v478 = vadd.f32 %v462, 1.0
      %v479 = vadd.f32 %v463, 1.0
      %v480 = vadd.f32 %v464, 1.0
      %v481 = vadd.f32 %v465, 1.0
      %v482 = vadd.f32 %v466, 1.0
      %v483 = vadd.f32 %v467, 1.0
      %v484 = vadd.f32 %v468, 1.0
      %v485 = vadd.f32 %v469, 1.0
      %v486 = vadd.f32 %v470, 1.0
      %v487 = vadd.f32 %v471, 1.0
      %v488 = vadd.f32 %v472, 1.0
      %v489 = vmul.f32 %v473, 0.5
      %v490 = vmul.f32 %v474, 0.5
      %v491 = vmul.f32 %v475, 0.5
      %v492 = vmul.f32 %v476, 0.5
      %v493 = vmul.f32 %v477, 0.5
      %v494 = vmul.f32 %v478, 0.5
      %v495 = vmul.f32 %v479, 0.5
      %v496 = vmul.f32 %v480, 0.5
      %v497 = vmul.f32 %v481, 0.5
      %v498 = vmul.f32 %v482, 0.5
      %v499 = vmul.f32 %v483, 0.5
      %v500 = vmul.f32 %v484, 0.5
      %v501 = vmul.f32 %v485, 0.5
      %v502 = vmul.f32 %v486, 0.5
      %v503 = vmul.f32 %v487, 0.5
      %v504 = vmul.f32 %v488, 0.5
      %v505 = vmul.f32 %v361, %v489
      %v506 = vmul.f32 %v362, %v490
      %v507 = vmul.f32 %v363, %v491
      %v508 = vmul.f32 %v364, %v492
      %v509 = vmul.f32 %v365, %v493
      %v510 = vmul.f32 %v366, %v494
      %v511 = vmul.f32 %v367, %v495
      %v512 = vmul.f32 %v368, %v496
      %v513 = vmul.f32 %v369, %v497
      %v514 = vmul.f32 %v370, %v498
      %v515 = vmul.f32 %v371, %v499
      %v516 = vmul.f32 %v372, %v500
      %v517 = vmul.f32 %v373, %v501
      %v518 = vmul.f32 %v374, %v502
      %v519 = vmul.f32 %v375, %v503
      %v520 = vmul.f32 %v376, %v504
      %v521 = vpack.c.bf16 %v506, %v505
      %v522 = vpack.c.bf16 %v508, %v507
      %v523 = vpack.c.bf16 %v510, %v509
      %v524 = vpack.c.bf16 %v512, %v511
      %v525 = vpack.c.bf16 %v514, %v513
      %v526 = vpack.c.bf16 %v516, %v515
      %v527 = vpack.c.bf16 %v518, %v517
      %v528 = vpack.c.bf16 %v520, %v519
      %v537 = vunpack.c.l.b16 %v521
      %v538 = vunpack.c.h.b16 %v521
      %v539 = vunpack.c.l.b16 %v522
      %v540 = vunpack.c.h.b16 %v522
      %v541 = vunpack.c.l.b16 %v523
      %v542 = vunpack.c.h.b16 %v523
      %v543 = vunpack.c.l.b16 %v524
      %v544 = vunpack.c.h.b16 %v524
      %v545 = vunpack.c.l.b16 %v525
      %v546 = vunpack.c.h.b16 %v525
      %v547 = vunpack.c.l.b16 %v526
      %v548 = vunpack.c.h.b16 %v526
      %v549 = vunpack.c.l.b16 %v527
      %v550 = vunpack.c.h.b16 %v527
      %v551 = vunpack.c.l.b16 %v528
      %v552 = vunpack.c.h.b16 %v528
      %v553 = vpack.c.b16 %v537, %v537
      %v554 = vpack.c.b16 %v538, %v538
      %v555 = vpack.c.b16 %v539, %v539
      %v556 = vpack.c.b16 %v540, %v540
      %v557 = vpack.c.b16 %v541, %v541
      %v558 = vpack.c.b16 %v542, %v542
      %v559 = vpack.c.b16 %v543, %v543
      %v560 = vpack.c.b16 %v544, %v544
      %v561 = vpack.c.b16 %v545, %v545
      %v562 = vpack.c.b16 %v546, %v546
      %v563 = vpack.c.b16 %v547, %v547
      %v564 = vpack.c.b16 %v548, %v548
      %v565 = vpack.c.b16 %v549, %v549
      %v566 = vpack.c.b16 %v550, %v550
      %v567 = vpack.c.b16 %v551, %v551
      %v568 = vpack.c.b16 %v552, %v552
      %vm585 = vcmask 257024
      %586 = vst.msk [vmem:[#allocation9] sm:$0xf] %vm585, %v553
      %587 = vst.msk [vmem:[#allocation9 + $0x4] sm:$0xf] %vm585, %v554
      %588 = vst.msk [vmem:[#allocation9 + $0x8] sm:$0xf] %vm585, %v555
      %589 = vst.msk [vmem:[#allocation9 + $0xc] sm:$0xf] %vm585, %v556
      %590 = vst.msk [vmem:[#allocation9 + $0x10] sm:$0xf] %vm585, %v557
      %591 = vst.msk [vmem:[#allocation9 + $0x14] sm:$0xf] %vm585, %v558
      %592 = vst.msk [vmem:[#allocation9 + $0x18] sm:$0xf] %vm585, %v559
      %593 = vst.msk [vmem:[#allocation9 + $0x1c] sm:$0xf] %vm585, %v560
      %594 = vst.msk [vmem:[#allocation9 + $0x20] sm:$0xf] %vm585, %v561
      %595 = vst.msk [vmem:[#allocation9 + $0x24] sm:$0xf] %vm585, %v562
      %596 = vst.msk [vmem:[#allocation9 + $0x28] sm:$0xf] %vm585, %v563
      %597 = vst.msk [vmem:[#allocation9 + $0x2c] sm:$0xf] %vm585, %v564
      %598 = vst.msk [vmem:[#allocation9 + $0x30] sm:$0xf] %vm585, %v565
      %599 = vst.msk [vmem:[#allocation9 + $0x34] sm:$0xf] %vm585, %v566
      %600 = vst.msk [vmem:[#allocation9 + $0x38] sm:$0xf] %vm585, %v567
      %601 = vst.msk [vmem:[#allocation9 + $0x3c] sm:$0xf] %vm585, %v568
    $region33: #{_lambda_.13} parent=1 // pred_fallthru
      _
    // Predicated region
    $region34: #{_lambda_.13} parent=1 // pred_check
      _
    $region35: #{_lambda_.13} parent=1 // pred_check_branch
      %603 = sbr.rel (0) target = $region37
    $region36: #{_lambda_.13} parent=1 // pred_region
      %s605 = ssub.s32 1024, 1024
      %606 = vsyncadd [#allocation5], %s605
      %s607 = sshll.u32 [#allocation9], 4
      %s608 = int_to_ptr.vmem [resolvable:$true] %s607
      %613 = dma.vmem_to_hbm [thread:$0]  %s608, 1024, %s3, [#allocation5], 64, 64, 4
    $region37: #{_lambda_.13} parent=1 // pred_fallthru
      _
    // Predicated region
    $region38: #{_lambda_.13} parent=1 // pred_check
      _
    $region39: #{_lambda_.13} parent=1 // pred_check_branch
      %615 = sbr.rel (0) target = $region41
    $region40: #{_lambda_.13} parent=1 // pred_region
      %616 = dma.done [#allocation5], 1024
    $region41: #{_lambda_.13} parent=1 // pred_fallthru
      _
    %617 = vsyncpa [#allocation4], 1
    %618 = vsyncpa [#allocation7], 1
    %619 = vsyncpa [#allocation5], 1

// kernel: _lambda_.15
$region0: #{_lambda_.15}
  #allocation0 [shape = 'u32[]', space=smem, size = 0x4, offset = 0x4, fixed_abs, tag = 'smem constant byte address 0x4 - core index']
  #allocation1 [shape = 'u32[144,128]{1,0:T(1,128)}', space=vmem, size = 0x12000, scoped, tag = 'internal scratch']
  #allocation2 [shape = 'f32[8,32]{1,0:T(8,128)}', space=vmem, size = 0x1000, scoped, tag = 'scratch operand']
  %s0 = inlined_call_operand.hbm [shape: bf16[8,128], index: 0, kind: input, shape index: {}]
  %s1 = inlined_call_operand.hbm [shape: bf16[128,32], index: 1, kind: input, shape index: {}]
  %s2 = inlined_call_operand.hbm [shape: f32[1,32], index: 2, kind: input, shape index: {}]
  %s3 = inlined_call_operand.hbm [shape: bf16[8,32], index: 3, kind: output, shape index: {}]
  %s4 = sld [smem:[#allocation0]]
  $region42: #{_lambda_.15} parent=0
    _
  %s6 = ssub.s32 1, %s4
  %s7 = scalar_select 0, %s6, %s4
  $region1: #{_lambda_.15} parent=0
    #allocation3 [shape = 'u8[2048]{0}', space=vmem, size = 0x800, scoped, tag = 'input window, operand 0, single buffered']
    #allocation4 [shape = 's32[1]{0}', space=sflag, size = 0x4, scoped, tag = 'scoped memory for _lambda_.15']
    #allocation5 [shape = 's32[1]{0}', space=sflag, size = 0x4, scoped, tag = 'scoped memory for _lambda_.15']
    #allocation6 [shape = 'u8[32768]{0}', space=vmem, size = 0x8000, scoped, tag = 'input window, operand 1, single buffered']
    #allocation7 [shape = 's32[1]{0}', space=sflag, size = 0x4, scoped, tag = 'scoped memory for _lambda_.15']
    #allocation8 [shape = 'u8[512]{0}', space=vmem, size = 0x400, scoped, tag = 'input window, operand 2, single buffered']
    #allocation9 [shape = 'u8[2048]{0}', space=vmem, size = 0x800, scoped, tag = 'output window, operand 0, single buffered']
    %8 = vsyncpa [#allocation4], 0
    %9 = vsyncpa [#allocation7], 0
    %10 = vsyncpa [#allocation5], 0
    // Predicated region
    $region2: #{_lambda_.15} parent=1 // pred_check
      _
    $region3: #{_lambda_.15} parent=1 // pred_check_branch
      %12 = sbr.rel (0) target = $region5
    $region4: #{_lambda_.15} parent=1 // pred_region
      %s14 = ssub.s32 64, 64
      %15 = vsyncadd [#allocation4], %s14
      %s17 = sshll.u32 [#allocation3], 4
      %s18 = int_to_ptr.vmem [resolvable:$true] %s17
      %20 = dma.hbm_to_vmem [thread:$0]  %s0, 64, %s18, [#allocation4]
    $region5: #{_lambda_.15} parent=1 // pred_fallthru
      _
    // Predicated region
    $region6: #{_lambda_.15} parent=1 // pred_check
      _
    $region7: #{_lambda_.15} parent=1 // pred_check_branch
      %22 = sbr.rel (0) target = $region9
    $region8: #{_lambda_.15} parent=1 // pred_region
      %s24 = ssub.s32 1024, 1024
      %25 = vsyncadd [#allocation7], %s24
      %s26 = sshll.u32 [#allocation6], 4
      %s27 = int_to_ptr.vmem [resolvable:$true] %s26
      %32 = dma.hbm_to_vmem [thread:$0]  %s1, 1024, %s27, [#allocation7], 64, 64, 4
    $region9: #{_lambda_.15} parent=1 // pred_fallthru
      _
    // Predicated region
    $region10: #{_lambda_.15} parent=1 // pred_check
      _
    $region11: #{_lambda_.15} parent=1 // pred_check_branch
      %34 = sbr.rel (0) target = $region13
    $region12: #{_lambda_.15} parent=1 // pred_region
      %s36 = ssub.s32 16, 16
      %37 = vsyncadd [#allocation7], %s36
      %s39 = sshll.u32 [#allocation8], 4
      %s40 = int_to_ptr.vmem [resolvable:$true] %s39
      %42 = dma.hbm_to_vmem [thread:$0]  %s2, 16, %s40, [#allocation7]
    $region13: #{_lambda_.15} parent=1 // pred_fallthru
      _
    // Predicated region
    $region14: #{_lambda_.15} parent=1 // pred_check
      _
    $region15: #{_lambda_.15} parent=1 // pred_check_branch
      %44 = sbr.rel (0) target = $region17
    $region16: #{_lambda_.15} parent=1 // pred_region
      %45 = dma.done [#allocation4], 64
    $region17: #{_lambda_.15} parent=1 // pred_fallthru
      _
    // Predicated region
    $region18: #{_lambda_.15} parent=1 // pred_check
      _
    $region19: #{_lambda_.15} parent=1 // pred_check_branch
      %47 = sbr.rel (0) target = $region21
    $region20: #{_lambda_.15} parent=1 // pred_region
      %48 = dma.done [#allocation7], 1024
    $region21: #{_lambda_.15} parent=1 // pred_fallthru
      _
    // Predicated region
    $region22: #{_lambda_.15} parent=1 // pred_check
      _
    $region23: #{_lambda_.15} parent=1 // pred_check_branch
      %50 = sbr.rel (0) target = $region25
    $region24: #{_lambda_.15} parent=1 // pred_region
      %51 = dma.done [#allocation7], 16
    $region25: #{_lambda_.15} parent=1 // pred_fallthru
      _
    %p53 = scmp.eq.s32.totalorder 0, 0
    // Predicated region
    $region26: #{_lambda_.15} parent=1 // pred_check
      %p54 = pneg %p53
    $region27: #{_lambda_.15} parent=1 // pred_check_branch
      %56 = sbr.rel (%p54) target = $region29
    $region28: #{_lambda_.15} parent=1 // pred_region
      %vm57 = vcmask 261120
      %58 = vst.msk [vmem:[#allocation2] sm:$0xff] %vm57, 0.0
    $region29: #{_lambda_.15} parent=1 // pred_fallthru
      _
    %v59 = vld [vmem:[#allocation2] sm:$0xff]
    %v60 = vld [vmem:[#allocation3] sm:$0xf]
    %v61 = vld [vmem:[#allocation6] sm:$0xf]
    %v62 = vld [vmem:[#allocation6 + $0x4] sm:$0xf]
    %v63 = vld [vmem:[#allocation6 + $0x8] sm:$0xf]
    %v64 = vld [vmem:[#allocation6 + $0xc] sm:$0xf]
    %v65 = vld [vmem:[#allocation6 + $0x10] sm:$0xf]
    %v66 = vld [vmem:[#allocation6 + $0x14] sm:$0xf]
    %v67 = vld [vmem:[#allocation6 + $0x18] sm:$0xf]
    %v68 = vld [vmem:[#allocation6 + $0x1c] sm:$0xf]
    %v69 = vld [vmem:[#allocation6 + $0x20] sm:$0xf]
    %v70 = vld [vmem:[#allocation6 + $0x24] sm:$0xf]
    %v71 = vld [vmem:[#allocation6 + $0x28] sm:$0xf]
    %v72 = vld [vmem:[#allocation6 + $0x2c] sm:$0xf]
    %v73 = vld [vmem:[#allocation6 + $0x30] sm:$0xf]
    %v74 = vld [vmem:[#allocation6 + $0x34] sm:$0xf]
    %v75 = vld [vmem:[#allocation6 + $0x38] sm:$0xf]
    %v76 = vld [vmem:[#allocation6 + $0x3c] sm:$0xf]
    %v93 = vunpack.c.l.b16 %v61
    %v94 = vunpack.c.l.b16 %v62
    %v95 = vunpack.c.l.b16 %v63
    %v96 = vunpack.c.l.b16 %v64
    %v97 = vunpack.c.l.b16 %v65
    %v98 = vunpack.c.l.b16 %v66
    %v99 = vunpack.c.l.b16 %v67
    %v100 = vunpack.c.l.b16 %v68
    %v101 = vunpack.c.l.b16 %v69
    %v102 = vunpack.c.l.b16 %v70
    %v103 = vunpack.c.l.b16 %v71
    %v104 = vunpack.c.l.b16 %v72
    %v105 = vunpack.c.l.b16 %v73
    %v106 = vunpack.c.l.b16 %v74
    %v107 = vunpack.c.l.b16 %v75
    %v108 = vunpack.c.l.b16 %v76
    %v109 = vpack.c.b16 %v94, %v93
    %v110 = vpack.c.b16 %v96, %v95
    %v111 = vpack.c.b16 %v98, %v97
    %v112 = vpack.c.b16 %v100, %v99
    %v113 = vpack.c.b16 %v102, %v101
    %v114 = vpack.c.b16 %v104, %v103
    %v115 = vpack.c.b16 %v106, %v105
    %v116 = vpack.c.b16 %v108, %v107
    %125 = vmatprep.subr.bf16.mxu0 0
    %126 = vmatpush1.bf16.msra.mxu0 %v109
    %127 = vmatprep.subr.bf16.mxu0 0
    %128 = vmatpush1.bf16.msra.mxu0 %v110
    %129 = vmatprep.subr.bf16.mxu0 0
    %130 = vmatpush1.bf16.msra.mxu0 %v111
    %131 = vmatprep.subr.bf16.mxu0 0
    %132 = vmatpush1.bf16.msra.mxu0 %v112
    %133 = vmatprep.subr.bf16.mxu0 0
    %134 = vmatpush1.bf16.msra.mxu0 %v113
    %135 = vmatprep.subr.bf16.mxu0 0
    %136 = vmatpush1.bf16.msra.mxu0 %v114
    %137 = vmatprep.subr.bf16.mxu0 0
    %138 = vmatpush1.bf16.msra.mxu0 %v115
    %139 = vmatprep.subr.bf16.mxu0 0
    %140 = vmatpush1.bf16.msra.mxu0 %v116
    %141 = vmatprep.subr.bf16.mxu0 0
    %142 = vmatpush1.bf16.msra.mxu0 0
    %143 = vmatprep.subr.bf16.mxu0 0
    %144 = vmatpush1.bf16.msra.mxu0 0
    %145 = vmatprep.subr.bf16.mxu0 0
    %146 = vmatpush1.bf16.msra.mxu0 0
    %147 = vmatprep.subr.bf16.mxu0 0
    %148 = vmatpush1.bf16.msra.mxu0 0
    %149 = vmatprep.subr.bf16.mxu0 0
    %150 = vmatpush1.bf16.msra.mxu0 0
    %151 = vmatprep.subr.bf16.mxu0 0
    %152 = vmatpush1.bf16.msra.mxu0 0
    %153 = vmatprep.subr.bf16.mxu0 0
    %154 = vmatpush1.bf16.msra.mxu0 0
    %155 = vmatprep.subr.bf16.mxu0 0
    %156 = vmatpush1.bf16.msra.mxu0 0
    %157 = vmatprep.mubr.bf16.mxu0 0
    %158 = vmatmul.mubr.bf16.gmra.mrb[0].mxu0 %v60
    %v159 = vpop.f32.mrb[0].mxu0
    %v160 = vadd.f32 0.0, %v159
    %v161 = vpop.f32.mrb[0].mxu0
    %v162 = vpop.f32.mrb[0].mxu0
    %v163 = vpop.f32.mrb[0].mxu0
    %164 = vdwg.mxu0
    %v165 = vadd.f32 %v59, %v160
    %vm166 = vcmask 261120
    %167 = vst.msk [vmem:[#allocation2] sm:$0xff] %vm166, %v165
    // Predicated region
    $region30: #{_lambda_.15} parent=1 // pred_check
      %p168 = pneg %p53
    $region31: #{_lambda_.15} parent=1 // pred_check_branch
      %170 = sbr.rel (%p168) target = $region33
    $region32: #{_lambda_.15} parent=1 // pred_region
      %v171 = vld [vmem:[#allocation2] sm:$0xff]
      %v172 = vld [vmem:[#allocation8] sm:$0x1]
      %v174 = vlaneseq
      %v175 = vshrl.u32 %v174, 7
      %v176 = vsub.s32 0, %v175
      %v177 = vrot.slane %v172, %v176
      %v179 = vadd.f32 %v171, %v177
      %v180 = vmul.f32 %v179, %v179
      %v181 = vmul.f32 %v179, %v180
      %v182 = vmul.f32 %v181, 0.044715
      %v183 = vadd.f32 %v179, %v182
      %v184 = vmul.f32 %v183, 0.7978846
      %v185 = vtanh.pop %v184
      %v186 = vadd.f32 %v185, 1.0
      %v187 = vmul.f32 %v186, 0.5
      %v188 = vmul.f32 %v179, %v187
      %v189 = vpack.c.bf16 %v188, %v188
      %vm190 = vcmask 257024
      %191 = vst.msk [vmem:[#allocation9] sm:$0xf] %vm190, %v189
    $region33: #{_lambda_.15} parent=1 // pred_fallthru
      _
    // Predicated region
    $region34: #{_lambda_.15} parent=1 // pred_check
      _
    $region35: #{_lambda_.15} parent=1 // pred_check_branch
      %193 = sbr.rel (0) target = $region37
    $region36: #{_lambda_.15} parent=1 // pred_region
      %s195 = ssub.s32 64, 64
      %196 = vsyncadd [#allocation5], %s195
      %s198 = sshll.u32 [#allocation9], 4
      %s199 = int_to_ptr.vmem [resolvable:$true] %s198
      %201 = dma.vmem_to_hbm [thread:$0]  %s199, 64, %s3, [#allocation5]
    $region37: #{_lambda_.15} parent=1 // pred_fallthru
      _
    // Predicated region
    $region38: #{_lambda_.15} parent=1 // pred_check
      _
    $region39: #{_lambda_.15} parent=1 // pred_check_branch
      %203 = sbr.rel (0) target = $region41
    $region40: #{_lambda_.15} parent=1 // pred_region
      %204 = dma.done [#allocation5], 64
    $region41: #{_lambda_.15} parent=1 // pred_fallthru
      _
    %205 = vsyncpa [#allocation4], 1
    %206 = vsyncpa [#allocation7], 1
    %207 = vsyncpa [#allocation5], 1

// kernel: _lambda_.14
$region0: #{_lambda_.14}
  #allocation0 [shape = 'u32[]', space=smem, size = 0x4, offset = 0x4, fixed_abs, tag = 'smem constant byte address 0x4 - core index']
  #allocation1 [shape = 'u32[144,128]{1,0:T(1,128)}', space=vmem, size = 0x12000, scoped, tag = 'internal scratch']
  #allocation2 [shape = 'f32[32,32]{1,0:T(8,128)}', space=vmem, size = 0x4000, scoped, tag = 'scratch operand']
  %s0 = inlined_call_operand.hbm [shape: bf16[32,128], index: 0, kind: input, shape index: {}]
  %s1 = inlined_call_operand.hbm [shape: bf16[128,32], index: 1, kind: input, shape index: {}]
  %s2 = inlined_call_operand.hbm [shape: f32[1,32], index: 2, kind: input, shape index: {}]
  %s3 = inlined_call_operand.hbm [shape: bf16[32,32], index: 3, kind: output, shape index: {}]
  %s4 = sld [smem:[#allocation0]]
  $region42: #{_lambda_.14} parent=0
    _
  %s6 = ssub.s32 1, %s4
  %s7 = scalar_select 0, %s6, %s4
  $region1: #{_lambda_.14} parent=0
    #allocation3 [shape = 'u8[8192]{0}', space=vmem, size = 0x2000, scoped, tag = 'input window, operand 0, single buffered']
    #allocation4 [shape = 's32[1]{0}', space=sflag, size = 0x4, scoped, tag = 'scoped memory for _lambda_.14']
    #allocation5 [shape = 's32[1]{0}', space=sflag, size = 0x4, scoped, tag = 'scoped memory for _lambda_.14']
    #allocation6 [shape = 'u8[32768]{0}', space=vmem, size = 0x8000, scoped, tag = 'input window, operand 1, single buffered']
    #allocation7 [shape = 's32[1]{0}', space=sflag, size = 0x4, scoped, tag = 'scoped memory for _lambda_.14']
    #allocation8 [shape = 'u8[512]{0}', space=vmem, size = 0x400, scoped, tag = 'input window, operand 2, single buffered']
    #allocation9 [shape = 'u8[8192]{0}', space=vmem, size = 0x2000, scoped, tag = 'output window, operand 0, single buffered']
    %8 = vsyncpa [#allocation4], 0
    %9 = vsyncpa [#allocation7], 0
    %10 = vsyncpa [#allocation5], 0
    // Predicated region
    $region2: #{_lambda_.14} parent=1 // pred_check
      _
    $region3: #{_lambda_.14} parent=1 // pred_check_branch
      %12 = sbr.rel (0) target = $region5
    $region4: #{_lambda_.14} parent=1 // pred_region
      %s14 = ssub.s32 256, 256
      %15 = vsyncadd [#allocation4], %s14
      %s16 = sshll.u32 [#allocation3], 4
      %s17 = int_to_ptr.vmem [resolvable:$true] %s16
      %22 = dma.hbm_to_vmem [thread:$0]  %s0, 256, %s17, [#allocation4], 64, 64, 4
    $region5: #{_lambda_.14} parent=1 // pred_fallthru
      _
    // Predicated region
    $region6: #{_lambda_.14} parent=1 // pred_check
      _
    $region7: #{_lambda_.14} parent=1 // pred_check_branch
      %24 = sbr.rel (0) target = $region9
    $region8: #{_lambda_.14} parent=1 // pred_region
      %s26 = ssub.s32 1024, 1024
      %27 = vsyncadd [#allocation7], %s26
      %s28 = sshll.u32 [#allocation6], 4
      %s29 = int_to_ptr.vmem [resolvable:$true] %s28
      %34 = dma.hbm_to_vmem [thread:$0]  %s1, 1024, %s29, [#allocation7], 64, 64, 4
    $region9: #{_lambda_.14} parent=1 // pred_fallthru
      _
    // Predicated region
    $region10: #{_lambda_.14} parent=1 // pred_check
      _
    $region11: #{_lambda_.14} parent=1 // pred_check_branch
      %36 = sbr.rel (0) target = $region13
    $region12: #{_lambda_.14} parent=1 // pred_region
      %s38 = ssub.s32 16, 16
      %39 = vsyncadd [#allocation7], %s38
      %s41 = sshll.u32 [#allocation8], 4
      %s42 = int_to_ptr.vmem [resolvable:$true] %s41
      %44 = dma.hbm_to_vmem [thread:$0]  %s2, 16, %s42, [#allocation7]
    $region13: #{_lambda_.14} parent=1 // pred_fallthru
      _
    // Predicated region
    $region14: #{_lambda_.14} parent=1 // pred_check
      _
    $region15: #{_lambda_.14} parent=1 // pred_check_branch
      %46 = sbr.rel (0) target = $region17
    $region16: #{_lambda_.14} parent=1 // pred_region
      %47 = dma.done [#allocation4], 256
    $region17: #{_lambda_.14} parent=1 // pred_fallthru
      _
    // Predicated region
    $region18: #{_lambda_.14} parent=1 // pred_check
      _
    $region19: #{_lambda_.14} parent=1 // pred_check_branch
      %49 = sbr.rel (0) target = $region21
    $region20: #{_lambda_.14} parent=1 // pred_region
      %50 = dma.done [#allocation7], 1024
    $region21: #{_lambda_.14} parent=1 // pred_fallthru
      _
    // Predicated region
    $region22: #{_lambda_.14} parent=1 // pred_check
      _
    $region23: #{_lambda_.14} parent=1 // pred_check_branch
      %52 = sbr.rel (0) target = $region25
    $region24: #{_lambda_.14} parent=1 // pred_region
      %53 = dma.done [#allocation7], 16
    $region25: #{_lambda_.14} parent=1 // pred_fallthru
      _
    %p55 = scmp.eq.s32.totalorder 0, 0
    // Predicated region
    $region26: #{_lambda_.14} parent=1 // pred_check
      %p56 = pneg %p55
    $region27: #{_lambda_.14} parent=1 // pred_check_branch
      %58 = sbr.rel (%p56) target = $region29
    $region28: #{_lambda_.14} parent=1 // pred_region
      %vm59 = vcmask 261120
      %60 = vst.msk [vmem:[#allocation2] sm:$0xff] %vm59, 0.0
      %61 = vst.msk [vmem:[#allocation2 + $0x8] sm:$0xff] %vm59, 0.0
      %62 = vst.msk [vmem:[#allocation2 + $0x10] sm:$0xff] %vm59, 0.0
      %63 = vst.msk [vmem:[#allocation2 + $0x18] sm:$0xff] %vm59, 0.0
    $region29: #{_lambda_.14} parent=1 // pred_fallthru
      _
    %v64 = vld [vmem:[#allocation2] sm:$0xff]
    %v65 = vld [vmem:[#allocation2 + $0x8] sm:$0xff]
    %v66 = vld [vmem:[#allocation2 + $0x10] sm:$0xff]
    %v67 = vld [vmem:[#allocation2 + $0x18] sm:$0xff]
    %v68 = vld [vmem:[#allocation3] sm:$0xf]
    %v69 = vld [vmem:[#allocation3 + $0x4] sm:$0xf]
    %v70 = vld [vmem:[#allocation3 + $0x8] sm:$0xf]
    %v71 = vld [vmem:[#allocation3 + $0xc] sm:$0xf]
    %v72 = vld [vmem:[#allocation6] sm:$0xf]
    %v73 = vld [vmem:[#allocation6 + $0x4] sm:$0xf]
    %v74 = vld [vmem:[#allocation6 + $0x8] sm:$0xf]
    %v75 = vld [vmem:[#allocation6 + $0xc] sm:$0xf]
    %v76 = vld [vmem:[#allocation6 + $0x10] sm:$0xf]
    %v77 = vld [vmem:[#allocation6 + $0x14] sm:$0xf]
    %v78 = vld [vmem:[#allocation6 + $0x18] sm:$0xf]
    %v79 = vld [vmem:[#allocation6 + $0x1c] sm:$0xf]
    %v80 = vld [vmem:[#allocation6 + $0x20] sm:$0xf]
    %v81 = vld [vmem:[#allocation6 + $0x24] sm:$0xf]
    %v82 = vld [vmem:[#allocation6 + $0x28] sm:$0xf]
    %v83 = vld [vmem:[#allocation6 + $0x2c] sm:$0xf]
    %v84 = vld [vmem:[#allocation6 + $0x30] sm:$0xf]
    %v85 = vld [vmem:[#allocation6 + $0x34] sm:$0xf]
    %v86 = vld [vmem:[#allocation6 + $0x38] sm:$0xf]
    %v87 = vld [vmem:[#allocation6 + $0x3c] sm:$0xf]
    %v92 = vunpack.c.l.b16 %v68
    %v93 = vunpack.c.l.b16 %v69
    %v94 = vunpack.c.l.b16 %v70
    %v95 = vunpack.c.l.b16 %v71
    %v96 = vpack.c.b16 %v93, %v92
    %v97 = vpack.c.b16 %v95, %v94
    %v116 = vunpack.c.l.b16 %v72
    %v117 = vunpack.c.l.b16 %v73
    %v118 = vunpack.c.l.b16 %v74
    %v119 = vunpack.c.l.b16 %v75
    %v120 = vunpack.c.l.b16 %v76
    %v121 = vunpack.c.l.b16 %v77
    %v122 = vunpack.c.l.b16 %v78
    %v123 = vunpack.c.l.b16 %v79
    %v124 = vunpack.c.l.b16 %v80
    %v125 = vunpack.c.l.b16 %v81
    %v126 = vunpack.c.l.b16 %v82
    %v127 = vunpack.c.l.b16 %v83
    %v128 = vunpack.c.l.b16 %v84
    %v129 = vunpack.c.l.b16 %v85
    %v130 = vunpack.c.l.b16 %v86
    %v131 = vunpack.c.l.b16 %v87
    %v132 = vpack.c.b16 %v117, %v116
    %v133 = vpack.c.b16 %v119, %v118
    %v134 = vpack.c.b16 %v121, %v120
    %v135 = vpack.c.b16 %v123, %v122
    %v136 = vpack.c.b16 %v125, %v124
    %v137 = vpack.c.b16 %v127, %v126
    %v138 = vpack.c.b16 %v129, %v128
    %v139 = vpack.c.b16 %v131, %v130
    %148 = vmatprep.subr.bf16.mxu0 0
    %149 = vmatpush1.bf16.msra.mxu0 %v132
    %150 = vmatprep.subr.bf16.mxu0 0
    %151 = vmatpush1.bf16.msra.mxu0 %v133
    %152 = vmatprep.subr.bf16.mxu0 0
    %153 = vmatpush1.bf16.msra.mxu0 %v134
    %154 = vmatprep.subr.bf16.mxu0 0
    %155 = vmatpush1.bf16.msra.mxu0 %v135
    %156 = vmatprep.subr.bf16.mxu0 0
    %157 = vmatpush1.bf16.msra.mxu0 %v136
    %158 = vmatprep.subr.bf16.mxu0 0
    %159 = vmatpush1.bf16.msra.mxu0 %v137
    %160 = vmatprep.subr.bf16.mxu0 0
    %161 = vmatpush1.bf16.msra.mxu0 %v138
    %162 = vmatprep.subr.bf16.mxu0 0
    %163 = vmatpush1.bf16.msra.mxu0 %v139
    %164 = vmatprep.subr.bf16.mxu0 0
    %165 = vmatpush1.bf16.msra.mxu0 0
    %166 = vmatprep.subr.bf16.mxu0 0
    %167 = vmatpush1.bf16.msra.mxu0 0
    %168 = vmatprep.subr.bf16.mxu0 0
    %169 = vmatpush1.bf16.msra.mxu0 0
    %170 = vmatprep.subr.bf16.mxu0 0
    %171 = vmatpush1.bf16.msra.mxu0 0
    %172 = vmatprep.subr.bf16.mxu0 0
    %173 = vmatpush1.bf16.msra.mxu0 0
    %174 = vmatprep.subr.bf16.mxu0 0
    %175 = vmatpush1.bf16.msra.mxu0 0
    %176 = vmatprep.subr.bf16.mxu0 0
    %177 = vmatpush1.bf16.msra.mxu0 0
    %178 = vmatprep.subr.bf16.mxu0 0
    %179 = vmatpush1.bf16.msra.mxu0 0
    %180 = vmatprep.mubr.bf16.mxu0 0
    %181 = vmatmul.mubr.bf16.gmra.mrb[0].mxu0 %v96
    %v182 = vpop.f32.mrb[0].mxu0
    %v183 = vadd.f32 0.0, %v182
    %v184 = vpop.f32.mrb[0].mxu0
    %v185 = vpop.f32.mrb[0].mxu0
    %v186 = vadd.f32 0.0, %v185
    %v187 = vpop.f32.mrb[0].mxu0
    %188 = vmatprep.mubr.bf16.mxu0 0
    %189 = vmatmul.mubr.bf16.gmra.mrb[0].mxu0 %v97
    %v190 = vpop.f32.mrb[0].mxu0
    %v191 = vadd.f32 0.0, %v190
    %v192 = vpop.f32.mrb[0].mxu0
    %v193 = vpop.f32.mrb[0].mxu0
    %v194 = vadd.f32 0.0, %v193
    %v195 = vpop.f32.mrb[0].mxu0
    %196 = vdwg.mxu0
    %v197 = vadd.f32 %v64, %v183
    %v198 = vadd.f32 %v65, %v186
    %v199 = vadd.f32 %v66, %v191
    %v200 = vadd.f32 %v67, %v194
    %vm201 = vcmask 261120
    %202 = vst.msk [vmem:[#allocation2] sm:$0xff] %vm201, %v197
    %203 = vst.msk [vmem:[#allocation2 + $0x8] sm:$0xff] %vm201, %v198
    %204 = vst.msk [vmem:[#allocation2 + $0x10] sm:$0xff] %vm201, %v199
    %205 = vst.msk [vmem:[#allocation2 + $0x18] sm:$0xff] %vm201, %v200
    // Predicated region
    $region30: #{_lambda_.14} parent=1 // pred_check
      %p206 = pneg %p55
    $region31: #{_lambda_.14} parent=1 // pred_check_branch
      %208 = sbr.rel (%p206) target = $region33
    $region32: #{_lambda_.14} parent=1 // pred_region
      %v209 = vld [vmem:[#allocation2] sm:$0xff]
      %v210 = vld [vmem:[#allocation2 + $0x8] sm:$0xff]
      %v211 = vld [vmem:[#allocation2 + $0x10] sm:$0xff]
      %v212 = vld [vmem:[#allocation2 + $0x18] sm:$0xff]
      %v213 = vld [vmem:[#allocation8] sm:$0x1]
      %v215 = vlaneseq
      %v216 = vshrl.u32 %v215, 7
      %v217 = vsub.s32 0, %v216
      %v218 = vrot.slane %v213, %v217
      %v220 = vadd.f32 %v209, %v218
      %v221 = vadd.f32 %v210, %v218
      %v222 = vadd.f32 %v211, %v218
      %v223 = vadd.f32 %v212, %v218
      %v224 = vmul.f32 %v220, %v220
      %v225 = vmul.f32 %v221, %v221
      %v226 = vmul.f32 %v222, %v222
      %v227 = vmul.f32 %v223, %v223
      %v228 = vmul.f32 %v220, %v224
      %v229 = vmul.f32 %v221, %v225
      %v230 = vmul.f32 %v222, %v226
      %v231 = vmul.f32 %v223, %v227
      %v232 = vmul.f32 %v228, 0.044715
      %v233 = vmul.f32 %v229, 0.044715
      %v234 = vmul.f32 %v230, 0.044715
      %v235 = vmul.f32 %v231, 0.044715
      %v236 = vadd.f32 %v220, %v232
      %v237 = vadd.f32 %v221, %v233
      %v238 = vadd.f32 %v222, %v234
      %v239 = vadd.f32 %v223, %v235
      %v240 = vmul.f32 %v236, 0.7978846
      %v241 = vmul.f32 %v237, 0.7978846
      %v242 = vmul.f32 %v238, 0.7978846
      %v243 = vmul.f32 %v239, 0.7978846
      %v244 = vtanh.pop %v240
      %v245 = vtanh.pop %v241
      %v246 = vtanh.pop %v242
      %v247 = vtanh.pop %v243
      %v248 = vadd.f32 %v244, 1.0
      %v249 = vadd.f32 %v245, 1.0
      %v250 = vadd.f32 %v246, 1.0
      %v251 = vadd.f32 %v247, 1.0
      %v252 = vmul.f32 %v248, 0.5
      %v253 = vmul.f32 %v249, 0.5
      %v254 = vmul.f32 %v250, 0.5
      %v255 = vmul.f32 %v251, 0.5
      %v256 = vmul.f32 %v220, %v252
      %v257 = vmul.f32 %v221, %v253
      %v258 = vmul.f32 %v222, %v254
      %v259 = vmul.f32 %v223, %v255
      %v260 = vpack.c.bf16 %v257, %v256
      %v261 = vpack.c.bf16 %v259, %v258
      %v264 = vunpack.c.l.b16 %v260
      %v265 = vunpack.c.h.b16 %v260
      %v266 = vunpack.c.l.b16 %v261
      %v267 = vunpack.c.h.b16 %v261
      %v268 = vpack.c.b16 %v264, %v264
      %v269 = vpack.c.b16 %v265, %v265
      %v270 = vpack.c.b16 %v266, %v266
      %v271 = vpack.c.b16 %v267, %v267
      %vm276 = vcmask 257024
      %277 = vst.msk [vmem:[#allocation9] sm:$0xf] %vm276, %v268
      %278 = vst.msk [vmem:[#allocation9 + $0x4] sm:$0xf] %vm276, %v269
      %279 = vst.msk [vmem:[#allocation9 + $0x8] sm:$0xf] %vm276, %v270
      %280 = vst.msk [vmem:[#allocation9 + $0xc] sm:$0xf] %vm276, %v271
    $region33: #{_lambda_.14} parent=1 // pred_fallthru
      _
    // Predicated region
    $region34: #{_lambda_.14} parent=1 // pred_check
      _
    $region35: #{_lambda_.14} parent=1 // pred_check_branch
      %282 = sbr.rel (0) target = $region37
    $region36: #{_lambda_.14} parent=1 // pred_region
      %s284 = ssub.s32 256, 256
      %285 = vsyncadd [#allocation5], %s284
      %s286 = sshll.u32 [#allocation9], 4
      %s287 = int_to_ptr.vmem [resolvable:$true] %s286
      %292 = dma.vmem_to_hbm [thread:$0]  %s287, 256, %s3, [#allocation5], 64, 64, 4
    $region37: #{_lambda_.14} parent=1 // pred_fallthru
      _
    // Predicated region
    $region38: #{_lambda_.14} parent=1 // pred_check
      _
    $region39: #{_lambda_.14} parent=1 // pred_check_branch
      %294 = sbr.rel (0) target = $region41
    $region40: #{_lambda_.14} parent=1 // pred_region
      %295 = dma.done [#allocation5], 256
    $region41: #{_lambda_.14} parent=1 // pred_fallthru
      _
    %296 = vsyncpa [#allocation4], 1
    %297 = vsyncpa [#allocation7], 1
    %298 = vsyncpa [#allocation5], 1

// kernel: _lambda_.16
$region0: #{_lambda_.16}
  #allocation0 [shape = 'u32[]', space=smem, size = 0x4, offset = 0x4, fixed_abs, tag = 'smem constant byte address 0x4 - core index']
  #allocation1 [shape = 'u32[144,128]{1,0:T(1,128)}', space=vmem, size = 0x12000, scoped, tag = 'internal scratch']
  %s0 = inlined_call_operand.hbm [shape: bf16[16,32], index: 0, kind: input, shape index: {}]
  %s1 = inlined_call_operand.hbm [shape: f32[1,32], index: 1, kind: input, shape index: {}]
  %s2 = inlined_call_operand.hbm [shape: f32[1,32], index: 2, kind: input, shape index: {}]
  %s3 = inlined_call_operand.hbm [shape: bf16[32,32], index: 3, kind: input, shape index: {}]
  %s4 = inlined_call_operand.hbm [shape: f32[1,32], index: 4, kind: input, shape index: {}]
  %s5 = inlined_call_operand.hbm [shape: bf16[32,32], index: 5, kind: input, shape index: {}]
  %s6 = inlined_call_operand.hbm [shape: f32[1,32], index: 6, kind: input, shape index: {}]
  %s7 = inlined_call_operand.hbm [shape: bf16[32,32], index: 7, kind: input, shape index: {}]
  %s8 = inlined_call_operand.hbm [shape: f32[1,32], index: 8, kind: input, shape index: {}]
  %s9 = inlined_call_operand.hbm [shape: bf16[16,32], index: 9, kind: output, shape index: {0}]
  %s10 = inlined_call_operand.hbm [shape: bf16[16,32], index: 10, kind: output, shape index: {1}]
  %s11 = inlined_call_operand.hbm [shape: bf16[16,32], index: 11, kind: output, shape index: {2}]
  %12 = xla_tuple %s9, %s10, %s11
  %s13 = sld [smem:[#allocation0]]
  $region98: #{_lambda_.16} parent=0
    _
  %s15 = ssub.s32 1, %s13
  %s16 = scalar_select 0, %s15, %s13
  $region1: #{_lambda_.16} parent=0
    #allocation2 [shape = 'u8[4096]{0}', space=vmem, size = 0x1000, scoped, tag = 'input window, operand 0, single buffered']
    #allocation3 [shape = 's32[1]{0}', space=sflag, size = 0x4, scoped, tag = 'scoped memory for _lambda_.16']
    #allocation4 [shape = 's32[1]{0}', space=sflag, size = 0x4, scoped, tag = 'scoped memory for _lambda_.16']
    #allocation5 [shape = 'u8[512]{0}', space=vmem, size = 0x400, scoped, tag = 'input window, operand 1, single buffered']
    #allocation6 [shape = 's32[1]{0}', space=sflag, size = 0x4, scoped, tag = 'scoped memory for _lambda_.16']
    #allocation7 [shape = 'u8[512]{0}', space=vmem, size = 0x400, scoped, tag = 'input window, operand 2, single buffered']
    #allocation8 [shape = 'u8[8192]{0}', space=vmem, size = 0x2000, scoped, tag = 'input window, operand 3, single buffered']
    #allocation9 [shape = 's32[1]{0}', space=sflag, size = 0x4, scoped, tag = 'scoped memory for _lambda_.16']
    #allocation10 [shape = 'u8[512]{0}', space=vmem, size = 0x400, scoped, tag = 'input window, operand 4, single buffered']
    #allocation11 [shape = 'u8[8192]{0}', space=vmem, size = 0x2000, scoped, tag = 'input window, operand 5, single buffered']
    #allocation12 [shape = 's32[1]{0}', space=sflag, size = 0x4, scoped, tag = 'scoped memory for _lambda_.16']
    #allocation13 [shape = 'u8[512]{0}', space=vmem, size = 0x400, scoped, tag = 'input window, operand 6, single buffered']
    #allocation14 [shape = 'u8[8192]{0}', space=vmem, size = 0x2000, scoped, tag = 'input window, operand 7, single buffered']
    #allocation15 [shape = 's32[1]{0}', space=sflag, size = 0x4, scoped, tag = 'scoped memory for _lambda_.16']
    #allocation16 [shape = 'u8[512]{0}', space=vmem, size = 0x400, scoped, tag = 'input window, operand 8, single buffered']
    #allocation17 [shape = 'u8[4096]{0}', space=vmem, size = 0x1000, scoped, tag = 'output window, operand 0, single buffered']
    #allocation18 [shape = 'u8[4096]{0}', space=vmem, size = 0x1000, scoped, tag = 'output window, operand 1, single buffered']
    #allocation19 [shape = 's32[1]{0}', space=sflag, size = 0x4, scoped, tag = 'scoped memory for _lambda_.16']
    #allocation20 [shape = 'u8[4096]{0}', space=vmem, size = 0x1000, scoped, tag = 'output window, operand 2, single buffered']
    %17 = vsyncpa [#allocation3], 0
    %18 = vsyncpa [#allocation6], 0
    %19 = vsyncpa [#allocation9], 0
    %20 = vsyncpa [#allocation12], 0
    %21 = vsyncpa [#allocation15], 0
    %22 = vsyncpa [#allocation4], 0
    %23 = vsyncpa [#allocation19], 0
    // Predicated region
    $region2: #{_lambda_.16} parent=1 // pred_check
      _
    $region3: #{_lambda_.16} parent=1 // pred_check_branch
      %25 = sbr.rel (0) target = $region5
    $region4: #{_lambda_.16} parent=1 // pred_region
      %s27 = ssub.s32 128, 128
      %28 = vsyncadd [#allocation3], %s27
      %s29 = sshll.u32 [#allocation2], 4
      %s30 = int_to_ptr.vmem [resolvable:$true] %s29
      %35 = dma.hbm_to_vmem [thread:$0]  %s0, 128, %s30, [#allocation3], 64, 64, 4
    $region5: #{_lambda_.16} parent=1 // pred_fallthru
      _
    // Predicated region
    $region6: #{_lambda_.16} parent=1 // pred_check
      _
    $region7: #{_lambda_.16} parent=1 // pred_check_branch
      %37 = sbr.rel (0) target = $region9
    $region8: #{_lambda_.16} parent=1 // pred_region
      %s39 = ssub.s32 16, 16
      %40 = vsyncadd [#allocation6], %s39
      %s42 = sshll.u32 [#allocation5], 4
      %s43 = int_to_ptr.vmem [resolvable:$true] %s42
      %45 = dma.hbm_to_vmem [thread:$0]  %s1, 16, %s43, [#allocation6]
    $region9: #{_lambda_.16} parent=1 // pred_fallthru
      _
    // Predicated region
    $region10: #{_lambda_.16} parent=1 // pred_check
      _
    $region11: #{_lambda_.16} parent=1 // pred_check_branch
      %47 = sbr.rel (0) target = $region13
    $region12: #{_lambda_.16} parent=1 // pred_region
      %s49 = ssub.s32 16, 16
      %50 = vsyncadd [#allocation6], %s49
      %s52 = sshll.u32 [#allocation7], 4
      %s53 = int_to_ptr.vmem [resolvable:$true] %s52
      %55 = dma.hbm_to_vmem [thread:$0]  %s2, 16, %s53, [#allocation6]
    $region13: #{_lambda_.16} parent=1 // pred_fallthru
      _
    // Predicated region
    $region14: #{_lambda_.16} parent=1 // pred_check
      _
    $region15: #{_lambda_.16} parent=1 // pred_check_branch
      %57 = sbr.rel (0) target = $region17
    $region16: #{_lambda_.16} parent=1 // pred_region
      %s59 = ssub.s32 256, 256
      %60 = vsyncadd [#allocation9], %s59
      %s61 = sshll.u32 [#allocation8], 4
      %s62 = int_to_ptr.vmem [resolvable:$true] %s61
      %67 = dma.hbm_to_vmem [thread:$0]  %s3, 256, %s62, [#allocation9], 64, 64, 4
    $region17: #{_lambda_.16} parent=1 // pred_fallthru
      _
    // Predicated region
    $region18: #{_lambda_.16} parent=1 // pred_check
      _
    $region19: #{_lambda_.16} parent=1 // pred_check_branch
      %69 = sbr.rel (0) target = $region21
    $region20: #{_lambda_.16} parent=1 // pred_region
      %s71 = ssub.s32 16, 16
      %72 = vsyncadd [#allocation9], %s71
      %s74 = sshll.u32 [#allocation10], 4
      %s75 = int_to_ptr.vmem [resolvable:$true] %s74
      %77 = dma.hbm_to_vmem [thread:$0]  %s4, 16, %s75, [#allocation9]
    $region21: #{_lambda_.16} parent=1 // pred_fallthru
      _
    // Predicated region
    $region22: #{_lambda_.16} parent=1 // pred_check
      _
    $region23: #{_lambda_.16} parent=1 // pred_check_branch
      %79 = sbr.rel (0) target = $region25
    $region24: #{_lambda_.16} parent=1 // pred_region
      %s81 = ssub.s32 256, 256
      %82 = vsyncadd [#allocation12], %s81
      %s83 = sshll.u32 [#allocation11], 4
      %s84 = int_to_ptr.vmem [resolvable:$true] %s83
      %89 = dma.hbm_to_vmem [thread:$0]  %s5, 256, %s84, [#allocation12], 64, 64, 4
    $region25: #{_lambda_.16} parent=1 // pred_fallthru
      _
    // Predicated region
    $region26: #{_lambda_.16} parent=1 // pred_check
      _
    $region27: #{_lambda_.16} parent=1 // pred_check_branch
      %91 = sbr.rel (0) target = $region29
    $region28: #{_lambda_.16} parent=1 // pred_region
      %s93 = ssub.s32 16, 16
      %94 = vsyncadd [#allocation12], %s93
      %s96 = sshll.u32 [#allocation13], 4
      %s97 = int_to_ptr.vmem [resolvable:$true] %s96
      %99 = dma.hbm_to_vmem [thread:$0]  %s6, 16, %s97, [#allocation12]
    $region29: #{_lambda_.16} parent=1 // pred_fallthru
      _
    // Predicated region
    $region30: #{_lambda_.16} parent=1 // pred_check
      _
    $region31: #{_lambda_.16} parent=1 // pred_check_branch
      %101 = sbr.rel (0) target = $region33
    $region32: #{_lambda_.16} parent=1 // pred_region
      %s103 = ssub.s32 256, 256
      %104 = vsyncadd [#allocation15], %s103
      %s105 = sshll.u32 [#allocation14], 4
      %s106 = int_to_ptr.vmem [resolvable:$true] %s105
      %111 = dma.hbm_to_vmem [thread:$0]  %s7, 256, %s106, [#allocation15], 64, 64, 4
    $region33: #{_lambda_.16} parent=1 // pred_fallthru
      _
    // Predicated region
    $region34: #{_lambda_.16} parent=1 // pred_check
      _
    $region35: #{_lambda_.16} parent=1 // pred_check_branch
      %113 = sbr.rel (0) target = $region37
    $region36: #{_lambda_.16} parent=1 // pred_region
      %s115 = ssub.s32 16, 16
      %116 = vsyncadd [#allocation15], %s115
      %s118 = sshll.u32 [#allocation16], 4
      %s119 = int_to_ptr.vmem [resolvable:$true] %s118
      %121 = dma.hbm_to_vmem [thread:$0]  %s8, 16, %s119, [#allocation15]
    $region37: #{_lambda_.16} parent=1 // pred_fallthru
      _
    // Predicated region
    $region38: #{_lambda_.16} parent=1 // pred_check
      _
    $region39: #{_lambda_.16} parent=1 // pred_check_branch
      %123 = sbr.rel (0) target = $region41
    $region40: #{_lambda_.16} parent=1 // pred_region
      %124 = dma.done [#allocation3], 128
    $region41: #{_lambda_.16} parent=1 // pred_fallthru
      _
    // Predicated region
    $region42: #{_lambda_.16} parent=1 // pred_check
      _
    $region43: #{_lambda_.16} parent=1 // pred_check_branch
      %126 = sbr.rel (0) target = $region45
    $region44: #{_lambda_.16} parent=1 // pred_region
      %127 = dma.done [#allocation6], 16
    $region45: #{_lambda_.16} parent=1 // pred_fallthru
      _
    // Predicated region
    $region46: #{_lambda_.16} parent=1 // pred_check
      _
    $region47: #{_lambda_.16} parent=1 // pred_check_branch
      %129 = sbr.rel (0) target = $region49
    $region48: #{_lambda_.16} parent=1 // pred_region
      %130 = dma.done [#allocation6], 16
    $region49: #{_lambda_.16} parent=1 // pred_fallthru
      _
    // Predicated region
    $region50: #{_lambda_.16} parent=1 // pred_check
      _
    $region51: #{_lambda_.16} parent=1 // pred_check_branch
      %132 = sbr.rel (0) target = $region53
    $region52: #{_lambda_.16} parent=1 // pred_region
      %133 = dma.done [#allocation9], 256
    $region53: #{_lambda_.16} parent=1 // pred_fallthru
      _
    // Predicated region
    $region54: #{_lambda_.16} parent=1 // pred_check
      _
    $region55: #{_lambda_.16} parent=1 // pred_check_branch
      %135 = sbr.rel (0) target = $region57
    $region56: #{_lambda_.16} parent=1 // pred_region
      %136 = dma.done [#allocation9], 16
    $region57: #{_lambda_.16} parent=1 // pred_fallthru
      _
    // Predicated region
    $region58: #{_lambda_.16} parent=1 // pred_check
      _
    $region59: #{_lambda_.16} parent=1 // pred_check_branch
      %138 = sbr.rel (0) target = $region61
    $region60: #{_lambda_.16} parent=1 // pred_region
      %139 = dma.done [#allocation12], 256
    $region61: #{_lambda_.16} parent=1 // pred_fallthru
      _
    // Predicated region
    $region62: #{_lambda_.16} parent=1 // pred_check
      _
    $region63: #{_lambda_.16} parent=1 // pred_check_branch
      %141 = sbr.rel (0) target = $region65
    $region64: #{_lambda_.16} parent=1 // pred_region
      %142 = dma.done [#allocation12], 16
    $region65: #{_lambda_.16} parent=1 // pred_fallthru
      _
    // Predicated region
    $region66: #{_lambda_.16} parent=1 // pred_check
      _
    $region67: #{_lambda_.16} parent=1 // pred_check_branch
      %144 = sbr.rel (0) target = $region69
    $region68: #{_lambda_.16} parent=1 // pred_region
      %145 = dma.done [#allocation15], 256
    $region69: #{_lambda_.16} parent=1 // pred_fallthru
      _
    // Predicated region
    $region70: #{_lambda_.16} parent=1 // pred_check
      _
    $region71: #{_lambda_.16} parent=1 // pred_check_branch
      %147 = sbr.rel (0) target = $region73
    $region72: #{_lambda_.16} parent=1 // pred_region
      %148 = dma.done [#allocation15], 16
    $region73: #{_lambda_.16} parent=1 // pred_fallthru
      _
    %v150 = vld [vmem:[#allocation2] sm:$0xf]
    %v151 = vld [vmem:[#allocation2 + $0x4] sm:$0xf]
    %v152 = vunpack.c.l.bf16 %v150
    %v153 = vunpack.c.l.bf16 %v151
    %vm154 = vcmask 261120
    %v155 = vsel %vm154, %v152, 0.0
    %156 = vadd.xlane.f32.xlu0 %v155
    %v157 = vpop.xlane.xlu0 %156
    %v158 = vsel %vm154, %v153, 0.0
    %159 = vadd.xlane.f32.xlu0 %v158
    %v160 = vpop.xlane.xlu0 %159
    %v161 = vrcp.pop 32.0
    %v162 = vmul.f32 %v157, %v161
    %v163 = vmul.f32 %v160, %v161
    %v164 = vsub.f32 %v152, %v162
    %v165 = vsub.f32 %v153, %v163
    %v166 = vmul.f32 %v164, %v164
    %v167 = vmul.f32 %v165, %v165
    %v168 = vsel %vm154, %v166, 0.0
    %169 = vadd.xlane.f32.xlu0 %v168
    %v170 = vpop.xlane.xlu0 %169
    %v171 = vsel %vm154, %v167, 0.0
    %172 = vadd.xlane.f32.xlu0 %v171
    %v173 = vpop.xlane.xlu0 %172
    %v174 = vmul.f32 %v170, %v161
    %v175 = vmul.f32 %v173, %v161
    %v176 = vadd.f32 %v174, 1e-05
    %v177 = vadd.f32 %v175, 1e-05
    %v178 = vrsqrt.pop %v176
    %v179 = vrsqrt.pop %v177
    %v180 = vmul.f32 %v164, %v178
    %v181 = vmul.f32 %v165, %v179
    %v182 = vld [vmem:[#allocation5] sm:$0x1]
    %v184 = vlaneseq
    %v185 = vshrl.u32 %v184, 7
    %v186 = vsub.s32 0, %v185
    %v187 = vrot.slane %v182, %v186
    %v189 = vmul.f32 %v180, %v187
    %v190 = vmul.f32 %v181, %v187
    %v191 = vld [vmem:[#allocation7] sm:$0x1]
    %v193 = vlaneseq
    %v194 = vshrl.u32 %v193, 7
    %v195 = vsub.s32 0, %v194
    %v196 = vrot.slane %v191, %v195
    %v198 = vadd.f32 %v189, %v196
    %v199 = vadd.f32 %v190, %v196
    %v200 = vpack.c.bf16 %v199, %v198
    %v201 = vld [vmem:[#allocation8] sm:$0xf]
    %v202 = vld [vmem:[#allocation8 + $0x4] sm:$0xf]
    %v203 = vld [vmem:[#allocation8 + $0x8] sm:$0xf]
    %v204 = vld [vmem:[#allocation8 + $0xc] sm:$0xf]
    %v205 = vld [vmem:[#allocation10] sm:$0x1]
    %v207 = vlaneseq
    %v208 = vshrl.u32 %v207, 7
    %v209 = vsub.s32 0, %v208
    %v210 = vrot.slane %v205, %v209
    %v216 = vunpack.c.l.b16 %v201
    %v217 = vunpack.c.l.b16 %v202
    %v218 = vunpack.c.l.b16 %v203
    %v219 = vunpack.c.l.b16 %v204
    %v220 = vpack.c.b16 %v217, %v216
    %v221 = vpack.c.b16 %v219, %v218
    %v225 = vsel %vm154, %v200, 0
    %227 = vmatprep.subr.bf16.mxu0 0
    %228 = vmatpush1.bf16.msra.mxu0 %v220
    %229 = vmatprep.subr.bf16.mxu0 0
    %230 = vmatpush1.bf16.msra.mxu0 %v221
    %231 = vmatprep.subr.bf16.mxu0 0
    %232 = vmatpush1.bf16.msra.mxu0 0
    %233 = vmatprep.subr.bf16.mxu0 0
    %234 = vmatpush1.bf16.msra.mxu0 0
    %235 = vmatprep.subr.bf16.mxu0 0
    %236 = vmatpush1.bf16.msra.mxu0 0
    %237 = vmatprep.subr.bf16.mxu0 0
    %238 = vmatpush1.bf16.msra.mxu0 0
    %239 = vmatprep.subr.bf16.mxu0 0
    %240 = vmatpush1.bf16.msra.mxu0 0
    %241 = vmatprep.subr.bf16.mxu0 0
    %242 = vmatpush1.bf16.msra.mxu0 0
    %243 = vmatprep.subr.bf16.mxu0 0
    %244 = vmatpush1.bf16.msra.mxu0 0
    %245 = vmatprep.subr.bf16.mxu0 0
    %246 = vmatpush1.bf16.msra.mxu0 0
    %247 = vmatprep.subr.bf16.mxu0 0
    %248 = vmatpush1.bf16.msra.mxu0 0
    %249 = vmatprep.subr.bf16.mxu0 0
    %250 = vmatpush1.bf16.msra.mxu0 0
    %251 = vmatprep.subr.bf16.mxu0 0
    %252 = vmatpush1.bf16.msra.mxu0 0
    %253 = vmatprep.subr.bf16.mxu0 0
    %254 = vmatpush1.bf16.msra.mxu0 0
    %255 = vmatprep.subr.bf16.mxu0 0
    %256 = vmatpush1.bf16.msra.mxu0 0
    %257 = vmatprep.subr.bf16.mxu0 0
    %258 = vmatpush1.bf16.msra.mxu0 0
    %259 = vmatprep.mubr.bf16.mxu0 0
    %260 = vmatmul.mubr.bf16.gmra.mrb[0].mxu0 %v225
    %v261 = vpop.f32.mrb[0].mxu0
    %v262 = vadd.f32 %v210, %v261
    %v263 = vpop.f32.mrb[0].mxu0
    %v264 = vpop.f32.mrb[0].mxu0
    %v265 = vadd.f32 %v210, %v264
    %v266 = vpop.f32.mrb[0].mxu0
    %267 = vdwg.mxu0
    %v268 = vld [vmem:[#allocation11] sm:$0xf]
    %v269 = vld [vmem:[#allocation11 + $0x4] sm:$0xf]
    %v270 = vld [vmem:[#allocation11 + $0x8] sm:$0xf]
    %v271 = vld [vmem:[#allocation11 + $0xc] sm:$0xf]
    %v272 = vld [vmem:[#allocation13] sm:$0x1]
    %v274 = vlaneseq
    %v275 = vshrl.u32 %v274, 7
    %v276 = vsub.s32 0, %v275
    %v277 = vrot.slane %v272, %v276
    %v283 = vunpack.c.l.b16 %v268
    %v284 = vunpack.c.l.b16 %v269
    %v285 = vunpack.c.l.b16 %v270
    %v286 = vunpack.c.l.b16 %v271
    %v287 = vpack.c.b16 %v284, %v283
    %v288 = vpack.c.b16 %v286, %v285
    %291 = vmatprep.subr.bf16.mxu0 0
    %292 = vmatpush1.bf16.msra.mxu0 %v287
    %293 = vmatprep.subr.bf16.mxu0 0
    %294 = vmatpush1.bf16.msra.mxu0 %v288
    %295 = vmatprep.subr.bf16.mxu0 0
    %296 = vmatpush1.bf16.msra.mxu0 0
    %297 = vmatprep.subr.bf16.mxu0 0
    %298 = vmatpush1.bf16.msra.mxu0 0
    %299 = vmatprep.subr.bf16.mxu0 0
    %300 = vmatpush1.bf16.msra.mxu0 0
    %301 = vmatprep.subr.bf16.mxu0 0
    %302 = vmatpush1.bf16.msra.mxu0 0
    %303 = vmatprep.subr.bf16.mxu0 0
    %304 = vmatpush1.bf16.msra.mxu0 0
    %305 = vmatprep.subr.bf16.mxu0 0
    %306 = vmatpush1.bf16.msra.mxu0 0
    %307 = vmatprep.subr.bf16.mxu0 0
    %308 = vmatpush1.bf16.msra.mxu0 0
    %309 = vmatprep.subr.bf16.mxu0 0
    %310 = vmatpush1.bf16.msra.mxu0 0
    %311 = vmatprep.subr.bf16.mxu0 0
    %312 = vmatpush1.bf16.msra.mxu0 0
    %313 = vmatprep.subr.bf16.mxu0 0
    %314 = vmatpush1.bf16.msra.mxu0 0
    %315 = vmatprep.subr.bf16.mxu0 0
    %316 = vmatpush1.bf16.msra.mxu0 0
    %317 = vmatprep.subr.bf16.mxu0 0
    %318 = vmatpush1.bf16.msra.mxu0 0
    %319 = vmatprep.subr.bf16.mxu0 0
    %320 = vmatpush1.bf16.msra.mxu0 0
    %321 = vmatprep.subr.bf16.mxu0 0
    %322 = vmatpush1.bf16.msra.mxu0 0
    %323 = vmatprep.mubr.bf16.mxu0 0
    %324 = vmatmul.mubr.bf16.gmra.mrb[0].mxu0 %v225
    %v325 = vpop.f32.mrb[0].mxu0
    %v326 = vadd.f32 %v277, %v325
    %v327 = vpop.f32.mrb[0].mxu0
    %v328 = vpop.f32.mrb[0].mxu0
    %v329 = vadd.f32 %v277, %v328
    %v330 = vpop.f32.mrb[0].mxu0
    %331 = vdwg.mxu0
    %v332 = vld [vmem:[#allocation14] sm:$0xf]
    %v333 = vld [vmem:[#allocation14 + $0x4] sm:$0xf]
    %v334 = vld [vmem:[#allocation14 + $0x8] sm:$0xf]
    %v335 = vld [vmem:[#allocation14 + $0xc] sm:$0xf]
    %v336 = vld [vmem:[#allocation16] sm:$0x1]
    %v338 = vlaneseq
    %v339 = vshrl.u32 %v338, 7
    %v340 = vsub.s32 0, %v339
    %v341 = vrot.slane %v336, %v340
    %v347 = vunpack.c.l.b16 %v332
    %v348 = vunpack.c.l.b16 %v333
    %v349 = vunpack.c.l.b16 %v334
    %v350 = vunpack.c.l.b16 %v335
    %v351 = vpack.c.b16 %v348, %v347
    %v352 = vpack.c.b16 %v350, %v349
    %355 = vmatprep.subr.bf16.mxu0 0
    %356 = vmatpush1.bf16.msra.mxu0 %v351
    %357 = vmatprep.subr.bf16.mxu0 0
    %358 = vmatpush1.bf16.msra.mxu0 %v352
    %359 = vmatprep.subr.bf16.mxu0 0
    %360 = vmatpush1.bf16.msra.mxu0 0
    %361 = vmatprep.subr.bf16.mxu0 0
    %362 = vmatpush1.bf16.msra.mxu0 0
    %363 = vmatprep.subr.bf16.mxu0 0
    %364 = vmatpush1.bf16.msra.mxu0 0
    %365 = vmatprep.subr.bf16.mxu0 0
    %366 = vmatpush1.bf16.msra.mxu0 0
    %367 = vmatprep.subr.bf16.mxu0 0
    %368 = vmatpush1.bf16.msra.mxu0 0
    %369 = vmatprep.subr.bf16.mxu0 0
    %370 = vmatpush1.bf16.msra.mxu0 0
    %371 = vmatprep.subr.bf16.mxu0 0
    %372 = vmatpush1.bf16.msra.mxu0 0
    %373 = vmatprep.subr.bf16.mxu0 0
    %374 = vmatpush1.bf16.msra.mxu0 0
    %375 = vmatprep.subr.bf16.mxu0 0
    %376 = vmatpush1.bf16.msra.mxu0 0
    %377 = vmatprep.subr.bf16.mxu0 0
    %378 = vmatpush1.bf16.msra.mxu0 0
    %379 = vmatprep.subr.bf16.mxu0 0
    %380 = vmatpush1.bf16.msra.mxu0 0
    %381 = vmatprep.subr.bf16.mxu0 0
    %382 = vmatpush1.bf16.msra.mxu0 0
    %383 = vmatprep.subr.bf16.mxu0 0
    %384 = vmatpush1.bf16.msra.mxu0 0
    %385 = vmatprep.subr.bf16.mxu0 0
    %386 = vmatpush1.bf16.msra.mxu0 0
    %387 = vmatprep.mubr.bf16.mxu0 0
    %388 = vmatmul.mubr.bf16.gmra.mrb[0].mxu0 %v225
    %v389 = vpop.f32.mrb[0].mxu0
    %v390 = vadd.f32 %v341, %v389
    %v391 = vpop.f32.mrb[0].mxu0
    %v392 = vpop.f32.mrb[0].mxu0
    %v393 = vadd.f32 %v341, %v392
    %v394 = vpop.f32.mrb[0].mxu0
    %395 = vdwg.mxu0
    %v396 = vpack.c.bf16 %v265, %v262
    %v398 = vunpack.c.l.b16 %v396
    %v399 = vunpack.c.h.b16 %v396
    %v400 = vpack.c.b16 %v398, %v398
    %v401 = vpack.c.b16 %v399, %v399
    %vm404 = vcmask 257024
    %405 = vst.msk [vmem:[#allocation17] sm:$0xf] %vm404, %v400
    %406 = vst.msk [vmem:[#allocation17 + $0x4] sm:$0xf] %vm404, %v401
    %v407 = vpack.c.bf16 %v329, %v326
    %v409 = vunpack.c.l.b16 %v407
    %v410 = vunpack.c.h.b16 %v407
    %v411 = vpack.c.b16 %v409, %v409
    %v412 = vpack.c.b16 %v410, %v410
    %415 = vst.msk [vmem:[#allocation18] sm:$0xf] %vm404, %v411
    %416 = vst.msk [vmem:[#allocation18 + $0x4] sm:$0xf] %vm404, %v412
    %v417 = vpack.c.bf16 %v393, %v390
    %v419 = vunpack.c.l.b16 %v417
    %v420 = vunpack.c.h.b16 %v417
    %v421 = vpack.c.b16 %v419, %v419
    %v422 = vpack.c.b16 %v420, %v420
    %425 = vst.msk [vmem:[#allocation20] sm:$0xf] %vm404, %v421
    %426 = vst.msk [vmem:[#allocation20 + $0x4] sm:$0xf] %vm404, %v422
    // Predicated region
    $region74: #{_lambda_.16} parent=1 // pred_check
      _
    $region75: #{_lambda_.16} parent=1 // pred_check_branch
      %428 = sbr.rel (0) target = $region77
    $region76: #{_lambda_.16} parent=1 // pred_region
      %s430 = ssub.s32 128, 128
      %431 = vsyncadd [#allocation4], %s430
      %s432 = sshll.u32 [#allocation17], 4
      %s433 = int_to_ptr.vmem [resolvable:$true] %s432
      %438 = dma.vmem_to_hbm [thread:$0]  %s433, 128, %s9, [#allocation4], 64, 64, 4
    $region77: #{_lambda_.16} parent=1 // pred_fallthru
      _
    // Predicated region
    $region78: #{_lambda_.16} parent=1 // pred_check
      _
    $region79: #{_lambda_.16} parent=1 // pred_check_branch
      %440 = sbr.rel (0) target = $region81
    $region80: #{_lambda_.16} parent=1 // pred_region
      %s442 = ssub.s32 128, 128
      %443 = vsyncadd [#allocation19], %s442
      %s444 = sshll.u32 [#allocation18], 4
      %s445 = int_to_ptr.vmem [resolvable:$true] %s444
      %450 = dma.vmem_to_hbm [thread:$0]  %s445, 128, %s10, [#allocation19], 64, 64, 4
    $region81: #{_lambda_.16} parent=1 // pred_fallthru
      _
    // Predicated region
    $region82: #{_lambda_.16} parent=1 // pred_check
      _
    $region83: #{_lambda_.16} parent=1 // pred_check_branch
      %452 = sbr.rel (0) target = $region85
    $region84: #{_lambda_.16} parent=1 // pred_region
      %s454 = ssub.s32 128, 128
      %455 = vsyncadd [#allocation19], %s454
      %s456 = sshll.u32 [#allocation20], 4
      %s457 = int_to_ptr.vmem [resolvable:$true] %s456
      %462 = dma.vmem_to_hbm [thread:$0]  %s457, 128, %s11, [#allocation19], 64, 64, 4
    $region85: #{_lambda_.16} parent=1 // pred_fallthru
      _
    // Predicated region
    $region86: #{_lambda_.16} parent=1 // pred_check
      _
    $region87: #{_lambda_.16} parent=1 // pred_check_branch
      %464 = sbr.rel (0) target = $region89
    $region88: #{_lambda_.16} parent=1 // pred_region
      %465 = dma.done [#allocation4], 128
    $region89: #{_lambda_.16} parent=1 // pred_fallthru
      _
    // Predicated region
    $region90: #{_lambda_.16} parent=1 // pred_check
      _
    $region91: #{_lambda_.16} parent=1 // pred_check_branch
      %467 = sbr.rel (0) target = $region93
    $region92: #{_lambda_.16} parent=1 // pred_region
      %468 = dma.done [#allocation19], 128
    $region93: #{_lambda_.16} parent=1 // pred_fallthru
      _
    // Predicated region
    $region94: #{_lambda_.16} parent=1 // pred_check
      _
    $region95: #{_lambda_.16} parent=1 // pred_check_branch
      %470 = sbr.rel (0) target = $region97
    $region96: #{_lambda_.16} parent=1 // pred_region
      %471 = dma.done [#allocation19], 128
    $region97: #{_lambda_.16} parent=1 // pred_fallthru
      _
    %472 = vsyncpa [#allocation3], 1
    %473 = vsyncpa [#allocation6], 1
    %474 = vsyncpa [#allocation9], 1
    %475 = vsyncpa [#allocation12], 1
    %476 = vsyncpa [#allocation15], 1
    %477 = vsyncpa [#allocation4], 1
    %478 = vsyncpa [#allocation19], 1

// kernel: _lambda_.18
$region0: #{_lambda_.18}
  #allocation0 [shape = 'u32[]', space=smem, size = 0x4, offset = 0x4, fixed_abs, tag = 'smem constant byte address 0x4 - core index']
  #allocation1 [shape = 'u32[144,128]{1,0:T(1,128)}', space=vmem, size = 0x12000, scoped, tag = 'internal scratch']
  %s0 = inlined_call_operand.hbm [shape: bf16[16,32], index: 0, kind: input, shape index: {}]
  %s1 = inlined_call_operand.hbm [shape: f32[1,32], index: 1, kind: input, shape index: {}]
  %s2 = inlined_call_operand.hbm [shape: f32[1,32], index: 2, kind: input, shape index: {}]
  %s3 = inlined_call_operand.hbm [shape: bf16[32,128], index: 3, kind: input, shape index: {}]
  %s4 = inlined_call_operand.hbm [shape: f32[1,128], index: 4, kind: input, shape index: {}]
  %s5 = inlined_call_operand.hbm [shape: bf16[128,32], index: 5, kind: input, shape index: {}]
  %s6 = inlined_call_operand.hbm [shape: f32[1,32], index: 6, kind: input, shape index: {}]
  %s7 = inlined_call_operand.hbm [shape: bf16[16,32], index: 7, kind: output, shape index: {}]
  %s8 = sld [smem:[#allocation0]]
  $region66: #{_lambda_.18} parent=0
    _
  %s10 = ssub.s32 1, %s8
  %s11 = scalar_select 0, %s10, %s8
  $region1: #{_lambda_.18} parent=0
    #allocation2 [shape = 'u8[4096]{0}', space=vmem, size = 0x1000, scoped, tag = 'input window, operand 0, single buffered']
    #allocation3 [shape = 's32[1]{0}', space=sflag, size = 0x4, scoped, tag = 'scoped memory for _lambda_.18']
    #allocation4 [shape = 's32[1]{0}', space=sflag, size = 0x4, scoped, tag = 'scoped memory for _lambda_.18']
    #allocation5 [shape = 'u8[512]{0}', space=vmem, size = 0x400, scoped, tag = 'input window, operand 1, single buffered']
    #allocation6 [shape = 's32[1]{0}', space=sflag, size = 0x4, scoped, tag = 'scoped memory for _lambda_.18']
    #allocation7 [shape = 'u8[512]{0}', space=vmem, size = 0x400, scoped, tag = 'input window, operand 2, single buffered']
    #allocation8 [shape = 'u8[8192]{0}', space=vmem, size = 0x2000, scoped, tag = 'input window, operand 3, single buffered']
    #allocation9 [shape = 's32[1]{0}', space=sflag, size = 0x4, scoped, tag = 'scoped memory for _lambda_.18']
    #allocation10 [shape = 'u8[512]{0}', space=vmem, size = 0x400, scoped, tag = 'input window, operand 4, single buffered']
    #allocation11 [shape = 'u8[32768]{0}', space=vmem, size = 0x8000, scoped, tag = 'input window, operand 5, single buffered']
    #allocation12 [shape = 's32[1]{0}', space=sflag, size = 0x4, scoped, tag = 'scoped memory for _lambda_.18']
    #allocation13 [shape = 'u8[512]{0}', space=vmem, size = 0x400, scoped, tag = 'input window, operand 6, single buffered']
    #allocation14 [shape = 'u8[4096]{0}', space=vmem, size = 0x1000, scoped, tag = 'output window, operand 0, single buffered']
    %12 = vsyncpa [#allocation3], 0
    %13 = vsyncpa [#allocation6], 0
    %14 = vsyncpa [#allocation9], 0
    %15 = vsyncpa [#allocation12], 0
    %16 = vsyncpa [#allocation4], 0
    // Predicated region
    $region2: #{_lambda_.18} parent=1 // pred_check
      _
    $region3: #{_lambda_.18} parent=1 // pred_check_branch
      %18 = sbr.rel (0) target = $region5
    $region4: #{_lambda_.18} parent=1 // pred_region
      %s20 = ssub.s32 128, 128
      %21 = vsyncadd [#allocation3], %s20
      %s22 = sshll.u32 [#allocation2], 4
      %s23 = int_to_ptr.vmem [resolvable:$true] %s22
      %28 = dma.hbm_to_vmem [thread:$0]  %s0, 128, %s23, [#allocation3], 64, 64, 4
    $region5: #{_lambda_.18} parent=1 // pred_fallthru
      _
    // Predicated region
    $region6: #{_lambda_.18} parent=1 // pred_check
      _
    $region7: #{_lambda_.18} parent=1 // pred_check_branch
      %30 = sbr.rel (0) target = $region9
    $region8: #{_lambda_.18} parent=1 // pred_region
      %s32 = ssub.s32 16, 16
      %33 = vsyncadd [#allocation6], %s32
      %s35 = sshll.u32 [#allocation5], 4
      %s36 = int_to_ptr.vmem [resolvable:$true] %s35
      %38 = dma.hbm_to_vmem [thread:$0]  %s1, 16, %s36, [#allocation6]
    $region9: #{_lambda_.18} parent=1 // pred_fallthru
      _
    // Predicated region
    $region10: #{_lambda_.18} parent=1 // pred_check
      _
    $region11: #{_lambda_.18} parent=1 // pred_check_branch
      %40 = sbr.rel (0) target = $region13
    $region12: #{_lambda_.18} parent=1 // pred_region
      %s42 = ssub.s32 16, 16
      %43 = vsyncadd [#allocation6], %s42
      %s45 = sshll.u32 [#allocation7], 4
      %s46 = int_to_ptr.vmem [resolvable:$true] %s45
      %48 = dma.hbm_to_vmem [thread:$0]  %s2, 16, %s46, [#allocation6]
    $region13: #{_lambda_.18} parent=1 // pred_fallthru
      _
    // Predicated region
    $region14: #{_lambda_.18} parent=1 // pred_check
      _
    $region15: #{_lambda_.18} parent=1 // pred_check_branch
      %50 = sbr.rel (0) target = $region17
    $region16: #{_lambda_.18} parent=1 // pred_region
      %s52 = ssub.s32 256, 256
      %53 = vsyncadd [#allocation9], %s52
      %s54 = sshll.u32 [#allocation8], 4
      %s55 = int_to_ptr.vmem [resolvable:$true] %s54
      %60 = dma.hbm_to_vmem [thread:$0]  %s3, 256, %s55, [#allocation9], 64, 64, 4
    $region17: #{_lambda_.18} parent=1 // pred_fallthru
      _
    // Predicated region
    $region18: #{_lambda_.18} parent=1 // pred_check
      _
    $region19: #{_lambda_.18} parent=1 // pred_check_branch
      %62 = sbr.rel (0) target = $region21
    $region20: #{_lambda_.18} parent=1 // pred_region
      %s64 = ssub.s32 16, 16
      %65 = vsyncadd [#allocation9], %s64
      %s67 = sshll.u32 [#allocation10], 4
      %s68 = int_to_ptr.vmem [resolvable:$true] %s67
      %70 = dma.hbm_to_vmem [thread:$0]  %s4, 16, %s68, [#allocation9]
    $region21: #{_lambda_.18} parent=1 // pred_fallthru
      _
    // Predicated region
    $region22: #{_lambda_.18} parent=1 // pred_check
      _
    $region23: #{_lambda_.18} parent=1 // pred_check_branch
      %72 = sbr.rel (0) target = $region25
    $region24: #{_lambda_.18} parent=1 // pred_region
      %s74 = ssub.s32 1024, 1024
      %75 = vsyncadd [#allocation12], %s74
      %s76 = sshll.u32 [#allocation11], 4
      %s77 = int_to_ptr.vmem [resolvable:$true] %s76
      %82 = dma.hbm_to_vmem [thread:$0]  %s5, 1024, %s77, [#allocation12], 64, 64, 4
    $region25: #{_lambda_.18} parent=1 // pred_fallthru
      _
    // Predicated region
    $region26: #{_lambda_.18} parent=1 // pred_check
      _
    $region27: #{_lambda_.18} parent=1 // pred_check_branch
      %84 = sbr.rel (0) target = $region29
    $region28: #{_lambda_.18} parent=1 // pred_region
      %s86 = ssub.s32 16, 16
      %87 = vsyncadd [#allocation12], %s86
      %s89 = sshll.u32 [#allocation13], 4
      %s90 = int_to_ptr.vmem [resolvable:$true] %s89
      %92 = dma.hbm_to_vmem [thread:$0]  %s6, 16, %s90, [#allocation12]
    $region29: #{_lambda_.18} parent=1 // pred_fallthru
      _
    // Predicated region
    $region30: #{_lambda_.18} parent=1 // pred_check
      _
    $region31: #{_lambda_.18} parent=1 // pred_check_branch
      %94 = sbr.rel (0) target = $region33
    $region32: #{_lambda_.18} parent=1 // pred_region
      %95 = dma.done [#allocation3], 128
    $region33: #{_lambda_.18} parent=1 // pred_fallthru
      _
    // Predicated region
    $region34: #{_lambda_.18} parent=1 // pred_check
      _
    $region35: #{_lambda_.18} parent=1 // pred_check_branch
      %97 = sbr.rel (0) target = $region37
    $region36: #{_lambda_.18} parent=1 // pred_region
      %98 = dma.done [#allocation6], 16
    $region37: #{_lambda_.18} parent=1 // pred_fallthru
      _
    // Predicated region
    $region38: #{_lambda_.18} parent=1 // pred_check
      _
    $region39: #{_lambda_.18} parent=1 // pred_check_branch
      %100 = sbr.rel (0) target = $region41
    $region40: #{_lambda_.18} parent=1 // pred_region
      %101 = dma.done [#allocation6], 16
    $region41: #{_lambda_.18} parent=1 // pred_fallthru
      _
    // Predicated region
    $region42: #{_lambda_.18} parent=1 // pred_check
      _
    $region43: #{_lambda_.18} parent=1 // pred_check_branch
      %103 = sbr.rel (0) target = $region45
    $region44: #{_lambda_.18} parent=1 // pred_region
      %104 = dma.done [#allocation9], 256
    $region45: #{_lambda_.18} parent=1 // pred_fallthru
      _
    // Predicated region
    $region46: #{_lambda_.18} parent=1 // pred_check
      _
    $region47: #{_lambda_.18} parent=1 // pred_check_branch
      %106 = sbr.rel (0) target = $region49
    $region48: #{_lambda_.18} parent=1 // pred_region
      %107 = dma.done [#allocation9], 16
    $region49: #{_lambda_.18} parent=1 // pred_fallthru
      _
    // Predicated region
    $region50: #{_lambda_.18} parent=1 // pred_check
      _
    $region51: #{_lambda_.18} parent=1 // pred_check_branch
      %109 = sbr.rel (0) target = $region53
    $region52: #{_lambda_.18} parent=1 // pred_region
      %110 = dma.done [#allocation12], 1024
    $region53: #{_lambda_.18} parent=1 // pred_fallthru
      _
    // Predicated region
    $region54: #{_lambda_.18} parent=1 // pred_check
      _
    $region55: #{_lambda_.18} parent=1 // pred_check_branch
      %112 = sbr.rel (0) target = $region57
    $region56: #{_lambda_.18} parent=1 // pred_region
      %113 = dma.done [#allocation12], 16
    $region57: #{_lambda_.18} parent=1 // pred_fallthru
      _
    %v115 = vld [vmem:[#allocation2] sm:$0xf]
    %v116 = vld [vmem:[#allocation2 + $0x4] sm:$0xf]
    %v117 = vunpack.c.l.bf16 %v115
    %v118 = vunpack.c.l.bf16 %v116
    %vm119 = vcmask 261120
    %v120 = vsel %vm119, %v117, 0.0
    %121 = vadd.xlane.f32.xlu0 %v120
    %v122 = vpop.xlane.xlu0 %121
    %v123 = vsel %vm119, %v118, 0.0
    %124 = vadd.xlane.f32.xlu0 %v123
    %v125 = vpop.xlane.xlu0 %124
    %v126 = vrcp.pop 32.0
    %v127 = vmul.f32 %v122, %v126
    %v128 = vmul.f32 %v125, %v126
    %v129 = vsub.f32 %v117, %v127
    %v130 = vsub.f32 %v118, %v128
    %v131 = vmul.f32 %v129, %v129
    %v132 = vmul.f32 %v130, %v130
    %v133 = vsel %vm119, %v131, 0.0
    %134 = vadd.xlane.f32.xlu0 %v133
    %v135 = vpop.xlane.xlu0 %134
    %v136 = vsel %vm119, %v132, 0.0
    %137 = vadd.xlane.f32.xlu0 %v136
    %v138 = vpop.xlane.xlu0 %137
    %v139 = vmul.f32 %v135, %v126
    %v140 = vmul.f32 %v138, %v126
    %v141 = vadd.f32 %v139, 1e-05
    %v142 = vadd.f32 %v140, 1e-05
    %v143 = vrsqrt.pop %v141
    %v144 = vrsqrt.pop %v142
    %v145 = vmul.f32 %v129, %v143
    %v146 = vmul.f32 %v130, %v144
    %v147 = vld [vmem:[#allocation5] sm:$0x1]
    %v149 = vlaneseq
    %v150 = vshrl.u32 %v149, 7
    %v151 = vsub.s32 0, %v150
    %v152 = vrot.slane %v147, %v151
    %v154 = vmul.f32 %v145, %v152
    %v155 = vmul.f32 %v146, %v152
    %v156 = vld [vmem:[#allocation7] sm:$0x1]
    %v158 = vlaneseq
    %v159 = vshrl.u32 %v158, 7
    %v160 = vsub.s32 0, %v159
    %v161 = vrot.slane %v156, %v160
    %v163 = vadd.f32 %v154, %v161
    %v164 = vadd.f32 %v155, %v161
    %v165 = vpack.c.bf16 %v164, %v163
    %v166 = vld [vmem:[#allocation8] sm:$0xf]
    %v167 = vld [vmem:[#allocation8 + $0x4] sm:$0xf]
    %v168 = vld [vmem:[#allocation8 + $0x8] sm:$0xf]
    %v169 = vld [vmem:[#allocation8 + $0xc] sm:$0xf]
    %v170 = vld [vmem:[#allocation10] sm:$0x1]
    %v172 = vlaneseq
    %v173 = vshrl.u32 %v172, 7
    %v174 = vsub.s32 0, %v173
    %v175 = vrot.slane %v170, %v174
    %v181 = vunpack.c.l.b16 %v166
    %v182 = vunpack.c.l.b16 %v167
    %v183 = vunpack.c.l.b16 %v168
    %v184 = vunpack.c.l.b16 %v169
    %v185 = vpack.c.b16 %v182, %v181
    %v186 = vpack.c.b16 %v184, %v183
    %v190 = vsel %vm119, %v165, 0
    %192 = vmatprep.subr.bf16.mxu0 0
    %193 = vmatpush1.bf16.msra.mxu0 %v185
    %194 = vmatprep.subr.bf16.mxu0 0
    %195 = vmatpush1.bf16.msra.mxu0 %v186
    %196 = vmatprep.subr.bf16.mxu0 0
    %197 = vmatpush1.bf16.msra.mxu0 0
    %198 = vmatprep.subr.bf16.mxu0 0
    %199 = vmatpush1.bf16.msra.mxu0 0
    %200 = vmatprep.subr.bf16.mxu0 0
    %201 = vmatpush1.bf16.msra.mxu0 0
    %202 = vmatprep.subr.bf16.mxu0 0
    %203 = vmatpush1.bf16.msra.mxu0 0
    %204 = vmatprep.subr.bf16.mxu0 0
    %205 = vmatpush1.bf16.msra.mxu0 0
    %206 = vmatprep.subr.bf16.mxu0 0
    %207 = vmatpush1.bf16.msra.mxu0 0
    %208 = vmatprep.subr.bf16.mxu0 0
    %209 = vmatpush1.bf16.msra.mxu0 0
    %210 = vmatprep.subr.bf16.mxu0 0
    %211 = vmatpush1.bf16.msra.mxu0 0
    %212 = vmatprep.subr.bf16.mxu0 0
    %213 = vmatpush1.bf16.msra.mxu0 0
    %214 = vmatprep.subr.bf16.mxu0 0
    %215 = vmatpush1.bf16.msra.mxu0 0
    %216 = vmatprep.subr.bf16.mxu0 0
    %217 = vmatpush1.bf16.msra.mxu0 0
    %218 = vmatprep.subr.bf16.mxu0 0
    %219 = vmatpush1.bf16.msra.mxu0 0
    %220 = vmatprep.subr.bf16.mxu0 0
    %221 = vmatpush1.bf16.msra.mxu0 0
    %222 = vmatprep.subr.bf16.mxu0 0
    %223 = vmatpush1.bf16.msra.mxu0 0
    %224 = vmatprep.mubr.bf16.mxu0 0
    %225 = vmatmul.mubr.bf16.gmra.mrb[0].mxu0 %v190
    %v226 = vpop.f32.mrb[0].mxu0
    %v227 = vadd.f32 %v175, %v226
    %v228 = vpop.f32.mrb[0].mxu0
    %v229 = vpop.f32.mrb[0].mxu0
    %v230 = vadd.f32 %v175, %v229
    %v231 = vpop.f32.mrb[0].mxu0
    %232 = vdwg.mxu0
    %v233 = vmul.f32 %v227, %v227
    %v234 = vmul.f32 %v230, %v230
    %v235 = vmul.f32 %v227, %v233
    %v236 = vmul.f32 %v230, %v234
    %v237 = vmul.f32 %v235, 0.044715
    %v238 = vmul.f32 %v236, 0.044715
    %v239 = vadd.f32 %v227, %v237
    %v240 = vadd.f32 %v230, %v238
    %v241 = vmul.f32 %v239, 0.7978846
    %v242 = vmul.f32 %v240, 0.7978846
    %v243 = vtanh.pop %v241
    %v244 = vtanh.pop %v242
    %v245 = vadd.f32 %v243, 1.0
    %v246 = vadd.f32 %v244, 1.0
    %v247 = vmul.f32 %v245, 0.5
    %v248 = vmul.f32 %v246, 0.5
    %v249 = vmul.f32 %v227, %v247
    %v250 = vmul.f32 %v230, %v248
    %v251 = vpack.c.bf16 %v250, %v249
    %v252 = vld [vmem:[#allocation11] sm:$0xf]
    %v253 = vld [vmem:[#allocation11 + $0x4] sm:$0xf]
    %v254 = vld [vmem:[#allocation11 + $0x8] sm:$0xf]
    %v255 = vld [vmem:[#allocation11 + $0xc] sm:$0xf]
    %v256 = vld [vmem:[#allocation11 + $0x10] sm:$0xf]
    %v257 = vld [vmem:[#allocation11 + $0x14] sm:$0xf]
    %v258 = vld [vmem:[#allocation11 + $0x18] sm:$0xf]
    %v259 = vld [vmem:[#allocation11 + $0x1c] sm:$0xf]
    %v260 = vld [vmem:[#allocation11 + $0x20] sm:$0xf]
    %v261 = vld [vmem:[#allocation11 + $0x24] sm:$0xf]
    %v262 = vld [vmem:[#allocation11 + $0x28] sm:$0xf]
    %v263 = vld [vmem:[#allocation11 + $0x2c] sm:$0xf]
    %v264 = vld [vmem:[#allocation11 + $0x30] sm:$0xf]
    %v265 = vld [vmem:[#allocation11 + $0x34] sm:$0xf]
    %v266 = vld [vmem:[#allocation11 + $0x38] sm:$0xf]
    %v267 = vld [vmem:[#allocation11 + $0x3c] sm:$0xf]
    %v268 = vld [vmem:[#allocation13] sm:$0x1]
    %v270 = vlaneseq
    %v271 = vshrl.u32 %v270, 7
    %v272 = vsub.s32 0, %v271
    %v273 = vrot.slane %v268, %v272
    %v291 = vunpack.c.l.b16 %v252
    %v292 = vunpack.c.l.b16 %v253
    %v293 = vunpack.c.l.b16 %v254
    %v294 = vunpack.c.l.b16 %v255
    %v295 = vunpack.c.l.b16 %v256
    %v296 = vunpack.c.l.b16 %v257
    %v297 = vunpack.c.l.b16 %v258
    %v298 = vunpack.c.l.b16 %v259
    %v299 = vunpack.c.l.b16 %v260
    %v300 = vunpack.c.l.b16 %v261
    %v301 = vunpack.c.l.b16 %v262
    %v302 = vunpack.c.l.b16 %v263
    %v303 = vunpack.c.l.b16 %v264
    %v304 = vunpack.c.l.b16 %v265
    %v305 = vunpack.c.l.b16 %v266
    %v306 = vunpack.c.l.b16 %v267
    %v307 = vpack.c.b16 %v292, %v291
    %v308 = vpack.c.b16 %v294, %v293
    %v309 = vpack.c.b16 %v296, %v295
    %v310 = vpack.c.b16 %v298, %v297
    %v311 = vpack.c.b16 %v300, %v299
    %v312 = vpack.c.b16 %v302, %v301
    %v313 = vpack.c.b16 %v304, %v303
    %v314 = vpack.c.b16 %v306, %v305
    %323 = vmatprep.subr.bf16.mxu0 0
    %324 = vmatpush1.bf16.msra.mxu0 %v307
    %325 = vmatprep.subr.bf16.mxu0 0
    %326 = vmatpush1.bf16.msra.mxu0 %v308
    %327 = vmatprep.subr.bf16.mxu0 0
    %328 = vmatpush1.bf16.msra.mxu0 %v309
    %329 = vmatprep.subr.bf16.mxu0 0
    %330 = vmatpush1.bf16.msra.mxu0 %v310
    %331 = vmatprep.subr.bf16.mxu0 0
    %332 = vmatpush1.bf16.msra.mxu0 %v311
    %333 = vmatprep.subr.bf16.mxu0 0
    %334 = vmatpush1.bf16.msra.mxu0 %v312
    %335 = vmatprep.subr.bf16.mxu0 0
    %336 = vmatpush1.bf16.msra.mxu0 %v313
    %337 = vmatprep.subr.bf16.mxu0 0
    %338 = vmatpush1.bf16.msra.mxu0 %v314
    %339 = vmatprep.subr.bf16.mxu0 0
    %340 = vmatpush1.bf16.msra.mxu0 0
    %341 = vmatprep.subr.bf16.mxu0 0
    %342 = vmatpush1.bf16.msra.mxu0 0
    %343 = vmatprep.subr.bf16.mxu0 0
    %344 = vmatpush1.bf16.msra.mxu0 0
    %345 = vmatprep.subr.bf16.mxu0 0
    %346 = vmatpush1.bf16.msra.mxu0 0
    %347 = vmatprep.subr.bf16.mxu0 0
    %348 = vmatpush1.bf16.msra.mxu0 0
    %349 = vmatprep.subr.bf16.mxu0 0
    %350 = vmatpush1.bf16.msra.mxu0 0
    %351 = vmatprep.subr.bf16.mxu0 0
    %352 = vmatpush1.bf16.msra.mxu0 0
    %353 = vmatprep.subr.bf16.mxu0 0
    %354 = vmatpush1.bf16.msra.mxu0 0
    %355 = vmatprep.mubr.bf16.mxu0 0
    %356 = vmatmul.mubr.bf16.gmra.mrb[0].mxu0 %v251
    %v357 = vpop.f32.mrb[0].mxu0
    %v358 = vadd.f32 %v273, %v357
    %v359 = vpop.f32.mrb[0].mxu0
    %v360 = vpop.f32.mrb[0].mxu0
    %v361 = vadd.f32 %v273, %v360
    %v362 = vpop.f32.mrb[0].mxu0
    %363 = vdwg.mxu0
    %v364 = vadd.f32 %v117, %v358
    %v365 = vadd.f32 %v118, %v361
    %v366 = vpack.c.bf16 %v365, %v364
    %v368 = vunpack.c.l.b16 %v366
    %v369 = vunpack.c.h.b16 %v366
    %v370 = vpack.c.b16 %v368, %v368
    %v371 = vpack.c.b16 %v369, %v369
    %vm374 = vcmask 257024
    %375 = vst.msk [vmem:[#allocation14] sm:$0xf] %vm374, %v370
    %376 = vst.msk [vmem:[#allocation14 + $0x4] sm:$0xf] %vm374, %v371
    // Predicated region
    $region58: #{_lambda_.18} parent=1 // pred_check
      _
    $region59: #{_lambda_.18} parent=1 // pred_check_branch
      %378 = sbr.rel (0) target = $region61
    $region60: #{_lambda_.18} parent=1 // pred_region
      %s380 = ssub.s32 128, 128
      %381 = vsyncadd [#allocation4], %s380
      %s382 = sshll.u32 [#allocation14], 4
      %s383 = int_to_ptr.vmem [resolvable:$true] %s382
      %388 = dma.vmem_to_hbm [thread:$0]  %s383, 128, %s7, [#allocation4], 64, 64, 4
    $region61: #{_lambda_.18} parent=1 // pred_fallthru
      _
    // Predicated region
    $region62: #{_lambda_.18} parent=1 // pred_check
      _
    $region63: #{_lambda_.18} parent=1 // pred_check_branch
      %390 = sbr.rel (0) target = $region65
    $region64: #{_lambda_.18} parent=1 // pred_region
      %391 = dma.done [#allocation4], 128
    $region65: #{_lambda_.18} parent=1 // pred_fallthru
      _
    %392 = vsyncpa [#allocation3], 1
    %393 = vsyncpa [#allocation6], 1
    %394 = vsyncpa [#allocation9], 1
    %395 = vsyncpa [#allocation12], 1
    %396 = vsyncpa [#allocation4], 1

// kernel: _lambda_.25
$region0: #{_lambda_.25}
  #allocation0 [shape = 'u32[]', space=smem, size = 0x4, offset = 0x4, fixed_abs, tag = 'smem constant byte address 0x4 - core index']
  #allocation1 [shape = 'u32[144,128]{1,0:T(1,128)}', space=vmem, size = 0x12000, scoped, tag = 'internal scratch']
  %s0 = inlined_call_operand.vmem [shape: bf16[2,32], index: 0, kind: input, shape index: {}]
  %s1 = inlined_call_operand.vmem [shape: bf16[32,128], index: 1, kind: input, shape index: {}]
  %s2 = inlined_call_operand.vmem [shape: f32[1,128], index: 2, kind: input, shape index: {}]
  %s3 = inlined_call_operand.hbm [shape: bf16[128,128], index: 3, kind: input, shape index: {}]
  %s4 = inlined_call_operand.vmem [shape: f32[1,128], index: 4, kind: input, shape index: {}]
  %s5 = inlined_call_operand.hbm [shape: bf16[128,128], index: 5, kind: input, shape index: {}]
  %s6 = inlined_call_operand.vmem [shape: f32[1,128], index: 6, kind: input, shape index: {}]
  %s7 = inlined_call_operand.hbm [shape: f32[2,128], index: 7, kind: output, shape index: {}]
  %s8 = sld [smem:[#allocation0]]
  $region46: #{_lambda_.25} parent=0
    _
  %s10 = ssub.s32 1, %s8
  %s11 = scalar_select 0, %s10, %s8
  $region1: #{_lambda_.25} parent=0
    #allocation2 [shape = 'u8[32768]{0}', space=vmem, size = 0x8000, scoped, tag = 'input window, operand 3, single buffered']
    #allocation3 [shape = 's32[1]{0}', space=sflag, size = 0x4, scoped, tag = 'scoped memory for _lambda_.25']
    #allocation4 [shape = 's32[1]{0}', space=sflag, size = 0x4, scoped, tag = 'scoped memory for _lambda_.25']
    #allocation5 [shape = 'u8[32768]{0}', space=vmem, size = 0x8000, scoped, tag = 'input window, operand 5, single buffered']
    #allocation6 [shape = 's32[1]{0}', space=sflag, size = 0x4, scoped, tag = 'scoped memory for _lambda_.25']
    #allocation7 [shape = 'u8[1024]{0}', space=vmem, size = 0x400, scoped, tag = 'output window, operand 0, single buffered']
    %12 = vsyncpa [#allocation3], 0
    %13 = vsyncpa [#allocation6], 0
    %14 = vsyncpa [#allocation4], 0
    // Predicated region
    $region2: #{_lambda_.25} parent=1 // pred_check
      _
    $region3: #{_lambda_.25} parent=1 // pred_check_branch
      %16 = sbr.rel (0) target = $region5
    $region4: #{_lambda_.25} parent=1 // pred_region
      _
    $region5: #{_lambda_.25} parent=1 // pred_fallthru
      _
    // Predicated region
    $region6: #{_lambda_.25} parent=1 // pred_check
      _
    $region7: #{_lambda_.25} parent=1 // pred_check_branch
      %18 = sbr.rel (0) target = $region9
    $region8: #{_lambda_.25} parent=1 // pred_region
      _
    $region9: #{_lambda_.25} parent=1 // pred_fallthru
      _
    // Predicated region
    $region10: #{_lambda_.25} parent=1 // pred_check
      _
    $region11: #{_lambda_.25} parent=1 // pred_check_branch
      %20 = sbr.rel (0) target = $region13
    $region12: #{_lambda_.25} parent=1 // pred_region
      _
    $region13: #{_lambda_.25} parent=1 // pred_fallthru
      _
    // Predicated region
    $region14: #{_lambda_.25} parent=1 // pred_check
      _
    $region15: #{_lambda_.25} parent=1 // pred_check_branch
      %22 = sbr.rel (0) target = $region17
    $region16: #{_lambda_.25} parent=1 // pred_region
      %s24 = ssub.s32 1024, 1024
      %25 = vsyncadd [#allocation3], %s24
      %s26 = sshll.u32 [#allocation2], 4
      %s27 = int_to_ptr.vmem [resolvable:$true] %s26
      %32 = dma.hbm_to_vmem [thread:$0]  %s3, 1024, %s27, [#allocation3], 64, 64, 4
    $region17: #{_lambda_.25} parent=1 // pred_fallthru
      _
    // Predicated region
    $region18: #{_lambda_.25} parent=1 // pred_check
      _
    $region19: #{_lambda_.25} parent=1 // pred_check_branch
      %34 = sbr.rel (0) target = $region21
    $region20: #{_lambda_.25} parent=1 // pred_region
      _
    $region21: #{_lambda_.25} parent=1 // pred_fallthru
      _
    // Predicated region
    $region22: #{_lambda_.25} parent=1 // pred_check
      _
    $region23: #{_lambda_.25} parent=1 // pred_check_branch
      %36 = sbr.rel (0) target = $region25
    $region24: #{_lambda_.25} parent=1 // pred_region
      %s38 = ssub.s32 1024, 1024
      %39 = vsyncadd [#allocation6], %s38
      %s40 = sshll.u32 [#allocation5], 4
      %s41 = int_to_ptr.vmem [resolvable:$true] %s40
      %46 = dma.hbm_to_vmem [thread:$0]  %s5, 1024, %s41, [#allocation6], 64, 64, 4
    $region25: #{_lambda_.25} parent=1 // pred_fallthru
      _
    // Predicated region
    $region26: #{_lambda_.25} parent=1 // pred_check
      _
    $region27: #{_lambda_.25} parent=1 // pred_check_branch
      %48 = sbr.rel (0) target = $region29
    $region28: #{_lambda_.25} parent=1 // pred_region
      _
    $region29: #{_lambda_.25} parent=1 // pred_fallthru
      _
    // Predicated region
    $region30: #{_lambda_.25} parent=1 // pred_check
      _
    $region31: #{_lambda_.25} parent=1 // pred_check_branch
      %50 = sbr.rel (0) target = $region33
    $region32: #{_lambda_.25} parent=1 // pred_region
      %51 = dma.done [#allocation3], 1024
    $region33: #{_lambda_.25} parent=1 // pred_fallthru
      _
    // Predicated region
    $region34: #{_lambda_.25} parent=1 // pred_check
      _
    $region35: #{_lambda_.25} parent=1 // pred_check_branch
      %53 = sbr.rel (0) target = $region37
    $region36: #{_lambda_.25} parent=1 // pred_region
      %54 = dma.done [#allocation6], 1024
    $region37: #{_lambda_.25} parent=1 // pred_fallthru
      _
    %v56 = vld [vmem:[%s0] sm:$0x1]
    %v57 = vld [vmem:[%s1] sm:$0xf]
    %v58 = vld [vmem:[%s1 + $0x4] sm:$0xf]
    %v59 = vld [vmem:[%s1 + $0x8] sm:$0xf]
    %v60 = vld [vmem:[%s1 + $0xc] sm:$0xf]
    %v61 = vld [vmem:[%s2] sm:$0x1]
    %v63 = vlaneseq
    %v64 = vshrl.u32 %v63, 7
    %v65 = vsub.s32 0, %v64
    %v66 = vrot.slane %v61, %v65
    %v72 = vunpack.c.l.b16 %v57
    %v73 = vunpack.c.l.b16 %v58
    %v74 = vunpack.c.l.b16 %v59
    %v75 = vunpack.c.l.b16 %v60
    %v76 = vpack.c.b16 %v73, %v72
    %v77 = vpack.c.b16 %v75, %v74
    %vm80 = vcmask 261120
    %v82 = vsel %vm80, %v56, 0
    %84 = vmatprep.subr.bf16.mxu0 0
    %85 = vmatpush1.bf16.msra.mxu0 %v76
    %86 = vmatprep.subr.bf16.mxu0 0
    %87 = vmatpush1.bf16.msra.mxu0 %v77
    %88 = vmatprep.subr.bf16.mxu0 0
    %89 = vmatpush1.bf16.msra.mxu0 0
    %90 = vmatprep.subr.bf16.mxu0 0
    %91 = vmatpush1.bf16.msra.mxu0 0
    %92 = vmatprep.subr.bf16.mxu0 0
    %93 = vmatpush1.bf16.msra.mxu0 0
    %94 = vmatprep.subr.bf16.mxu0 0
    %95 = vmatpush1.bf16.msra.mxu0 0
    %96 = vmatprep.subr.bf16.mxu0 0
    %97 = vmatpush1.bf16.msra.mxu0 0
    %98 = vmatprep.subr.bf16.mxu0 0
    %99 = vmatpush1.bf16.msra.mxu0 0
    %100 = vmatprep.subr.bf16.mxu0 0
    %101 = vmatpush1.bf16.msra.mxu0 0
    %102 = vmatprep.subr.bf16.mxu0 0
    %103 = vmatpush1.bf16.msra.mxu0 0
    %104 = vmatprep.subr.bf16.mxu0 0
    %105 = vmatpush1.bf16.msra.mxu0 0
    %106 = vmatprep.subr.bf16.mxu0 0
    %107 = vmatpush1.bf16.msra.mxu0 0
    %108 = vmatprep.subr.bf16.mxu0 0
    %109 = vmatpush1.bf16.msra.mxu0 0
    %110 = vmatprep.subr.bf16.mxu0 0
    %111 = vmatpush1.bf16.msra.mxu0 0
    %112 = vmatprep.subr.bf16.mxu0 0
    %113 = vmatpush1.bf16.msra.mxu0 0
    %114 = vmatprep.subr.bf16.mxu0 0
    %115 = vmatpush1.bf16.msra.mxu0 0
    %116 = vmatprep.mubr.bf16.mxu0 0
    %117 = vmatmul.mubr.bf16.gmra.mrb[0].mxu0 %v82
    %v118 = vpop.f32.mrb[0].mxu0
    %v119 = vadd.f32 %v66, %v118
    %v120 = vpop.f32.mrb[0].mxu0
    %v121 = vpop.f32.mrb[0].mxu0
    %v122 = vpop.f32.mrb[0].mxu0
    %123 = vdwg.mxu0
    %v124 = vpack.c.bf16 %v119, %v119
    %v125 = vld [vmem:[#allocation2] sm:$0xf]
    %v126 = vld [vmem:[#allocation2 + $0x4] sm:$0xf]
    %v127 = vld [vmem:[#allocation2 + $0x8] sm:$0xf]
    %v128 = vld [vmem:[#allocation2 + $0xc] sm:$0xf]
    %v129 = vld [vmem:[#allocation2 + $0x10] sm:$0xf]
    %v130 = vld [vmem:[#allocation2 + $0x14] sm:$0xf]
    %v131 = vld [vmem:[#allocation2 + $0x18] sm:$0xf]
    %v132 = vld [vmem:[#allocation2 + $0x1c] sm:$0xf]
    %v133 = vld [vmem:[#allocation2 + $0x20] sm:$0xf]
    %v134 = vld [vmem:[#allocation2 + $0x24] sm:$0xf]
    %v135 = vld [vmem:[#allocation2 + $0x28] sm:$0xf]
    %v136 = vld [vmem:[#allocation2 + $0x2c] sm:$0xf]
    %v137 = vld [vmem:[#allocation2 + $0x30] sm:$0xf]
    %v138 = vld [vmem:[#allocation2 + $0x34] sm:$0xf]
    %v139 = vld [vmem:[#allocation2 + $0x38] sm:$0xf]
    %v140 = vld [vmem:[#allocation2 + $0x3c] sm:$0xf]
    %v141 = vld [vmem:[%s4] sm:$0x1]
    %v143 = vlaneseq
    %v144 = vshrl.u32 %v143, 7
    %v145 = vsub.s32 0, %v144
    %v146 = vrot.slane %v141, %v145
    %v164 = vunpack.c.l.b16 %v125
    %v165 = vunpack.c.l.b16 %v126
    %v166 = vunpack.c.l.b16 %v127
    %v167 = vunpack.c.l.b16 %v128
    %v168 = vunpack.c.l.b16 %v129
    %v169 = vunpack.c.l.b16 %v130
    %v170 = vunpack.c.l.b16 %v131
    %v171 = vunpack.c.l.b16 %v132
    %v172 = vunpack.c.l.b16 %v133
    %v173 = vunpack.c.l.b16 %v134
    %v174 = vunpack.c.l.b16 %v135
    %v175 = vunpack.c.l.b16 %v136
    %v176 = vunpack.c.l.b16 %v137
    %v177 = vunpack.c.l.b16 %v138
    %v178 = vunpack.c.l.b16 %v139
    %v179 = vunpack.c.l.b16 %v140
    %v180 = vpack.c.b16 %v165, %v164
    %v181 = vpack.c.b16 %v167, %v166
    %v182 = vpack.c.b16 %v169, %v168
    %v183 = vpack.c.b16 %v171, %v170
    %v184 = vpack.c.b16 %v173, %v172
    %v185 = vpack.c.b16 %v175, %v174
    %v186 = vpack.c.b16 %v177, %v176
    %v187 = vpack.c.b16 %v179, %v178
    %196 = vmatprep.subr.bf16.mxu0 0
    %197 = vmatpush1.bf16.msra.mxu0 %v180
    %198 = vmatprep.subr.bf16.mxu0 0
    %199 = vmatpush1.bf16.msra.mxu0 %v181
    %200 = vmatprep.subr.bf16.mxu0 0
    %201 = vmatpush1.bf16.msra.mxu0 %v182
    %202 = vmatprep.subr.bf16.mxu0 0
    %203 = vmatpush1.bf16.msra.mxu0 %v183
    %204 = vmatprep.subr.bf16.mxu0 0
    %205 = vmatpush1.bf16.msra.mxu0 %v184
    %206 = vmatprep.subr.bf16.mxu0 0
    %207 = vmatpush1.bf16.msra.mxu0 %v185
    %208 = vmatprep.subr.bf16.mxu0 0
    %209 = vmatpush1.bf16.msra.mxu0 %v186
    %210 = vmatprep.subr.bf16.mxu0 0
    %211 = vmatpush1.bf16.msra.mxu0 %v187
    %212 = vmatprep.subr.bf16.mxu0 0
    %213 = vmatpush1.bf16.msra.mxu0 0
    %214 = vmatprep.subr.bf16.mxu0 0
    %215 = vmatpush1.bf16.msra.mxu0 0
    %216 = vmatprep.subr.bf16.mxu0 0
    %217 = vmatpush1.bf16.msra.mxu0 0
    %218 = vmatprep.subr.bf16.mxu0 0
    %219 = vmatpush1.bf16.msra.mxu0 0
    %220 = vmatprep.subr.bf16.mxu0 0
    %221 = vmatpush1.bf16.msra.mxu0 0
    %222 = vmatprep.subr.bf16.mxu0 0
    %223 = vmatpush1.bf16.msra.mxu0 0
    %224 = vmatprep.subr.bf16.mxu0 0
    %225 = vmatpush1.bf16.msra.mxu0 0
    %226 = vmatprep.subr.bf16.mxu0 0
    %227 = vmatpush1.bf16.msra.mxu0 0
    %228 = vmatprep.mubr.bf16.mxu0 0
    %229 = vmatmul.mubr.bf16.gmra.mrb[0].mxu0 %v124
    %v230 = vpop.f32.mrb[0].mxu0
    %v231 = vadd.f32 %v146, %v230
    %v232 = vpop.f32.mrb[0].mxu0
    %v233 = vpop.f32.mrb[0].mxu0
    %v234 = vpop.f32.mrb[0].mxu0
    %235 = vdwg.mxu0
    %v236 = vpack.c.bf16 %v231, %v231
    %v237 = vld [vmem:[#allocation5] sm:$0xf]
    %v238 = vld [vmem:[#allocation5 + $0x4] sm:$0xf]
    %v239 = vld [vmem:[#allocation5 + $0x8] sm:$0xf]
    %v240 = vld [vmem:[#allocation5 + $0xc] sm:$0xf]
    %v241 = vld [vmem:[#allocation5 + $0x10] sm:$0xf]
    %v242 = vld [vmem:[#allocation5 + $0x14] sm:$0xf]
    %v243 = vld [vmem:[#allocation5 + $0x18] sm:$0xf]
    %v244 = vld [vmem:[#allocation5 + $0x1c] sm:$0xf]
    %v245 = vld [vmem:[#allocation5 + $0x20] sm:$0xf]
    %v246 = vld [vmem:[#allocation5 + $0x24] sm:$0xf]
    %v247 = vld [vmem:[#allocation5 + $0x28] sm:$0xf]
    %v248 = vld [vmem:[#allocation5 + $0x2c] sm:$0xf]
    %v249 = vld [vmem:[#allocation5 + $0x30] sm:$0xf]
    %v250 = vld [vmem:[#allocation5 + $0x34] sm:$0xf]
    %v251 = vld [vmem:[#allocation5 + $0x38] sm:$0xf]
    %v252 = vld [vmem:[#allocation5 + $0x3c] sm:$0xf]
    %v253 = vld [vmem:[%s6] sm:$0x1]
    %v255 = vlaneseq
    %v256 = vshrl.u32 %v255, 7
    %v257 = vsub.s32 0, %v256
    %v258 = vrot.slane %v253, %v257
    %v276 = vunpack.c.l.b16 %v237
    %v277 = vunpack.c.l.b16 %v238
    %v278 = vunpack.c.l.b16 %v239
    %v279 = vunpack.c.l.b16 %v240
    %v280 = vunpack.c.l.b16 %v241
    %v281 = vunpack.c.l.b16 %v242
    %v282 = vunpack.c.l.b16 %v243
    %v283 = vunpack.c.l.b16 %v244
    %v284 = vunpack.c.l.b16 %v245
    %v285 = vunpack.c.l.b16 %v246
    %v286 = vunpack.c.l.b16 %v247
    %v287 = vunpack.c.l.b16 %v248
    %v288 = vunpack.c.l.b16 %v249
    %v289 = vunpack.c.l.b16 %v250
    %v290 = vunpack.c.l.b16 %v251
    %v291 = vunpack.c.l.b16 %v252
    %v292 = vpack.c.b16 %v277, %v276
    %v293 = vpack.c.b16 %v279, %v278
    %v294 = vpack.c.b16 %v281, %v280
    %v295 = vpack.c.b16 %v283, %v282
    %v296 = vpack.c.b16 %v285, %v284
    %v297 = vpack.c.b16 %v287, %v286
    %v298 = vpack.c.b16 %v289, %v288
    %v299 = vpack.c.b16 %v291, %v290
    %308 = vmatprep.subr.bf16.mxu0 0
    %309 = vmatpush1.bf16.msra.mxu0 %v292
    %310 = vmatprep.subr.bf16.mxu0 0
    %311 = vmatpush1.bf16.msra.mxu0 %v293
    %312 = vmatprep.subr.bf16.mxu0 0
    %313 = vmatpush1.bf16.msra.mxu0 %v294
    %314 = vmatprep.subr.bf16.mxu0 0
    %315 = vmatpush1.bf16.msra.mxu0 %v295
    %316 = vmatprep.subr.bf16.mxu0 0
    %317 = vmatpush1.bf16.msra.mxu0 %v296
    %318 = vmatprep.subr.bf16.mxu0 0
    %319 = vmatpush1.bf16.msra.mxu0 %v297
    %320 = vmatprep.subr.bf16.mxu0 0
    %321 = vmatpush1.bf16.msra.mxu0 %v298
    %322 = vmatprep.subr.bf16.mxu0 0
    %323 = vmatpush1.bf16.msra.mxu0 %v299
    %324 = vmatprep.subr.bf16.mxu0 0
    %325 = vmatpush1.bf16.msra.mxu0 0
    %326 = vmatprep.subr.bf16.mxu0 0
    %327 = vmatpush1.bf16.msra.mxu0 0
    %328 = vmatprep.subr.bf16.mxu0 0
    %329 = vmatpush1.bf16.msra.mxu0 0
    %330 = vmatprep.subr.bf16.mxu0 0
    %331 = vmatpush1.bf16.msra.mxu0 0
    %332 = vmatprep.subr.bf16.mxu0 0
    %333 = vmatpush1.bf16.msra.mxu0 0
    %334 = vmatprep.subr.bf16.mxu0 0
    %335 = vmatpush1.bf16.msra.mxu0 0
    %336 = vmatprep.subr.bf16.mxu0 0
    %337 = vmatpush1.bf16.msra.mxu0 0
    %338 = vmatprep.subr.bf16.mxu0 0
    %339 = vmatpush1.bf16.msra.mxu0 0
    %340 = vmatprep.mubr.bf16.mxu0 0
    %341 = vmatmul.mubr.bf16.gmra.mrb[0].mxu0 %v236
    %v342 = vpop.f32.mrb[0].mxu0
    %v343 = vadd.f32 %v258, %v342
    %v344 = vpop.f32.mrb[0].mxu0
    %v345 = vpop.f32.mrb[0].mxu0
    %v346 = vpop.f32.mrb[0].mxu0
    %347 = vdwg.mxu0
    %348 = vst [vmem:[#allocation7] sm:$0x3] %v343
    // Predicated region
    $region38: #{_lambda_.25} parent=1 // pred_check
      _
    $region39: #{_lambda_.25} parent=1 // pred_check_branch
      %350 = sbr.rel (0) target = $region41
    $region40: #{_lambda_.25} parent=1 // pred_region
      %s352 = ssub.s32 32, 32
      %353 = vsyncadd [#allocation4], %s352
      %s355 = sshll.u32 [#allocation7], 4
      %s356 = int_to_ptr.vmem [resolvable:$true] %s355
      %358 = dma.vmem_to_hbm [thread:$0]  %s356, 32, %s7, [#allocation4]
    $region41: #{_lambda_.25} parent=1 // pred_fallthru
      _
    // Predicated region
    $region42: #{_lambda_.25} parent=1 // pred_check
      _
    $region43: #{_lambda_.25} parent=1 // pred_check_branch
      %360 = sbr.rel (0) target = $region45
    $region44: #{_lambda_.25} parent=1 // pred_region
      %361 = dma.done [#allocation4], 32
    $region45: #{_lambda_.25} parent=1 // pred_fallthru
      _
    %362 = vsyncpa [#allocation3], 1
    %363 = vsyncpa [#allocation6], 1
    %364 = vsyncpa [#allocation4], 1

// kernel: _lambda_.17
$region0: #{_lambda_.17}
  #allocation0 [shape = 'u32[]', space=smem, size = 0x4, offset = 0x4, fixed_abs, tag = 'smem constant byte address 0x4 - core index']
  #allocation1 [shape = 'u32[144,128]{1,0:T(1,128)}', space=vmem, size = 0x12000, scoped, tag = 'internal scratch']
  #allocation2 [shape = 'f32[4,8,1]{2,1,0:T(8,128)}', space=vmem, size = 0x4000, scoped, tag = 'scratch operand']
  #allocation3 [shape = 'f32[4,8,1]{2,1,0:T(8,128)}', space=vmem, size = 0x4000, scoped, tag = 'scratch operand']
  #allocation4 [shape = 'f32[4,8,8]{2,1,0:T(8,128)}', space=vmem, size = 0x4000, scoped, tag = 'scratch operand']
  %s0 = inlined_call_operand.hbm [shape: bf16[2,8,32], index: 0, kind: input, shape index: {}]
  %s1 = inlined_call_operand.hbm [shape: bf16[2,4,8,8], index: 1, kind: input, shape index: {}]
  %s2 = inlined_call_operand.hbm [shape: bf16[2,4,8,8], index: 2, kind: input, shape index: {}]
  %s3 = inlined_call_operand.hbm [shape: bf16[2,4,8,8], index: 3, kind: input, shape index: {}]
  %s4 = inlined_call_operand.hbm [shape: bf16[4,8,32], index: 4, kind: input, shape index: {}]
  %s5 = inlined_call_operand.hbm [shape: f32[1,32], index: 5, kind: input, shape index: {}]
  %s6 = inlined_call_operand.hbm [shape: bf16[2,8,32], index: 6, kind: output, shape index: {}]
  %s7 = sld [smem:[#allocation0]]
  $region89: #{_lambda_.17} parent=0
    _
  %s9 = ssub.s32 1, %s7
  %s10 = scalar_select 0, %s9, %s7
  $region1: #{_lambda_.17} parent=0
    #allocation5 [shape = 'u8[4096]{0}', space=vmem, size = 0x1000, scoped, tag = 'input window, operand 0']
    #allocation6 [shape = 's32[2]{0}', space=sflag, size = 0x8, scoped, tag = 'scoped memory for _lambda_.17']
    #allocation7 [shape = 's32[2]{0}', space=sflag, size = 0x8, scoped, tag = 'scoped memory for _lambda_.17']
    #allocation8 [shape = 'u8[16384]{0}', space=vmem, size = 0x4000, scoped, tag = 'input window, operand 1']
    #allocation9 [shape = 's32[2]{0}', space=sflag, size = 0x8, scoped, tag = 'scoped memory for _lambda_.17']
    #allocation10 [shape = 'u8[16384]{0}', space=vmem, size = 0x4000, scoped, tag = 'input window, operand 2']
    #allocation11 [shape = 'u8[16384]{0}', space=vmem, size = 0x4000, scoped, tag = 'input window, operand 3']
    #allocation12 [shape = 's32[2]{0}', space=sflag, size = 0x8, scoped, tag = 'scoped memory for _lambda_.17']
    #allocation13 [shape = 'u8[8192]{0}', space=vmem, size = 0x2000, scoped, tag = 'input window, operand 4, single buffered']
    #allocation14 [shape = 'u8[512]{0}', space=vmem, size = 0x400, scoped, tag = 'input window, operand 5, single buffered']
    #allocation15 [shape = 's32[1]{0}', space=sflag, size = 0x4, scoped, tag = 'scoped memory for _lambda_.17']
    #allocation16 [shape = 'u8[4096]{0}', space=vmem, size = 0x1000, scoped, tag = 'output window, operand 0']
    %11 = vsyncpa [#allocation6], 0
    %s12 = scalar_lea.sflag [#allocation6], 1
    %13 = vsyncpa %s12, 0
    %14 = vsyncpa [#allocation9], 0
    %s15 = scalar_lea.sflag [#allocation9], 1
    %16 = vsyncpa %s15, 0
    %17 = vsyncpa [#allocation12], 0
    %s18 = scalar_lea.sflag [#allocation12], 1
    %19 = vsyncpa %s18, 0
    %20 = vsyncpa [#allocation15], 0
    %21 = vsyncpa [#allocation7], 0
    %s22 = scalar_lea.sflag [#allocation7], 1
    %23 = vsyncpa %s22, 0
    loop: start=0, step=1, limit=4
    $region2: #{_lambda_.17} parent=1 // loop_pre_header
      _
    $region3: #{_lambda_.17} parent=1 // loop_header
      %s25 = sphi 0, %s29
      %p26 = scmp.ge.s32.totalorder %s25, 4
      %s32 = sphi 0, %s51
      %s33 = sphi 0, %s47
      %s34 = sphi 0, %s43
      %s35 = sphi 0, %s32
      %s36 = sphi 0, %s33
      %s37 = sphi 0, %s34
      %s38 = sphi 0, %s35
      %s39 = sphi 0, %s36
      %s40 = sphi 0, %s37
      %s56 = sphi 0, %s58
      %s59 = sphi 0, %s56
      %s60 = sphi 0, %s59
      %s76 = sphi 0, %s60
      %s84 = sphi 0, %s86
      %s87 = sphi 0, %s84
      %s88 = sphi 0, %s87
      %s104 = sphi 0, %s88
      %s112 = sphi 0, %s114
      %s115 = sphi 0, %s112
      %s116 = sphi 0, %s115
      %s132 = sphi 0, %s116
      %s140 = sphi 0, %s142
      %s143 = sphi 0, %s140
      %s144 = sphi 0, %s143
      %s160 = sphi 0, %s144
      %s164 = sphi 0, %s164
      %s166 = sphi 0, %s164
      %s167 = sphi 0, %s166
      %s181 = sphi 0, %s167
      %s185 = sphi 0, %s185
      %s187 = sphi 0, %s185
      %s188 = sphi 0, %s187
      %s202 = sphi 0, %s188
      %s210 = sphi 0, %s212
      %s213 = sphi 0, %s210
      %s214 = sphi 0, %s213
      %s230 = sphi 0, %s214
    $region4: #{_lambda_.17} parent=1 // loop_header_branch
      %28 = sbr.rel (%p26) target = $region8
    $region5: #{_lambda_.17} parent=1 // loop_body
      %s30 = ssub.s32 %s25, 1
      %s31 = ssub.s32 %s25, 2
      %s41 = sadd.s32 1, %s34
      %p42 = scmp.ge.s32.totalorder %s41, 1
      %s43 = scalar_select %p42, 0, %s41
      %s44 = sadd.s32 1, %s33
      %s45 = scalar_select %p42, %s44, %s33
      %p46 = scmp.ge.s32.totalorder %s45, 1
      %s47 = scalar_select %p46, 0, %s45
      %s48 = sadd.s32 1, %s32
      %s49 = scalar_select %p46, %s48, %s32
      %p50 = scmp.ge.s32.totalorder %s49, 2
      %s51 = scalar_select %p50, 0, %s49
      %s52 = ssub.s32 %s32, %s51
      %s53 = ssub.s32 %s33, %s47
      %s54 = sor.u32 %s52, %s53
      %p55 = scmp.eq.s32.totalorder %s54, 0
      %s57 = sadd.s32 %s56, 1
      %s58 = scalar_select %p55, %s56, %s57
      %p61 = pneg %p55
      %p62 = scmp.eq.s32.totalorder %s25, 1
      %p63 = por %p61, %p62
      %p64 = scmp.ne.s32.totalorder %s56, %s59
      %p65 = scmp.eq.s32.totalorder %s25, 0
      %p66 = por %p64, %p65
      %p67 = scmp.ne.s32.totalorder %s56, %s59
      %p68 = scmp.eq.s32.totalorder %s30, 1
      %p69 = por %p67, %p68
      %p70 = scmp.ne.s32.totalorder %s59, %s60
      %p71 = scmp.eq.s32.totalorder %s30, 0
      %p72 = por %p70, %p71
      %p73 = scmp.ne.s32.totalorder %s59, %s60
      %p74 = scmp.eq.s32.totalorder %s31, 1
      %p75 = por %p73, %p74
      %p77 = scmp.ne.s32.totalorder %s60, %s76
      %p78 = scmp.eq.s32.totalorder %s31, 0
      %p79 = por %p77, %p78
      %s80 = ssub.s32 %s32, %s51
      %s81 = ssub.s32 %s33, %s47
      %s82 = sor.u32 %s80, %s81
      %p83 = scmp.eq.s32.totalorder %s82, 0
      %s85 = sadd.s32 %s84, 1
      %s86 = scalar_select %p83, %s84, %s85
      %p89 = pneg %p83
      %p90 = scmp.eq.s32.totalorder %s25, 1
      %p91 = por %p89, %p90
      %p92 = scmp.ne.s32.totalorder %s84, %s87
      %p93 = scmp.eq.s32.totalorder %s25, 0
      %p94 = por %p92, %p93
      %p95 = scmp.ne.s32.totalorder %s84, %s87
      %p96 = scmp.eq.s32.totalorder %s30, 1
      %p97 = por %p95, %p96
      %p98 = scmp.ne.s32.totalorder %s87, %s88
      %p99 = scmp.eq.s32.totalorder %s30, 0
      %p100 = por %p98, %p99
      %p101 = scmp.ne.s32.totalorder %s87, %s88
      %p102 = scmp.eq.s32.totalorder %s31, 1
      %p103 = por %p101, %p102
      %p105 = scmp.ne.s32.totalorder %s88, %s104
      %p106 = scmp.eq.s32.totalorder %s31, 0
      %p107 = por %p105, %p106
      %s108 = ssub.s32 %s32, %s51
      %s109 = ssub.s32 %s34, %s43
      %s110 = sor.u32 %s108, %s109
      %p111 = scmp.eq.s32.totalorder %s110, 0
      %s113 = sadd.s32 %s112, 1
      %s114 = scalar_select %p111, %s112, %s113
      %p117 = pneg %p111
      %p118 = scmp.eq.s32.totalorder %s25, 1
      %p119 = por %p117, %p118
      %p120 = scmp.ne.s32.totalorder %s112, %s115
      %p121 = scmp.eq.s32.totalorder %s25, 0
      %p122 = por %p120, %p121
      %p123 = scmp.ne.s32.totalorder %s112, %s115
      %p124 = scmp.eq.s32.totalorder %s30, 1
      %p125 = por %p123, %p124
      %p126 = scmp.ne.s32.totalorder %s115, %s116
      %p127 = scmp.eq.s32.totalorder %s30, 0
      %p128 = por %p126, %p127
      %p129 = scmp.ne.s32.totalorder %s115, %s116
      %p130 = scmp.eq.s32.totalorder %s31, 1
      %p131 = por %p129, %p130
      %p133 = scmp.ne.s32.totalorder %s116, %s132
      %p134 = scmp.eq.s32.totalorder %s31, 0
      %p135 = por %p133, %p134
      %s136 = ssub.s32 %s32, %s51
      %s137 = ssub.s32 %s34, %s43
      %s138 = sor.u32 %s136, %s137
      %p139 = scmp.eq.s32.totalorder %s138, 0
      %s141 = sadd.s32 %s140, 1
      %s142 = scalar_select %p139, %s140, %s141
      %p145 = pneg %p139
      %p146 = scmp.eq.s32.totalorder %s25, 1
      %p147 = por %p145, %p146
      %p148 = scmp.ne.s32.totalorder %s140, %s143
      %p149 = scmp.eq.s32.totalorder %s25, 0
      %p150 = por %p148, %p149
      %p151 = scmp.ne.s32.totalorder %s140, %s143
      %p152 = scmp.eq.s32.totalorder %s30, 1
      %p153 = por %p151, %p152
      %p154 = scmp.ne.s32.totalorder %s143, %s144
      %p155 = scmp.eq.s32.totalorder %s30, 0
      %p156 = por %p154, %p155
      %p157 = scmp.ne.s32.totalorder %s143, %s144
      %p158 = scmp.eq.s32.totalorder %s31, 1
      %p159 = por %p157, %p158
      %p161 = scmp.ne.s32.totalorder %s144, %s160
      %p162 = scmp.eq.s32.totalorder %s31, 0
      %p163 = por %p161, %p162
      %s165 = sadd.s32 %s164, 1
      %p168 = scmp.eq.s32.totalorder %s25, 1
      %p169 = scmp.ne.s32.totalorder %s164, %s166
      %p170 = scmp.eq.s32.totalorder %s25, 0
      %p171 = por %p169, %p170
      %p172 = scmp.ne.s32.totalorder %s164, %s166
      %p173 = scmp.eq.s32.totalorder %s30, 1
      %p174 = por %p172, %p173
      %p175 = scmp.ne.s32.totalorder %s166, %s167
      %p176 = scmp.eq.s32.totalorder %s30, 0
      %p177 = por %p175, %p176
      %p178 = scmp.ne.s32.totalorder %s166, %s167
      %p179 = scmp.eq.s32.totalorder %s31, 1
      %p180 = por %p178, %p179
      %p182 = scmp.ne.s32.totalorder %s167, %s181
      %p183 = scmp.eq.s32.totalorder %s31, 0
      %p184 = por %p182, %p183
      %s186 = sadd.s32 %s185, 1
      %p189 = scmp.eq.s32.totalorder %s25, 1
      %p190 = scmp.ne.s32.totalorder %s185, %s187
      %p191 = scmp.eq.s32.totalorder %s25, 0
      %p192 = por %p190, %p191
      %p193 = scmp.ne.s32.totalorder %s185, %s187
      %p194 = scmp.eq.s32.totalorder %s30, 1
      %p195 = por %p193, %p194
      %p196 = scmp.ne.s32.totalorder %s187, %s188
      %p197 = scmp.eq.s32.totalorder %s30, 0
      %p198 = por %p196, %p197
      %p199 = scmp.ne.s32.totalorder %s187, %s188
      %p200 = scmp.eq.s32.totalorder %s31, 1
      %p201 = por %p199, %p200
      %p203 = scmp.ne.s32.totalorder %s188, %s202
      %p204 = scmp.eq.s32.totalorder %s31, 0
      %p205 = por %p203, %p204
      %s206 = ssub.s32 %s32, %s51
      %s207 = ssub.s32 %s33, %s47
      %s208 = sor.u32 %s206, %s207
      %p209 = scmp.eq.s32.totalorder %s208, 0
      %s211 = sadd.s32 %s210, 1
      %s212 = scalar_select %p209, %s210, %s211
      %p215 = pneg %p209
      %p216 = scmp.eq.s32.totalorder %s25, 1
      %p217 = por %p215, %p216
      %p218 = scmp.ne.s32.totalorder %s210, %s213
      %p219 = scmp.eq.s32.totalorder %s25, 0
      %p220 = por %p218, %p219
      %p221 = scmp.ne.s32.totalorder %s210, %s213
      %p222 = scmp.eq.s32.totalorder %s30, 1
      %p223 = por %p221, %p222
      %p224 = scmp.ne.s32.totalorder %s213, %s214
      %p225 = scmp.eq.s32.totalorder %s30, 0
      %p226 = por %p224, %p225
      %p227 = scmp.ne.s32.totalorder %s213, %s214
      %p228 = scmp.eq.s32.totalorder %s31, 1
      %p229 = por %p227, %p228
      %p231 = scmp.ne.s32.totalorder %s214, %s230
      %p232 = scmp.eq.s32.totalorder %s31, 0
      %p233 = por %p231, %p232
      %p234 = scmp.le.s32.totalorder 1, %s25
      %p235 = scmp.lt.s32.totalorder %s25, 3
      %p236 = pnand %p234, %p235
      %p237 = pneg %p236
      // Predicated region
      $region9: #{_lambda_.17} parent=5 // pred_check
        _
      $region10: #{_lambda_.17} parent=5 // pred_check_branch
        %239 = sbr.rel (%p236) target = $region12
      $region11: #{_lambda_.17} parent=5 // pred_region
        %s240 = ssub.s32 %s25, 1
        // Predicated region
        $region13: #{_lambda_.17} parent=11 // pred_check
          %p241 = pneg %p177
        $region14: #{_lambda_.17} parent=11 // pred_check_branch
          %243 = sbr.rel (%p241) target = $region16
        $region15: #{_lambda_.17} parent=11 // pred_region
          %s245 = ssub.s32 256, 256
          %246 = vsyncadd [#allocation12], %s245
          %s247 = sshll.u32 [#allocation13], 4
          %s248 = int_to_ptr.vmem [resolvable:$true] %s247
          %253 = dma.hbm_to_vmem [thread:$0]  %s4, 256, %s248, [#allocation12], 64, 64, 4
        $region16: #{_lambda_.17} parent=11 // pred_fallthru
          _
        // Predicated region
        $region17: #{_lambda_.17} parent=11 // pred_check
          %p254 = pneg %p198
        $region18: #{_lambda_.17} parent=11 // pred_check_branch
          %256 = sbr.rel (%p254) target = $region20
        $region19: #{_lambda_.17} parent=11 // pred_region
          %s258 = ssub.s32 16, 16
          %259 = vsyncadd [#allocation15], %s258
          %s261 = sshll.u32 [#allocation14], 4
          %s262 = int_to_ptr.vmem [resolvable:$true] %s261
          %264 = dma.hbm_to_vmem [thread:$0]  %s5, 16, %s262, [#allocation15]
        $region20: #{_lambda_.17} parent=11 // pred_fallthru
          _
      $region12: #{_lambda_.17} parent=5 // pred_fallthru
        _
      %p265 = scmp.lt.s32.totalorder %s25, 2
      // Predicated region
      $region21: #{_lambda_.17} parent=5 // pred_check
        %p266 = pneg %p265
      $region22: #{_lambda_.17} parent=5 // pred_check_branch
        %268 = sbr.rel (%p266) target = $region24
      $region23: #{_lambda_.17} parent=5 // pred_region
        // Predicated region
        $region25: #{_lambda_.17} parent=23 // pred_check
          %p269 = pneg %p66
        $region26: #{_lambda_.17} parent=23 // pred_check_branch
          %271 = sbr.rel (%p269) target = $region28
        $region27: #{_lambda_.17} parent=23 // pred_region
          %s272 = sand.u32 %s56, 1
          %s273 = scalar_lea.sflag [#allocation6], %s272
          %s274 = sand.u32 %s56, 1
          %s275 = smul.addr %s274, 4
          %s276 = scalar_lea.vmem [#allocation5], %s275
          %s278 = ssub.s32 64, 64
          %279 = vsyncadd %s273, %s278
          %s280 = sadd.s32 %s33, %s32
          %s281 = smul.addr %s280, 64
          %s282 = scalar_lea.hbm %s0, %s281
          %s284 = sshll.u32 %s276, 4
          %s285 = int_to_ptr.vmem [resolvable:$true] %s284
          %287 = dma.hbm_to_vmem [thread:$0]  %s282, 64, %s285, %s273
        $region28: #{_lambda_.17} parent=23 // pred_fallthru
          _
        // Predicated region
        $region29: #{_lambda_.17} parent=23 // pred_check
          %p288 = pneg %p94
        $region30: #{_lambda_.17} parent=23 // pred_check_branch
          %290 = sbr.rel (%p288) target = $region32
        $region31: #{_lambda_.17} parent=23 // pred_region
          %s291 = sand.u32 %s25, 1
          %s292 = scalar_lea.sflag [#allocation9], %s291
          %s293 = sand.u32 %s84, 1
          %s294 = smul.addr %s293, 16
          %s295 = scalar_lea.vmem [#allocation8], %s294
          %s297 = ssub.s32 256, 256
          %298 = vsyncadd %s292, %s297
          %s299 = smul.addr %s32, 4
          %s300 = sadd.s32 %s33, %s299
          %s301 = smul.addr %s300, 64
          %s302 = scalar_lea.hbm %s1, %s301
          %s303 = sshll.u32 %s295, 4
          %s304 = int_to_ptr.vmem [resolvable:$true] %s303
          %309 = dma.hbm_to_vmem [thread:$0]  %s302, 256, %s304, %s292, 64, 64, 4
        $region32: #{_lambda_.17} parent=23 // pred_fallthru
          _
        // Predicated region
        $region33: #{_lambda_.17} parent=23 // pred_check
          %p310 = pneg %p122
        $region34: #{_lambda_.17} parent=23 // pred_check_branch
          %312 = sbr.rel (%p310) target = $region36
        $region35: #{_lambda_.17} parent=23 // pred_region
          %s313 = sand.u32 %s25, 1
          %s314 = scalar_lea.sflag [#allocation9], %s313
          %s315 = sand.u32 %s112, 1
          %s316 = smul.addr %s315, 16
          %s317 = scalar_lea.vmem [#allocation10], %s316
          %s319 = ssub.s32 256, 256
          %320 = vsyncadd %s314, %s319
          %s321 = smul.addr %s32, 4
          %s322 = sadd.s32 %s34, %s321
          %s323 = smul.addr %s322, 64
          %s324 = scalar_lea.hbm %s2, %s323
          %s325 = sshll.u32 %s317, 4
          %s326 = int_to_ptr.vmem [resolvable:$true] %s325
          %331 = dma.hbm_to_vmem [thread:$0]  %s324, 256, %s326, %s314, 64, 64, 4
        $region36: #{_lambda_.17} parent=23 // pred_fallthru
          _
        // Predicated region
        $region37: #{_lambda_.17} parent=23 // pred_check
          %p332 = pneg %p150
        $region38: #{_lambda_.17} parent=23 // pred_check_branch
          %334 = sbr.rel (%p332) target = $region40
        $region39: #{_lambda_.17} parent=23 // pred_region
          %s335 = sand.u32 %s25, 1
          %s336 = scalar_lea.sflag [#allocation12], %s335
          %s337 = sand.u32 %s140, 1
          %s338 = smul.addr %s337, 16
          %s339 = scalar_lea.vmem [#allocation11], %s338
          %s341 = ssub.s32 256, 256
          %342 = vsyncadd %s336, %s341
          %s343 = smul.addr %s32, 4
          %s344 = sadd.s32 %s34, %s343
          %s345 = smul.addr %s344, 64
          %s346 = scalar_lea.hbm %s3, %s345
          %s347 = sshll.u32 %s339, 4
          %s348 = int_to_ptr.vmem [resolvable:$true] %s347
          %353 = dma.hbm_to_vmem [thread:$0]  %s346, 256, %s348, %s336, 64, 64, 4
        $region40: #{_lambda_.17} parent=23 // pred_fallthru
          _
      $region24: #{_lambda_.17} parent=5 // pred_fallthru
        _
      %p354 = scmp.le.s32.totalorder 1, %s25
      %p355 = scmp.lt.s32.totalorder %s25, 3
      %p356 = pnand %p354, %p355
      %p357 = pneg %p356
      // Predicated region
      $region41: #{_lambda_.17} parent=5 // pred_check
        _
      $region42: #{_lambda_.17} parent=5 // pred_check_branch
        %359 = sbr.rel (%p356) target = $region44
      $region43: #{_lambda_.17} parent=5 // pred_region
        %s360 = ssub.s32 %s25, 1
        %s361 = sand.u32 %s59, 1
        %s362 = scalar_lea.sflag [#allocation6], %s361
        %s363 = sand.u32 %s59, 1
        %s364 = smul.addr %s363, 4
        %s365 = scalar_lea.vmem [#allocation5], %s364
        // Predicated region
        $region45: #{_lambda_.17} parent=43 // pred_check
          %p366 = pneg %p72
        $region46: #{_lambda_.17} parent=43 // pred_check_branch
          %368 = sbr.rel (%p366) target = $region48
        $region47: #{_lambda_.17} parent=43 // pred_region
          %369 = dma.done %s362, 64
        $region48: #{_lambda_.17} parent=43 // pred_fallthru
          _
        %s370 = sand.u32 %s30, 1
        %s371 = scalar_lea.sflag [#allocation9], %s370
        %s372 = sand.u32 %s87, 1
        %s373 = smul.addr %s372, 16
        %s374 = scalar_lea.vmem [#allocation8], %s373
        // Predicated region
        $region49: #{_lambda_.17} parent=43 // pred_check
          %p375 = pneg %p100
        $region50: #{_lambda_.17} parent=43 // pred_check_branch
          %377 = sbr.rel (%p375) target = $region52
        $region51: #{_lambda_.17} parent=43 // pred_region
          %378 = dma.done %s371, 256
        $region52: #{_lambda_.17} parent=43 // pred_fallthru
          _
        %s379 = sand.u32 %s30, 1
        %s380 = scalar_lea.sflag [#allocation9], %s379
        %s381 = sand.u32 %s115, 1
        %s382 = smul.addr %s381, 16
        %s383 = scalar_lea.vmem [#allocation10], %s382
        // Predicated region
        $region53: #{_lambda_.17} parent=43 // pred_check
          %p384 = pneg %p128
        $region54: #{_lambda_.17} parent=43 // pred_check_branch
          %386 = sbr.rel (%p384) target = $region56
        $region55: #{_lambda_.17} parent=43 // pred_region
          %387 = dma.done %s380, 256
        $region56: #{_lambda_.17} parent=43 // pred_fallthru
          _
        %s388 = sand.u32 %s30, 1
        %s389 = scalar_lea.sflag [#allocation12], %s388
        %s390 = sand.u32 %s143, 1
        %s391 = smul.addr %s390, 16
        %s392 = scalar_lea.vmem [#allocation11], %s391
        // Predicated region
        $region57: #{_lambda_.17} parent=43 // pred_check
          %p393 = pneg %p156
        $region58: #{_lambda_.17} parent=43 // pred_check_branch
          %395 = sbr.rel (%p393) target = $region60
        $region59: #{_lambda_.17} parent=43 // pred_region
          %396 = dma.done %s389, 256
        $region60: #{_lambda_.17} parent=43 // pred_fallthru
          _
        // Predicated region
        $region61: #{_lambda_.17} parent=43 // pred_check
          %p397 = pneg %p177
        $region62: #{_lambda_.17} parent=43 // pred_check_branch
          %399 = sbr.rel (%p397) target = $region64
        $region63: #{_lambda_.17} parent=43 // pred_region
          %400 = dma.done [#allocation12], 256
        $region64: #{_lambda_.17} parent=43 // pred_fallthru
          _
        // Predicated region
        $region65: #{_lambda_.17} parent=43 // pred_check
          %p401 = pneg %p198
        $region66: #{_lambda_.17} parent=43 // pred_check_branch
          %403 = sbr.rel (%p401) target = $region68
        $region67: #{_lambda_.17} parent=43 // pred_region
          %404 = dma.done [#allocation15], 16
        $region68: #{_lambda_.17} parent=43 // pred_fallthru
          _
        %s405 = sand.u32 %s59, 1
        %s406 = scalar_lea.sflag [#allocation6], %s405
        %s407 = sand.u32 %s59, 1
        %s408 = smul.addr %s407, 4
        %s409 = scalar_lea.vmem [#allocation5], %s408
        %p410 = pneg %p72
        %p411 = pneg %p69
        %s412 = sand.u32 %s30, 1
        %s413 = scalar_lea.sflag [#allocation9], %s412
        %s414 = sand.u32 %s87, 1
        %s415 = smul.addr %s414, 16
        %s416 = scalar_lea.vmem [#allocation8], %s415
        %p417 = pneg %p100
        %p418 = pneg %p97
        %s419 = sand.u32 %s30, 1
        %s420 = scalar_lea.sflag [#allocation9], %s419
        %s421 = sand.u32 %s115, 1
        %s422 = smul.addr %s421, 16
        %s423 = scalar_lea.vmem [#allocation10], %s422
        %p424 = pneg %p128
        %p425 = pneg %p125
        %s426 = sand.u32 %s30, 1
        %s427 = scalar_lea.sflag [#allocation12], %s426
        %s428 = sand.u32 %s143, 1
        %s429 = smul.addr %s428, 16
        %s430 = scalar_lea.vmem [#allocation11], %s429
        %p431 = pneg %p156
        %p432 = pneg %p153
        %p433 = pneg %p177
        %p434 = pneg %p174
        %p435 = pneg %p198
        %p436 = pneg %p195
        %p437 = pneg %p226
        %p438 = pneg %p223
        %s439 = sand.u32 %s213, 1
        %s440 = scalar_lea.sflag [#allocation7], %s439
        %s441 = sand.u32 %s213, 1
        %s442 = smul.addr %s441, 4
        %s443 = scalar_lea.vmem [#allocation16], %s442
        %p445 = scmp.eq.s32.totalorder %s37, 0
        // Predicated region
        $region69: #{_lambda_.17} parent=43 // pred_check
          %p446 = pneg %p445
        $region70: #{_lambda_.17} parent=43 // pred_check_branch
          %448 = sbr.rel (%p446) target = $region72
        $region71: #{_lambda_.17} parent=43 // pred_region
          %vm449 = vcmask 7168
          %450 = vst.msk [vmem:[#allocation2] sm:$0xff] %vm449, -1e+30
          %451 = vst.msk [vmem:[#allocation2 + $0x8] sm:$0xff] %vm449, -1e+30
          %452 = vst.msk [vmem:[#allocation2 + $0x10] sm:$0xff] %vm449, -1e+30
          %453 = vst.msk [vmem:[#allocation2 + $0x18] sm:$0xff] %vm449, -1e+30
          %454 = vst.msk [vmem:[#allocation3] sm:$0xff] %vm449, 0.0
          %455 = vst.msk [vmem:[#allocation3 + $0x8] sm:$0xff] %vm449, 0.0
          %456 = vst.msk [vmem:[#allocation3 + $0x10] sm:$0xff] %vm449, 0.0
          %457 = vst.msk [vmem:[#allocation3 + $0x18] sm:$0xff] %vm449, 0.0
          %vm458 = vcmask 64512
          %459 = vst.msk [vmem:[#allocation4] sm:$0xff] %vm458, 0.0
          %460 = vst.msk [vmem:[#allocation4 + $0x8] sm:$0xff] %vm458, 0.0
          %461 = vst.msk [vmem:[#allocation4 + $0x10] sm:$0xff] %vm458, 0.0
          %462 = vst.msk [vmem:[#allocation4 + $0x18] sm:$0xff] %vm458, 0.0
        $region72: #{_lambda_.17} parent=43 // pred_fallthru
          _
        %v463 = vld [vmem:[%s374] sm:$0xf]
        %v464 = vld [vmem:[%s374 + $0x4] sm:$0xf]
        %v465 = vld [vmem:[%s374 + $0x8] sm:$0xf]
        %v466 = vld [vmem:[%s374 + $0xc] sm:$0xf]
        %v467 = vld [vmem:[%s383] sm:$0xf]
        %v468 = vld [vmem:[%s383 + $0x4] sm:$0xf]
        %v469 = vld [vmem:[%s383 + $0x8] sm:$0xf]
        %v470 = vld [vmem:[%s383 + $0xc] sm:$0xf]
        %vm471 = vcmask 64512
        %v473 = vsel %vm471, %v463, 0
        %v476 = vsel %vm471, %v467, 0
        %478 = vmatprep.subr.bf16.mxu0 0
        %479 = vmatpush1.bf16.xpose.msra.mxu0 %v476
        %480 = vmatprep.subr.bf16.mxu0 0
        %481 = vmatpush1.bf16.xpose.msra.mxu0 0
        %482 = vmatprep.subr.bf16.mxu0 0
        %483 = vmatpush1.bf16.xpose.msra.mxu0 0
        %484 = vmatprep.subr.bf16.mxu0 0
        %485 = vmatpush1.bf16.xpose.msra.mxu0 0
        %486 = vmatprep.subr.bf16.mxu0 0
        %487 = vmatpush1.bf16.xpose.msra.mxu0 0
        %488 = vmatprep.subr.bf16.mxu0 0
        %489 = vmatpush1.bf16.xpose.msra.mxu0 0
        %490 = vmatprep.subr.bf16.mxu0 0
        %491 = vmatpush1.bf16.xpose.msra.mxu0 0
        %492 = vmatprep.subr.bf16.mxu0 0
        %493 = vmatpush1.bf16.xpose.msra.mxu0 0
        %494 = vmatprep.subr.bf16.mxu0 0
        %495 = vmatpush1.bf16.xpose.msra.mxu0 0
        %496 = vmatprep.subr.bf16.mxu0 0
        %497 = vmatpush1.bf16.xpose.msra.mxu0 0
        %498 = vmatprep.subr.bf16.mxu0 0
        %499 = vmatpush1.bf16.xpose.msra.mxu0 0
        %500 = vmatprep.subr.bf16.mxu0 0
        %501 = vmatpush1.bf16.xpose.msra.mxu0 0
        %502 = vmatprep.subr.bf16.mxu0 0
        %503 = vmatpush1.bf16.xpose.msra.mxu0 0
        %504 = vmatprep.subr.bf16.mxu0 0
        %505 = vmatpush1.bf16.xpose.msra.mxu0 0
        %506 = vmatprep.subr.bf16.mxu0 0
        %507 = vmatpush1.bf16.xpose.msra.mxu0 0
        %508 = vmatprep.subr.bf16.mxu0 0
        %509 = vmatpush1.bf16.xpose.msra.mxu0 0
        %510 = vmatprep.mubr.bf16.mxu0 0
        %511 = vmatmul.mubr.bf16.gmra.mrb[0].mxu0 %v473
        %v512 = vpop.f32.mrb[0].mxu0
        %v513 = vadd.f32 0.0, %v512
        %v514 = vpop.f32.mrb[0].mxu0
        %v515 = vpop.f32.mrb[0].mxu0
        %v516 = vpop.f32.mrb[0].mxu0
        %517 = vdwg.mxu0
        %v519 = vsel %vm471, %v464, 0
        %v522 = vsel %vm471, %v468, 0
        %524 = vmatprep.subr.bf16.mxu0 0
        %525 = vmatpush1.bf16.xpose.msra.mxu0 %v522
        %526 = vmatprep.subr.bf16.mxu0 0
        %527 = vmatpush1.bf16.xpose.msra.mxu0 0
        %528 = vmatprep.subr.bf16.mxu0 0
        %529 = vmatpush1.bf16.xpose.msra.mxu0 0
        %530 = vmatprep.subr.bf16.mxu0 0
        %531 = vmatpush1.bf16.xpose.msra.mxu0 0
        %532 = vmatprep.subr.bf16.mxu0 0
        %533 = vmatpush1.bf16.xpose.msra.mxu0 0
        %534 = vmatprep.subr.bf16.mxu0 0
        %535 = vmatpush1.bf16.xpose.msra.mxu0 0
        %536 = vmatprep.subr.bf16.mxu0 0
        %537 = vmatpush1.bf16.xpose.msra.mxu0 0
        %538 = vmatprep.subr.bf16.mxu0 0
        %539 = vmatpush1.bf16.xpose.msra.mxu0 0
        %540 = vmatprep.subr.bf16.mxu0 0
        %541 = vmatpush1.bf16.xpose.msra.mxu0 0
        %542 = vmatprep.subr.bf16.mxu0 0
        %543 = vmatpush1.bf16.xpose.msra.mxu0 0
        %544 = vmatprep.subr.bf16.mxu0 0
        %545 = vmatpush1.bf16.xpose.msra.mxu0 0
        %546 = vmatprep.subr.bf16.mxu0 0
        %547 = vmatpush1.bf16.xpose.msra.mxu0 0
        %548 = vmatprep.subr.bf16.mxu0 0
        %549 = vmatpush1.bf16.xpose.msra.mxu0 0
        %550 = vmatprep.subr.bf16.mxu0 0
        %551 = vmatpush1.bf16.xpose.msra.mxu0 0
        %552 = vmatprep.subr.bf16.mxu0 0
        %553 = vmatpush1.bf16.xpose.msra.mxu0 0
        %554 = vmatprep.subr.bf16.mxu0 0
        %555 = vmatpush1.bf16.xpose.msra.mxu0 0
        %556 = vmatprep.mubr.bf16.mxu0 0
        %557 = vmatmul.mubr.bf16.gmra.mrb[0].mxu0 %v519
        %v558 = vpop.f32.mrb[0].mxu0
        %v559 = vadd.f32 0.0, %v558
        %v560 = vpop.f32.mrb[0].mxu0
        %v561 = vpop.f32.mrb[0].mxu0
        %v562 = vpop.f32.mrb[0].mxu0
        %563 = vdwg.mxu0
        %v565 = vsel %vm471, %v465, 0
        %v568 = vsel %vm471, %v469, 0
        %570 = vmatprep.subr.bf16.mxu0 0
        %571 = vmatpush1.bf16.xpose.msra.mxu0 %v568
        %572 = vmatprep.subr.bf16.mxu0 0
        %573 = vmatpush1.bf16.xpose.msra.mxu0 0
        %574 = vmatprep.subr.bf16.mxu0 0
        %575 = vmatpush1.bf16.xpose.msra.mxu0 0
        %576 = vmatprep.subr.bf16.mxu0 0
        %577 = vmatpush1.bf16.xpose.msra.mxu0 0
        %578 = vmatprep.subr.bf16.mxu0 0
        %579 = vmatpush1.bf16.xpose.msra.mxu0 0
        %580 = vmatprep.subr.bf16.mxu0 0
        %581 = vmatpush1.bf16.xpose.msra.mxu0 0
        %582 = vmatprep.subr.bf16.mxu0 0
        %583 = vmatpush1.bf16.xpose.msra.mxu0 0
        %584 = vmatprep.subr.bf16.mxu0 0
        %585 = vmatpush1.bf16.xpose.msra.mxu0 0
        %586 = vmatprep.subr.bf16.mxu0 0
        %587 = vmatpush1.bf16.xpose.msra.mxu0 0
        %588 = vmatprep.subr.bf16.mxu0 0
        %589 = vmatpush1.bf16.xpose.msra.mxu0 0
        %590 = vmatprep.subr.bf16.mxu0 0
        %591 = vmatpush1.bf16.xpose.msra.mxu0 0
        %592 = vmatprep.subr.bf16.mxu0 0
        %593 = vmatpush1.bf16.xpose.msra.mxu0 0
        %594 = vmatprep.subr.bf16.mxu0 0
        %595 = vmatpush1.bf16.xpose.msra.mxu0 0
        %596 = vmatprep.subr.bf16.mxu0 0
        %597 = vmatpush1.bf16.xpose.msra.mxu0 0
        %598 = vmatprep.subr.bf16.mxu0 0
        %599 = vmatpush1.bf16.xpose.msra.mxu0 0
        %600 = vmatprep.subr.bf16.mxu0 0
        %601 = vmatpush1.bf16.xpose.msra.mxu0 0
        %602 = vmatprep.mubr.bf16.mxu0 0
        %603 = vmatmul.mubr.bf16.gmra.mrb[0].mxu0 %v565
        %v604 = vpop.f32.mrb[0].mxu0
        %v605 = vadd.f32 0.0, %v604
        %v606 = vpop.f32.mrb[0].mxu0
        %v607 = vpop.f32.mrb[0].mxu0
        %v608 = vpop.f32.mrb[0].mxu0
        %609 = vdwg.mxu0
        %v611 = vsel %vm471, %v466, 0
        %v614 = vsel %vm471, %v470, 0
        %616 = vmatprep.subr.bf16.mxu0 0
        %617 = vmatpush1.bf16.xpose.msra.mxu0 %v614
        %618 = vmatprep.subr.bf16.mxu0 0
        %619 = vmatpush1.bf16.xpose.msra.mxu0 0
        %620 = vmatprep.subr.bf16.mxu0 0
        %621 = vmatpush1.bf16.xpose.msra.mxu0 0
        %622 = vmatprep.subr.bf16.mxu0 0
        %623 = vmatpush1.bf16.xpose.msra.mxu0 0
        %624 = vmatprep.subr.bf16.mxu0 0
        %625 = vmatpush1.bf16.xpose.msra.mxu0 0
        %626 = vmatprep.subr.bf16.mxu0 0
        %627 = vmatpush1.bf16.xpose.msra.mxu0 0
        %628 = vmatprep.subr.bf16.mxu0 0
        %629 = vmatpush1.bf16.xpose.msra.mxu0 0
        %630 = vmatprep.subr.bf16.mxu0 0
        %631 = vmatpush1.bf16.xpose.msra.mxu0 0
        %632 = vmatprep.subr.bf16.mxu0 0
        %633 = vmatpush1.bf16.xpose.msra.mxu0 0
        %634 = vmatprep.subr.bf16.mxu0 0
        %635 = vmatpush1.bf16.xpose.msra.mxu0 0
        %636 = vmatprep.subr.bf16.mxu0 0
        %637 = vmatpush1.bf16.xpose.msra.mxu0 0
        %638 = vmatprep.subr.bf16.mxu0 0
        %639 = vmatpush1.bf16.xpose.msra.mxu0 0
        %640 = vmatprep.subr.bf16.mxu0 0
        %641 = vmatpush1.bf16.xpose.msra.mxu0 0
        %642 = vmatprep.subr.bf16.mxu0 0
        %643 = vmatpush1.bf16.xpose.msra.mxu0 0
        %644 = vmatprep.subr.bf16.mxu0 0
        %645 = vmatpush1.bf16.xpose.msra.mxu0 0
        %646 = vmatprep.subr.bf16.mxu0 0
        %647 = vmatpush1.bf16.xpose.msra.mxu0 0
        %648 = vmatprep.mubr.bf16.mxu0 0
        %649 = vmatmul.mubr.bf16.gmra.mrb[0].mxu0 %v611
        %v650 = vpop.f32.mrb[0].mxu0
        %v651 = vadd.f32 0.0, %v650
        %v652 = vpop.f32.mrb[0].mxu0
        %v653 = vpop.f32.mrb[0].mxu0
        %v654 = vpop.f32.mrb[0].mxu0
        %655 = vdwg.mxu0
        %s656 = smul.u32 %s37, 8
        %v657 = vlaneseq
        %v658 = vand.u32 %v657, 127
        %v659 = vstv %s656
        %v660 = vadd.s32 %v659, %v658
        %vm661 = vcmp.lt.s32.totalorder %v660, 5
        %v662 = vsel %vm661, %v513, -1e+30
        %v663 = vsel %vm661, %v559, -1e+30
        %v664 = vsel %vm661, %v605, -1e+30
        %v665 = vsel %vm661, %v651, -1e+30
        %v666 = vld [vmem:[#allocation2] sm:$0xff]
        %v667 = vld [vmem:[#allocation2 + $0x8] sm:$0xff]
        %v668 = vld [vmem:[#allocation2 + $0x10] sm:$0xff]
        %v669 = vld [vmem:[#allocation2 + $0x18] sm:$0xff]
        %v670 = vsel %vm471, %v662, -inf
        %671 = vmax.xlane.f32.xlu0 %v670
        %v672 = vpop.xlane.xlu0 %671
        %v673 = vsel %vm471, %v663, -inf
        %674 = vmax.xlane.f32.xlu0 %v673
        %v675 = vpop.xlane.xlu0 %674
        %v676 = vsel %vm471, %v664, -inf
        %677 = vmax.xlane.f32.xlu0 %v676
        %v678 = vpop.xlane.xlu0 %677
        %v679 = vsel %vm471, %v665, -inf
        %680 = vmax.xlane.f32.xlu0 %v679
        %v681 = vpop.xlane.xlu0 %680
        %v682 = vmax.f32 %v666, %v672
        %v683 = vmax.f32 %v667, %v675
        %v684 = vmax.f32 %v668, %v678
        %v685 = vmax.f32 %v669, %v681
        %v686 = vsub.f32 %v666, %v682
        %v687 = vsub.f32 %v667, %v683
        %v688 = vsub.f32 %v668, %v684
        %v689 = vsub.f32 %v669, %v685
        %v690 = vmul.f32 %v686, 1.442695
        %v691 = vpow.pop %v690
        %v692 = vmul.f32 %v687, 1.442695
        %v693 = vpow.pop %v692
        %v694 = vmul.f32 %v688, 1.442695
        %v695 = vpow.pop %v694
        %v696 = vmul.f32 %v689, 1.442695
        %v697 = vpow.pop %v696
        %699 = vset.pattern.permute.xlu0 0
        %700 = vperm.xlu0 %699, %v682
        %v701 = vpop.permute.xlu0 %700
        %704 = vset.pattern.permute.xlu0 0
        %705 = vperm.xlu0 %704, %v683
        %v706 = vpop.permute.xlu0 %705
        %709 = vset.pattern.permute.xlu0 0
        %710 = vperm.xlu0 %709, %v684
        %v711 = vpop.permute.xlu0 %710
        %714 = vset.pattern.permute.xlu0 0
        %715 = vperm.xlu0 %714, %v685
        %v716 = vpop.permute.xlu0 %715
        %v718 = vsub.f32 %v662, %v701
        %v719 = vsub.f32 %v663, %v706
        %v720 = vsub.f32 %v664, %v711
        %v721 = vsub.f32 %v665, %v716
        %v722 = vmul.f32 %v718, 1.442695
        %v723 = vpow.pop %v722
        %v724 = vmul.f32 %v719, 1.442695
        %v725 = vpow.pop %v724
        %v726 = vmul.f32 %v720, 1.442695
        %v727 = vpow.pop %v726
        %v728 = vmul.f32 %v721, 1.442695
        %v729 = vpow.pop %v728
        %v730 = vld [vmem:[#allocation3] sm:$0xff]
        %v731 = vld [vmem:[#allocation3 + $0x8] sm:$0xff]
        %v732 = vld [vmem:[#allocation3 + $0x10] sm:$0xff]
        %v733 = vld [vmem:[#allocation3 + $0x18] sm:$0xff]
        %v734 = vmul.f32 %v691, %v730
        %v735 = vmul.f32 %v693, %v731
        %v736 = vmul.f32 %v695, %v732
        %v737 = vmul.f32 %v697, %v733
        %v738 = vsel %vm471, %v723, 0.0
        %739 = vadd.xlane.f32.xlu0 %v738
        %v740 = vpop.xlane.xlu0 %739
        %v741 = vsel %vm471, %v725, 0.0
        %742 = vadd.xlane.f32.xlu0 %v741
        %v743 = vpop.xlane.xlu0 %742
        %v744 = vsel %vm471, %v727, 0.0
        %745 = vadd.xlane.f32.xlu0 %v744
        %v746 = vpop.xlane.xlu0 %745
        %v747 = vsel %vm471, %v729, 0.0
        %748 = vadd.xlane.f32.xlu0 %v747
        %v749 = vpop.xlane.xlu0 %748
        %v750 = vadd.f32 %v734, %v740
        %v751 = vadd.f32 %v735, %v743
        %v752 = vadd.f32 %v736, %v746
        %v753 = vadd.f32 %v737, %v749
        %vm754 = vcmask 7168
        %755 = vst.msk [vmem:[#allocation3] sm:$0xff] %vm754, %v750
        %756 = vst.msk [vmem:[#allocation3 + $0x8] sm:$0xff] %vm754, %v751
        %757 = vst.msk [vmem:[#allocation3 + $0x10] sm:$0xff] %vm754, %v752
        %758 = vst.msk [vmem:[#allocation3 + $0x18] sm:$0xff] %vm754, %v753
        %v759 = vld [vmem:[#allocation4] sm:$0xff]
        %v760 = vld [vmem:[#allocation4 + $0x8] sm:$0xff]
        %v761 = vld [vmem:[#allocation4 + $0x10] sm:$0xff]
        %v762 = vld [vmem:[#allocation4 + $0x18] sm:$0xff]
        %764 = vset.pattern.permute.xlu0 0
        %765 = vperm.xlu0 %764, %v691
        %v766 = vpop.permute.xlu0 %765
        %769 = vset.pattern.permute.xlu0 0
        %770 = vperm.xlu0 %769, %v693
        %v771 = vpop.permute.xlu0 %770
        %774 = vset.pattern.permute.xlu0 0
        %775 = vperm.xlu0 %774, %v695
        %v776 = vpop.permute.xlu0 %775
        %779 = vset.pattern.permute.xlu0 0
        %780 = vperm.xlu0 %779, %v697
        %v781 = vpop.permute.xlu0 %780
        %v783 = vmul.f32 %v766, %v759
        %v784 = vmul.f32 %v771, %v760
        %v785 = vmul.f32 %v776, %v761
        %v786 = vmul.f32 %v781, %v762
        %v787 = vpack.c.bf16 %v723, %v723
        %v788 = vpack.c.bf16 %v725, %v725
        %v789 = vpack.c.bf16 %v727, %v727
        %v790 = vpack.c.bf16 %v729, %v729
        %v791 = vld [vmem:[%s392] sm:$0xf]
        %v792 = vld [vmem:[%s392 + $0x4] sm:$0xf]
        %v793 = vld [vmem:[%s392 + $0x8] sm:$0xf]
        %v794 = vld [vmem:[%s392 + $0xc] sm:$0xf]
        %v796 = vsel %vm471, %v787, 0
        %vm798 = vcmask 1043456
        %v800 = vsel %vm798, %v791, 0
        %802 = vmatprep.subr.bf16.mxu0 0
        %803 = vmatpush1.bf16.msra.mxu0 %v800
        %804 = vmatprep.subr.bf16.mxu0 0
        %805 = vmatpush1.bf16.msra.mxu0 0
        %806 = vmatprep.subr.bf16.mxu0 0
        %807 = vmatpush1.bf16.msra.mxu0 0
        %808 = vmatprep.subr.bf16.mxu0 0
        %809 = vmatpush1.bf16.msra.mxu0 0
        %810 = vmatprep.subr.bf16.mxu0 0
        %811 = vmatpush1.bf16.msra.mxu0 0
        %812 = vmatprep.subr.bf16.mxu0 0
        %813 = vmatpush1.bf16.msra.mxu0 0
        %814 = vmatprep.subr.bf16.mxu0 0
        %815 = vmatpush1.bf16.msra.mxu0 0
        %816 = vmatprep.subr.bf16.mxu0 0
        %817 = vmatpush1.bf16.msra.mxu0 0
        %818 = vmatprep.subr.bf16.mxu0 0
        %819 = vmatpush1.bf16.msra.mxu0 0
        %820 = vmatprep.subr.bf16.mxu0 0
        %821 = vmatpush1.bf16.msra.mxu0 0
        %822 = vmatprep.subr.bf16.mxu0 0
        %823 = vmatpush1.bf16.msra.mxu0 0
        %824 = vmatprep.subr.bf16.mxu0 0
        %825 = vmatpush1.bf16.msra.mxu0 0
        %826 = vmatprep.subr.bf16.mxu0 0
        %827 = vmatpush1.bf16.msra.mxu0 0
        %828 = vmatprep.subr.bf16.mxu0 0
        %829 = vmatpush1.bf16.msra.mxu0 0
        %830 = vmatprep.subr.bf16.mxu0 0
        %831 = vmatpush1.bf16.msra.mxu0 0
        %832 = vmatprep.subr.bf16.mxu0 0
        %833 = vmatpush1.bf16.msra.mxu0 0
        %834 = vmatprep.mubr.bf16.mxu0 0
        %835 = vmatmul.mubr.bf16.gmra.mrb[0].mxu0 %v796
        %v836 = vpop.f32.mrb[0].mxu0
        %v837 = vadd.f32 0.0, %v836
        %v838 = vpop.f32.mrb[0].mxu0
        %v839 = vpop.f32.mrb[0].mxu0
        %v840 = vpop.f32.mrb[0].mxu0
        %841 = vdwg.mxu0
        %v843 = vsel %vm471, %v788, 0
        %v846 = vsel %vm798, %v792, 0
        %848 = vmatprep.subr.bf16.mxu0 0
        %849 = vmatpush1.bf16.msra.mxu0 %v846
        %850 = vmatprep.subr.bf16.mxu0 0
        %851 = vmatpush1.bf16.msra.mxu0 0
        %852 = vmatprep.subr.bf16.mxu0 0
        %853 = vmatpush1.bf16.msra.mxu0 0
        %854 = vmatprep.subr.bf16.mxu0 0
        %855 = vmatpush1.bf16.msra.mxu0 0
        %856 = vmatprep.subr.bf16.mxu0 0
        %857 = vmatpush1.bf16.msra.mxu0 0
        %858 = vmatprep.subr.bf16.mxu0 0
        %859 = vmatpush1.bf16.msra.mxu0 0
        %860 = vmatprep.subr.bf16.mxu0 0
        %861 = vmatpush1.bf16.msra.mxu0 0
        %862 = vmatprep.subr.bf16.mxu0 0
        %863 = vmatpush1.bf16.msra.mxu0 0
        %864 = vmatprep.subr.bf16.mxu0 0
        %865 = vmatpush1.bf16.msra.mxu0 0
        %866 = vmatprep.subr.bf16.mxu0 0
        %867 = vmatpush1.bf16.msra.mxu0 0
        %868 = vmatprep.subr.bf16.mxu0 0
        %869 = vmatpush1.bf16.msra.mxu0 0
        %870 = vmatprep.subr.bf16.mxu0 0
        %871 = vmatpush1.bf16.msra.mxu0 0
        %872 = vmatprep.subr.bf16.mxu0 0
        %873 = vmatpush1.bf16.msra.mxu0 0
        %874 = vmatprep.subr.bf16.mxu0 0
        %875 = vmatpush1.bf16.msra.mxu0 0
        %876 = vmatprep.subr.bf16.mxu0 0
        %877 = vmatpush1.bf16.msra.mxu0 0
        %878 = vmatprep.subr.bf16.mxu0 0
        %879 = vmatpush1.bf16.msra.mxu0 0
        %880 = vmatprep.mubr.bf16.mxu0 0
        %881 = vmatmul.mubr.bf16.gmra.mrb[0].mxu0 %v843
        %v882 = vpop.f32.mrb[0].mxu0
        %v883 = vadd.f32 0.0, %v882
        %v884 = vpop.f32.mrb[0].mxu0
        %v885 = vpop.f32.mrb[0].mxu0
        %v886 = vpop.f32.mrb[0].mxu0
        %887 = vdwg.mxu0
        %v889 = vsel %vm471, %v789, 0
        %v892 = vsel %vm798, %v793, 0
        %894 = vmatprep.subr.bf16.mxu0 0
        %895 = vmatpush1.bf16.msra.mxu0 %v892
        %896 = vmatprep.subr.bf16.mxu0 0
        %897 = vmatpush1.bf16.msra.mxu0 0
        %898 = vmatprep.subr.bf16.mxu0 0
        %899 = vmatpush1.bf16.msra.mxu0 0
        %900 = vmatprep.subr.bf16.mxu0 0
        %901 = vmatpush1.bf16.msra.mxu0 0
        %902 = vmatprep.subr.bf16.mxu0 0
        %903 = vmatpush1.bf16.msra.mxu0 0
        %904 = vmatprep.subr.bf16.mxu0 0
        %905 = vmatpush1.bf16.msra.mxu0 0
        %906 = vmatprep.subr.bf16.mxu0 0
        %907 = vmatpush1.bf16.msra.mxu0 0
        %908 = vmatprep.subr.bf16.mxu0 0
        %909 = vmatpush1.bf16.msra.mxu0 0
        %910 = vmatprep.subr.bf16.mxu0 0
        %911 = vmatpush1.bf16.msra.mxu0 0
        %912 = vmatprep.subr.bf16.mxu0 0
        %913 = vmatpush1.bf16.msra.mxu0 0
        %914 = vmatprep.subr.bf16.mxu0 0
        %915 = vmatpush1.bf16.msra.mxu0 0
        %916 = vmatprep.subr.bf16.mxu0 0
        %917 = vmatpush1.bf16.msra.mxu0 0
        %918 = vmatprep.subr.bf16.mxu0 0
        %919 = vmatpush1.bf16.msra.mxu0 0
        %920 = vmatprep.subr.bf16.mxu0 0
        %921 = vmatpush1.bf16.msra.mxu0 0
        %922 = vmatprep.subr.bf16.mxu0 0
        %923 = vmatpush1.bf16.msra.mxu0 0
        %924 = vmatprep.subr.bf16.mxu0 0
        %925 = vmatpush1.bf16.msra.mxu0 0
        %926 = vmatprep.mubr.bf16.mxu0 0
        %927 = vmatmul.mubr.bf16.gmra.mrb[0].mxu0 %v889
        %v928 = vpop.f32.mrb[0].mxu0
        %v929 = vadd.f32 0.0, %v928
        %v930 = vpop.f32.mrb[0].mxu0
        %v931 = vpop.f32.mrb[0].mxu0
        %v932 = vpop.f32.mrb[0].mxu0
        %933 = vdwg.mxu0
        %v935 = vsel %vm471, %v790, 0
        %v938 = vsel %vm798, %v794, 0
        %940 = vmatprep.subr.bf16.mxu0 0
        %941 = vmatpush1.bf16.msra.mxu0 %v938
        %942 = vmatprep.subr.bf16.mxu0 0
        %943 = vmatpush1.bf16.msra.mxu0 0
        %944 = vmatprep.subr.bf16.mxu0 0
        %945 = vmatpush1.bf16.msra.mxu0 0
        %946 = vmatprep.subr.bf16.mxu0 0
        %947 = vmatpush1.bf16.msra.mxu0 0
        %948 = vmatprep.subr.bf16.mxu0 0
        %949 = vmatpush1.bf16.msra.mxu0 0
        %950 = vmatprep.subr.bf16.mxu0 0
        %951 = vmatpush1.bf16.msra.mxu0 0
        %952 = vmatprep.subr.bf16.mxu0 0
        %953 = vmatpush1.bf16.msra.mxu0 0
        %954 = vmatprep.subr.bf16.mxu0 0
        %955 = vmatpush1.bf16.msra.mxu0 0
        %956 = vmatprep.subr.bf16.mxu0 0
        %957 = vmatpush1.bf16.msra.mxu0 0
        %958 = vmatprep.subr.bf16.mxu0 0
        %959 = vmatpush1.bf16.msra.mxu0 0
        %960 = vmatprep.subr.bf16.mxu0 0
        %961 = vmatpush1.bf16.msra.mxu0 0
        %962 = vmatprep.subr.bf16.mxu0 0
        %963 = vmatpush1.bf16.msra.mxu0 0
        %964 = vmatprep.subr.bf16.mxu0 0
        %965 = vmatpush1.bf16.msra.mxu0 0
        %966 = vmatprep.subr.bf16.mxu0 0
        %967 = vmatpush1.bf16.msra.mxu0 0
        %968 = vmatprep.subr.bf16.mxu0 0
        %969 = vmatpush1.bf16.msra.mxu0 0
        %970 = vmatprep.subr.bf16.mxu0 0
        %971 = vmatpush1.bf16.msra.mxu0 0
        %972 = vmatprep.mubr.bf16.mxu0 0
        %973 = vmatmul.mubr.bf16.gmra.mrb[0].mxu0 %v935
        %v974 = vpop.f32.mrb[0].mxu0
        %v975 = vadd.f32 0.0, %v974
        %v976 = vpop.f32.mrb[0].mxu0
        %v977 = vpop.f32.mrb[0].mxu0
        %v978 = vpop.f32.mrb[0].mxu0
        %979 = vdwg.mxu0
        %v980 = vadd.f32 %v783, %v837
        %v981 = vadd.f32 %v784, %v883
        %v982 = vadd.f32 %v785, %v929
        %v983 = vadd.f32 %v786, %v975
        %984 = vst.msk [vmem:[#allocation4] sm:$0xff] %vm471, %v980
        %985 = vst.msk [vmem:[#allocation4 + $0x8] sm:$0xff] %vm471, %v981
        %986 = vst.msk [vmem:[#allocation4 + $0x10] sm:$0xff] %vm471, %v982
        %987 = vst.msk [vmem:[#allocation4 + $0x18] sm:$0xff] %vm471, %v983
        %988 = vst.msk [vmem:[#allocation2] sm:$0xff] %vm754, %v682
        %989 = vst.msk [vmem:[#allocation2 + $0x8] sm:$0xff] %vm754, %v683
        %990 = vst.msk [vmem:[#allocation2 + $0x10] sm:$0xff] %vm754, %v684
        %991 = vst.msk [vmem:[#allocation2 + $0x18] sm:$0xff] %vm754, %v685
        // Predicated region
        $region73: #{_lambda_.17} parent=43 // pred_check
          %p992 = pneg %p445
        $region74: #{_lambda_.17} parent=43 // pred_check_branch
          %994 = sbr.rel (%p992) target = $region76
        $region75: #{_lambda_.17} parent=43 // pred_region
          %v995 = vld [vmem:[#allocation4] sm:$0xff]
          %v996 = vld [vmem:[#allocation4 + $0x8] sm:$0xff]
          %v997 = vld [vmem:[#allocation4 + $0x10] sm:$0xff]
          %v998 = vld [vmem:[#allocation4 + $0x18] sm:$0xff]
          %v999 = vld [vmem:[#allocation3] sm:$0xff]
          %v1000 = vld [vmem:[#allocation3 + $0x8] sm:$0xff]
          %v1001 = vld [vmem:[#allocation3 + $0x10] sm:$0xff]
          %v1002 = vld [vmem:[#allocation3 + $0x18] sm:$0xff]
          %v1003 = vrcp.pop %v999
          %v1004 = vrcp.pop %v1000
          %v1005 = vrcp.pop %v1001
          %v1006 = vrcp.pop %v1002
          %1008 = vset.pattern.permute.xlu0 0
          %1009 = vperm.xlu0 %1008, %v1003
          %v1010 = vpop.permute.xlu0 %1009
          %1013 = vset.pattern.permute.xlu0 0
          %1014 = vperm.xlu0 %1013, %v1004
          %v1015 = vpop.permute.xlu0 %1014
          %1018 = vset.pattern.permute.xlu0 0
          %1019 = vperm.xlu0 %1018, %v1005
          %v1020 = vpop.permute.xlu0 %1019
          %1023 = vset.pattern.permute.xlu0 0
          %1024 = vperm.xlu0 %1023, %v1006
          %v1025 = vpop.permute.xlu0 %1024
          %v1027 = vmul.f32 %v995, %v1010
          %v1028 = vmul.f32 %v996, %v1015
          %v1029 = vmul.f32 %v997, %v1020
          %v1030 = vmul.f32 %v998, %v1025
          %v1031 = vld [vmem:[#allocation14] sm:$0x1]
          %v1032 = vpack.c.bf16 %v1027, %v1027
          %v1033 = vld [vmem:[#allocation13] sm:$0xf]
          %v1035 = vsel %vm471, %v1032, 0
          %v1038 = vsel %vm798, %v1033, 0
          %1040 = vmatprep.subr.bf16.mxu0 0
          %1041 = vmatpush1.bf16.msra.mxu0 %v1038
          %1042 = vmatprep.subr.bf16.mxu0 0
          %1043 = vmatpush1.bf16.msra.mxu0 0
          %1044 = vmatprep.subr.bf16.mxu0 0
          %1045 = vmatpush1.bf16.msra.mxu0 0
          %1046 = vmatprep.subr.bf16.mxu0 0
          %1047 = vmatpush1.bf16.msra.mxu0 0
          %1048 = vmatprep.subr.bf16.mxu0 0
          %1049 = vmatpush1.bf16.msra.mxu0 0
          %1050 = vmatprep.subr.bf16.mxu0 0
          %1051 = vmatpush1.bf16.msra.mxu0 0
          %1052 = vmatprep.subr.bf16.mxu0 0
          %1053 = vmatpush1.bf16.msra.mxu0 0
          %1054 = vmatprep.subr.bf16.mxu0 0
          %1055 = vmatpush1.bf16.msra.mxu0 0
          %1056 = vmatprep.subr.bf16.mxu0 0
          %1057 = vmatpush1.bf16.msra.mxu0 0
          %1058 = vmatprep.subr.bf16.mxu0 0
          %1059 = vmatpush1.bf16.msra.mxu0 0
          %1060 = vmatprep.subr.bf16.mxu0 0
          %1061 = vmatpush1.bf16.msra.mxu0 0
          %1062 = vmatprep.subr.bf16.mxu0 0
          %1063 = vmatpush1.bf16.msra.mxu0 0
          %1064 = vmatprep.subr.bf16.mxu0 0
          %1065 = vmatpush1.bf16.msra.mxu0 0
          %1066 = vmatprep.subr.bf16.mxu0 0
          %1067 = vmatpush1.bf16.msra.mxu0 0
          %1068 = vmatprep.subr.bf16.mxu0 0
          %1069 = vmatpush1.bf16.msra.mxu0 0
          %1070 = vmatprep.subr.bf16.mxu0 0
          %1071 = vmatpush1.bf16.msra.mxu0 0
          %1072 = vmatprep.mubr.bf16.mxu0 0
          %1073 = vmatmul.mubr.bf16.gmra.mrb[0].mxu0 %v1035
          %v1074 = vpop.f32.mrb[0].mxu0
          %v1075 = vadd.f32 0.0, %v1074
          %v1076 = vpop.f32.mrb[0].mxu0
          %v1077 = vpop.f32.mrb[0].mxu0
          %v1078 = vpop.f32.mrb[0].mxu0
          %1079 = vdwg.mxu0
          %v1081 = vlaneseq
          %v1082 = vshrl.u32 %v1081, 7
          %v1083 = vsub.s32 0, %v1082
          %v1084 = vrot.slane %v1031, %v1083
          %v1086 = vadd.f32 %v1084, %v1075
          %v1087 = vpack.c.bf16 %v1028, %v1028
          %s1088 = scalar_lea.vmem [#allocation13], 4
          %v1089 = vld [vmem:[%s1088] sm:$0xf]
          %v1091 = vsel %vm471, %v1087, 0
          %v1094 = vsel %vm798, %v1089, 0
          %1096 = vmatprep.subr.bf16.mxu0 0
          %1097 = vmatpush1.bf16.msra.mxu0 %v1094
          %1098 = vmatprep.subr.bf16.mxu0 0
          %1099 = vmatpush1.bf16.msra.mxu0 0
          %1100 = vmatprep.subr.bf16.mxu0 0
          %1101 = vmatpush1.bf16.msra.mxu0 0
          %1102 = vmatprep.subr.bf16.mxu0 0
          %1103 = vmatpush1.bf16.msra.mxu0 0
          %1104 = vmatprep.subr.bf16.mxu0 0
          %1105 = vmatpush1.bf16.msra.mxu0 0
          %1106 = vmatprep.subr.bf16.mxu0 0
          %1107 = vmatpush1.bf16.msra.mxu0 0
          %1108 = vmatprep.subr.bf16.mxu0 0
          %1109 = vmatpush1.bf16.msra.mxu0 0
          %1110 = vmatprep.subr.bf16.mxu0 0
          %1111 = vmatpush1.bf16.msra.mxu0 0
          %1112 = vmatprep.subr.bf16.mxu0 0
          %1113 = vmatpush1.bf16.msra.mxu0 0
          %1114 = vmatprep.subr.bf16.mxu0 0
          %1115 = vmatpush1.bf16.msra.mxu0 0
          %1116 = vmatprep.subr.bf16.mxu0 0
          %1117 = vmatpush1.bf16.msra.mxu0 0
          %1118 = vmatprep.subr.bf16.mxu0 0
          %1119 = vmatpush1.bf16.msra.mxu0 0
          %1120 = vmatprep.subr.bf16.mxu0 0
          %1121 = vmatpush1.bf16.msra.mxu0 0
          %1122 = vmatprep.subr.bf16.mxu0 0
          %1123 = vmatpush1.bf16.msra.mxu0 0
          %1124 = vmatprep.subr.bf16.mxu0 0
          %1125 = vmatpush1.bf16.msra.mxu0 0
          %1126 = vmatprep.subr.bf16.mxu0 0
          %1127 = vmatpush1.bf16.msra.mxu0 0
          %1128 = vmatprep.mubr.bf16.mxu0 0
          %1129 = vmatmul.mubr.bf16.gmra.mrb[0].mxu0 %v1091
          %v1130 = vpop.f32.mrb[0].mxu0
          %v1131 = vadd.f32 0.0, %v1130
          %v1132 = vpop.f32.mrb[0].mxu0
          %v1133 = vpop.f32.mrb[0].mxu0
          %v1134 = vpop.f32.mrb[0].mxu0
          %1135 = vdwg.mxu0
          %v1136 = vadd.f32 %v1086, %v1131
          %v1137 = vpack.c.bf16 %v1029, %v1029
          %s1138 = scalar_lea.vmem [#allocation13], 8
          %v1139 = vld [vmem:[%s1138] sm:$0xf]
          %v1141 = vsel %vm471, %v1137, 0
          %v1144 = vsel %vm798, %v1139, 0
          %1146 = vmatprep.subr.bf16.mxu0 0
          %1147 = vmatpush1.bf16.msra.mxu0 %v1144
          %1148 = vmatprep.subr.bf16.mxu0 0
          %1149 = vmatpush1.bf16.msra.mxu0 0
          %1150 = vmatprep.subr.bf16.mxu0 0
          %1151 = vmatpush1.bf16.msra.mxu0 0
          %1152 = vmatprep.subr.bf16.mxu0 0
          %1153 = vmatpush1.bf16.msra.mxu0 0
          %1154 = vmatprep.subr.bf16.mxu0 0
          %1155 = vmatpush1.bf16.msra.mxu0 0
          %1156 = vmatprep.subr.bf16.mxu0 0
          %1157 = vmatpush1.bf16.msra.mxu0 0
          %1158 = vmatprep.subr.bf16.mxu0 0
          %1159 = vmatpush1.bf16.msra.mxu0 0
          %1160 = vmatprep.subr.bf16.mxu0 0
          %1161 = vmatpush1.bf16.msra.mxu0 0
          %1162 = vmatprep.subr.bf16.mxu0 0
          %1163 = vmatpush1.bf16.msra.mxu0 0
          %1164 = vmatprep.subr.bf16.mxu0 0
          %1165 = vmatpush1.bf16.msra.mxu0 0
          %1166 = vmatprep.subr.bf16.mxu0 0
          %1167 = vmatpush1.bf16.msra.mxu0 0
          %1168 = vmatprep.subr.bf16.mxu0 0
          %1169 = vmatpush1.bf16.msra.mxu0 0
          %1170 = vmatprep.subr.bf16.mxu0 0
          %1171 = vmatpush1.bf16.msra.mxu0 0
          %1172 = vmatprep.subr.bf16.mxu0 0
          %1173 = vmatpush1.bf16.msra.mxu0 0
          %1174 = vmatprep.subr.bf16.mxu0 0
          %1175 = vmatpush1.bf16.msra.mxu0 0
          %1176 = vmatprep.subr.bf16.mxu0 0
          %1177 = vmatpush1.bf16.msra.mxu0 0
          %1178 = vmatprep.mubr.bf16.mxu0 0
          %1179 = vmatmul.mubr.bf16.gmra.mrb[0].mxu0 %v1141
          %v1180 = vpop.f32.mrb[0].mxu0
          %v1181 = vadd.f32 0.0, %v1180
          %v1182 = vpop.f32.mrb[0].mxu0
          %v1183 = vpop.f32.mrb[0].mxu0
          %v1184 = vpop.f32.mrb[0].mxu0
          %1185 = vdwg.mxu0
          %v1186 = vadd.f32 %v1136, %v1181
          %v1187 = vpack.c.bf16 %v1030, %v1030
          %s1188 = scalar_lea.vmem [#allocation13], 12
          %v1189 = vld [vmem:[%s1188] sm:$0xf]
          %v1191 = vsel %vm471, %v1187, 0
          %v1194 = vsel %vm798, %v1189, 0
          %1196 = vmatprep.subr.bf16.mxu0 0
          %1197 = vmatpush1.bf16.msra.mxu0 %v1194
          %1198 = vmatprep.subr.bf16.mxu0 0
          %1199 = vmatpush1.bf16.msra.mxu0 0
          %1200 = vmatprep.subr.bf16.mxu0 0
          %1201 = vmatpush1.bf16.msra.mxu0 0
          %1202 = vmatprep.subr.bf16.mxu0 0
          %1203 = vmatpush1.bf16.msra.mxu0 0
          %1204 = vmatprep.subr.bf16.mxu0 0
          %1205 = vmatpush1.bf16.msra.mxu0 0
          %1206 = vmatprep.subr.bf16.mxu0 0
          %1207 = vmatpush1.bf16.msra.mxu0 0
          %1208 = vmatprep.subr.bf16.mxu0 0
          %1209 = vmatpush1.bf16.msra.mxu0 0
          %1210 = vmatprep.subr.bf16.mxu0 0
          %1211 = vmatpush1.bf16.msra.mxu0 0
          %1212 = vmatprep.subr.bf16.mxu0 0
          %1213 = vmatpush1.bf16.msra.mxu0 0
          %1214 = vmatprep.subr.bf16.mxu0 0
          %1215 = vmatpush1.bf16.msra.mxu0 0
          %1216 = vmatprep.subr.bf16.mxu0 0
          %1217 = vmatpush1.bf16.msra.mxu0 0
          %1218 = vmatprep.subr.bf16.mxu0 0
          %1219 = vmatpush1.bf16.msra.mxu0 0
          %1220 = vmatprep.subr.bf16.mxu0 0
          %1221 = vmatpush1.bf16.msra.mxu0 0
          %1222 = vmatprep.subr.bf16.mxu0 0
          %1223 = vmatpush1.bf16.msra.mxu0 0
          %1224 = vmatprep.subr.bf16.mxu0 0
          %1225 = vmatpush1.bf16.msra.mxu0 0
          %1226 = vmatprep.subr.bf16.mxu0 0
          %1227 = vmatpush1.bf16.msra.mxu0 0
          %1228 = vmatprep.mubr.bf16.mxu0 0
          %1229 = vmatmul.mubr.bf16.gmra.mrb[0].mxu0 %v1191
          %v1230 = vpop.f32.mrb[0].mxu0
          %v1231 = vadd.f32 0.0, %v1230
          %v1232 = vpop.f32.mrb[0].mxu0
          %v1233 = vpop.f32.mrb[0].mxu0
          %v1234 = vpop.f32.mrb[0].mxu0
          %1235 = vdwg.mxu0
          %v1236 = vadd.f32 %v1186, %v1231
          %v1237 = vld [vmem:[%s365] sm:$0xf]
          %v1238 = vunpack.c.l.bf16 %v1237
          %v1239 = vadd.f32 %v1238, %v1236
          %v1240 = vpack.c.bf16 %v1239, %v1239
          %vm1241 = vcmask 257024
          %1242 = vst.msk [vmem:[%s443] sm:$0xf] %vm1241, %v1240
        $region76: #{_lambda_.17} parent=43 // pred_fallthru
          _
        %s1243 = sand.u32 %s213, 1
        %s1244 = scalar_lea.sflag [#allocation7], %s1243
        %s1245 = sand.u32 %s213, 1
        %s1246 = smul.addr %s1245, 4
        %s1247 = scalar_lea.vmem [#allocation16], %s1246
        // Predicated region
        $region77: #{_lambda_.17} parent=43 // pred_check
          %p1248 = pneg %p223
        $region78: #{_lambda_.17} parent=43 // pred_check_branch
          %1250 = sbr.rel (%p1248) target = $region80
        $region79: #{_lambda_.17} parent=43 // pred_region
          %s1252 = ssub.s32 64, 64
          %1253 = vsyncadd %s1244, %s1252
          %s1254 = sadd.s32 %s36, %s35
          %s1255 = smul.addr %s1254, 64
          %s1256 = scalar_lea.hbm %s6, %s1255
          %s1258 = sshll.u32 %s1247, 4
          %s1259 = int_to_ptr.vmem [resolvable:$true] %s1258
          %1261 = dma.vmem_to_hbm [thread:$0]  %s1259, 64, %s1256, %s1244
        $region80: #{_lambda_.17} parent=43 // pred_fallthru
          _
      $region44: #{_lambda_.17} parent=5 // pred_fallthru
        _
      %p1262 = scmp.le.s32.totalorder 2, %s25
      // Predicated region
      $region81: #{_lambda_.17} parent=5 // pred_check
        %p1263 = pneg %p1262
      $region82: #{_lambda_.17} parent=5 // pred_check_branch
        %1265 = sbr.rel (%p1263) target = $region84
      $region83: #{_lambda_.17} parent=5 // pred_region
        %s1266 = ssub.s32 %s25, 2
        // Predicated region
        $region85: #{_lambda_.17} parent=83 // pred_check
          %p1267 = pneg %p229
        $region86: #{_lambda_.17} parent=83 // pred_check_branch
          %1269 = sbr.rel (%p1267) target = $region88
        $region87: #{_lambda_.17} parent=83 // pred_region
          %s1270 = sand.u32 %s214, 1
          %s1271 = scalar_lea.sflag [#allocation7], %s1270
          %s1272 = sand.u32 %s214, 1
          %s1273 = smul.addr %s1272, 4
          %s1274 = scalar_lea.vmem [#allocation16], %s1273
          %1275 = dma.done %s1271, 64
        $region88: #{_lambda_.17} parent=83 // pred_fallthru
          _
      $region84: #{_lambda_.17} parent=5 // pred_fallthru
        _
    $region6: #{_lambda_.17} parent=1 // loop_footer
      %s29 = sadd.s32 1, %s25
    $region7: #{_lambda_.17} parent=1 // loop_footer_branch
      %24 = sbr.rel target = $region3
    $region8: #{_lambda_.17} parent=1 // loop_exit
      _
    %1276 = vsyncpa [#allocation6], 1
    %s1277 = scalar_lea.sflag [#allocation6], 1
    %1278 = vsyncpa %s1277, 1
    %1279 = vsyncpa [#allocation9], 1
    %s1280 = scalar_lea.sflag [#allocation9], 1
    %1281 = vsyncpa %s1280, 1
    %1282 = vsyncpa [#allocation12], 1
    %s1283 = scalar_lea.sflag [#allocation12], 1
    %1284 = vsyncpa %s1283, 1
    %1285 = vsyncpa [#allocation15], 1
    %1286 = vsyncpa [#allocation7], 1
    %s1287 = scalar_lea.sflag [#allocation7], 1
    %1288 = vsyncpa %s1287, 1

</llo_original>
